<compile_context>
chip_gen: v5e
topology: v5e:2x2
jax: 0.10.0
libtpu: 0.0.40
codegen_flags: <defaults>
</compile_context>

<pallas_src>
import jax
import jax.numpy as jnp
from jax.experimental import pallas as pl
from jax.experimental.pallas import tpu as pltpu


# -----------------------------------------------------------------------------
# Fused kernel: unrolled dynamic-length LSTM (fused gates) + masked bi_linear
#               attention (online softmax over VMEM scratch) + vis2text + dense_3
# -----------------------------------------------------------------------------
def mmfusion_kernel(gx_ref, lens_ref, invlen_ref, whh_ref,
                    wk_ref, bk_ref, wq_ref, bq_ref, wbl_ref, wp_ref, bp_ref,
                    vis_ref, wv_ref, bv_ref, wdt_ref, wdv_ref, bd_ref,
                    out_ref, kx_ref):
    L = gx_ref.shape[0]
    B = gx_ref.shape[1]
    H = gx_ref.shape[2] // 4

    # ---- vis2text first: independent of the token path; bf16 operands, f32
    # accumulation; its K=2048 matmul overlaps the serial recurrence.
    vis_t = jnp.tanh(vis_ref[...].astype(jnp.float32)).astype(jnp.bfloat16)
    vis_h = (jnp.dot(vis_t, wv_ref[...], preferred_element_type=jnp.float32)
             + bv_ref[...])

    # Hoisted operands (weights already bf16 from the wrapper).
    whh = whh_ref[...]            # (H, 4H) bf16 fused recurrent weights
    wk = wk_ref[...]              # (H, H)  bf16
    lens = lens_ref[...]          # (B, 1)  i32

    h = jnp.zeros((B, H), jnp.float32)
    c = jnp.zeros((B, H), jnp.float32)
    q_sum = jnp.zeros((B, H), jnp.float32)

    # ---- fully unrolled LSTM recurrence: one fused (B,H)x(H,4H) dot per step;
    # x @ W_ih + b was hoisted into gates_x in the wrapper.
    for t in range(L):
        gates = gx_ref[t] + jnp.dot(h.astype(jnp.bfloat16), whh,
                                    preferred_element_type=jnp.float32)
        i_g = jax.nn.sigmoid(gates[:, 0 * H:1 * H])
        f_g = jax.nn.sigmoid(gates[:, 1 * H:2 * H])
        g_g = jnp.tanh(gates[:, 2 * H:3 * H])
        o_g = jax.nn.sigmoid(gates[:, 3 * H:4 * H])
        c_new = f_g * c + i_g * g_g
        h_new = o_g * jnp.tanh(c_new)

        valid = jnp.broadcast_to(lens > t, (B, H))   # one broadcast, reused 3x
        c = jnp.where(valid, c_new, c)
        ctx_t = jnp.where(valid, h_new, 0.0)         # pad_packed: zeros past len
        h = jnp.where(valid, h_new, h)

        q_sum = q_sum + ctx_t
        # w_k(ctx) WITHOUT bias: the b_k contribution to the score is a per-row
        # constant (cancels in softmax) and its contribution to the weighted
        # sum is exactly b_k (weights sum to 1) -> added once after the loop.
        kx_ref[t] = jnp.dot(ctx_t.astype(jnp.bfloat16), wk,
                            preferred_element_type=jnp.float32)

    # ---- attention: bi_linear scoring against the masked-mean pooled query.
    q_pool = q_sum * invlen_ref[...]                                   # (B, H)
    qx = (jnp.dot(q_pool.astype(jnp.bfloat16), wq_ref[...],
                  preferred_element_type=jnp.float32) + bq_ref[...])
    qw = jnp.dot(qx.astype(jnp.bfloat16), wbl_ref[...],
                 preferred_element_type=jnp.float32)                   # (B, H)

    # Online softmax over the L cached kx rows (bounded register pressure).
    def att_step(t, carry):
        m, l, acc = carry
        kx_t = kx_ref[t]
        s = jnp.sum(qw * kx_t, axis=-1, keepdims=True)                 # (B, 1)
        s = jnp.where(lens > t, s, -1e30)                              # length mask
        m_new = jnp.maximum(m, s)
        alpha = jnp.exp(m - m_new)
        p = jnp.exp(s - m_new)
        return (m_new, alpha * l + p, alpha * acc + p * kx_t)

    m0 = jnp.full((B, 1), -jnp.inf, jnp.float32)
    l0 = jnp.zeros((B, 1), jnp.float32)
    a0 = jnp.zeros((B, H), jnp.float32)
    _, l_fin, acc = jax.lax.fori_loop(0, L, att_step, (m0, l0, a0), unroll=True)
    att = acc * pl.reciprocal(l_fin, approx=True) + bk_ref[...]        # +folded b_k

    att = (jnp.dot(att.astype(jnp.bfloat16), wp_ref[...],
                   preferred_element_type=jnp.float32) + bp_ref[...])

    # ---- dense_3 over cat([att, vis_h], -1), implemented as split matmuls.
    out_ref[...] = (jnp.dot(att.astype(jnp.bfloat16), wdt_ref[...],
                            preferred_element_type=jnp.float32)
                    + jnp.dot(vis_h.astype(jnp.bfloat16), wdv_ref[...],
                              preferred_element_type=jnp.float32)
                    + bd_ref[...])


# -----------------------------------------------------------------------------
# Wrapper: embedding lookup + hoisted time-major input projection + fused call
# -----------------------------------------------------------------------------
def mmfusion_forward(tokens, visual_embeds_global, params):
    B, L = tokens.shape
    emb = params["embedding"]
    E = emb.shape[1]
    H = params["w_hh"].shape[0]
    P = params["b_d"].shape[1]
    VIS = visual_embeds_global.shape[1]
    bf = jnp.bfloat16

    lens = jnp.sum(tokens != 0, axis=-1).astype(jnp.int32)            # ori_x_len
    x = jnp.take(emb, tokens, axis=0).astype(jnp.float32)             # (B, L, E)

    # Time-major input projection: one big matmul, result already (L, B, 4H).
    x_t = jnp.transpose(x, (1, 0, 2)).reshape(L * B, E)
    gates_x = (x_t @ params["w_ih"] + params["b_lstm"]).reshape(L, B, 4 * H)
    gates_x = gates_x.astype(jnp.float32)

    lens_col = lens[:, None]                                          # (B, 1) i32
    inv_len = (1.0 / jnp.maximum(lens.astype(jnp.float32), 1.0))[:, None]

    w_d = params["w_d"]
    args = (gates_x, lens_col, inv_len,
            params["w_hh"].astype(bf),
            params["w_k"].astype(bf), params["b_k"],
            params["w_q"].astype(bf), params["b_q"],
            params["w_bl"].astype(bf),
            params["w_proj"].astype(bf), params["b_proj"],
            visual_embeds_global.astype(bf),
            params["w_v"].astype(bf), params["b_v"],
            w_d[:H, :].astype(bf), w_d[H:, :].astype(bf), params["b_d"])

    # Batch grid (parallel => both v7x TensorCores; bounds per-block VMEM).
    tile_b = B if (B <= 256 or B % 256 != 0) else 256
    grid = (pl.cdiv(B, tile_b),)

    def weight_full(arr):
        return pl.BlockSpec(arr.shape, lambda b: (0,) * arr.ndim)

    in_specs = [
        pl.BlockSpec((L, tile_b, 4 * H), lambda b: (0, b, 0)),         # gates_x
        pl.BlockSpec((tile_b, 1), lambda b: (b, 0)),                   # lens
        pl.BlockSpec((tile_b, 1), lambda b: (b, 0)),                   # inv_len
        weight_full(args[3]),                                          # w_hh
        weight_full(args[4]), weight_full(args[5]),                    # w_k, b_k
        weight_full(args[6]), weight_full(args[7]),                    # w_q, b_q
        weight_full(args[8]),                                          # w_bl
        weight_full(args[9]), weight_full(args[10]),                   # w_proj, b_proj
        pl.BlockSpec((tile_b, VIS), lambda b: (b, 0)),                 # vis (bf16)
        weight_full(args[12]), weight_full(args[13]),                  # w_v, b_v
        weight_full(args[14]), weight_full(args[15]),                  # w_d split
        weight_full(args[16]),                                         # b_d
    ]

    return pl.pallas_call(
        mmfusion_kernel,
        out_shape=jax.ShapeDtypeStruct((B, P), jnp.float32),
        grid=grid,
        in_specs=in_specs,
        out_specs=pl.BlockSpec((tile_b, P), lambda b: (b, 0)),
        scratch_shapes=[pltpu.VMEM((L, tile_b, H), jnp.float32)],      # kx cache
        compiler_params=pltpu.CompilerParams(
            dimension_semantics=("parallel",)),
    )(*args)


# -----------------------------------------------------------------------------
# Pure-JAX reference for verification
# -----------------------------------------------------------------------------
def mmfusion_reference(tokens, vis, params):
    lens = jnp.sum(tokens != 0, axis=-1).astype(jnp.int32)
    x = jnp.take(params["embedding"], tokens, axis=0)
    B, L, E = x.shape
    H = params["w_hh"].shape[0]
    h = jnp.zeros((B, H), jnp.float32)
    c = jnp.zeros((B, H), jnp.float32)
    outs = []
    for t in range(L):
        gates = (x[:, t, :] @ params["w_ih"] + h @ params["w_hh"]
                 + params["b_lstm"][0])
        i = jax.nn.sigmoid(gates[:, :H]); f = jax.nn.sigmoid(gates[:, H:2 * H])
        g = jnp.tanh(gates[:, 2 * H:3 * H]); o = jax.nn.sigmoid(gates[:, 3 * H:])
        c_new = f * c + i * g
        h_new = o * jnp.tanh(c_new)
        valid = (t < lens)[:, None].astype(jnp.float32)
        h = valid * h_new + (1 - valid) * h
        c = valid * c_new + (1 - valid) * c
        outs.append(valid * h_new)
    ctx = jnp.stack(outs, axis=1)
    mask = (jnp.arange(L)[None, :] < lens[:, None]).astype(jnp.float32)
    q_pool = (ctx * mask[:, :, None]).sum(1) / lens[:, None].astype(jnp.float32)
    kx = ctx @ params["w_k"] + params["b_k"][0]
    qx = q_pool @ params["w_q"] + params["b_q"][0]
    qw = qx @ params["w_bl"]
    score = jnp.einsum("bh,blh->bl", qw, kx)
    score = jnp.where(mask > 0, score, -1e30)
    score = jax.nn.softmax(score, -1)
    att = jnp.einsum("bl,blh->bh", score, kx) @ params["w_proj"] + params["b_proj"][0]
    vis_h = jnp.tanh(vis) @ params["w_v"] + params["b_v"][0]
    feat = jnp.concatenate([att, vis_h], axis=-1)
    return feat @ params["w_d"] + params["b_d"][0]


if __name__ == "__main__":
    # small shapes consistent with the module
    VOCAB, B, L, E, H, P, VIS = 20, 2, 8, 32, 32, 3, 2048

    key = jax.random.PRNGKey(0)
    ks = jax.random.split(key, 16)

    def nrm(k, shape, s=0.1):
        return (s * jax.random.normal(k, shape)).astype(jnp.float32)

    params = {
        "embedding": nrm(ks[0], (VOCAB, E)).at[0].set(0.0),   # padding_idx row = 0
        # LSTM (PyTorch gate order i,f,g,o; W stored transposed: (in, 4H))
        "w_ih": nrm(ks[1], (E, 4 * H)),
        "w_hh": nrm(ks[2], (H, 4 * H)),
        "b_lstm": nrm(ks[3], (1, 4 * H)),                     # b_ih + b_hh combined
        # Attention (bi_linear, n_head=1, hidden=out=H)
        "w_k": nrm(ks[4], (H, H)), "b_k": nrm(ks[5], (1, H)),
        "w_q": nrm(ks[6], (H, H)), "b_q": nrm(ks[7], (1, H)),
        "w_bl": nrm(ks[8], (H, H)),
        "w_proj": nrm(ks[9], (H, H)), "b_proj": nrm(ks[10], (1, H)),
        # vis2text: Linear(2048, H)
        "w_v": nrm(ks[11], (VIS, H), s=0.02), "b_v": nrm(ks[12], (1, H)),
        # dense_3: Linear(2H, P)
        "w_d": nrm(ks[13], (2 * H, P)), "b_d": nrm(ks[14], (1, P)),
    }

    # token ids with trailing padding (variable lengths 8 and 5)
    tokens = jax.random.randint(ks[15], (B, L), 1, VOCAB).astype(jnp.int32)
    tokens = tokens.at[1, 5:].set(0)
    visual = jax.random.normal(jax.random.PRNGKey(1), (B, VIS)).astype(jnp.float32)

    out = mmfusion_forward(tokens, visual, params)
    out = jax.block_until_ready(out)

    ref = mmfusion_reference(tokens, visual, params)
    assert out.shape == (B, P)
    assert jnp.allclose(out, ref, rtol=1e-2, atol=1e-2), (out, ref)

    print("KERNEL_OK")
</pallas_src>

<mosaic_0001>
module attributes {stable_mosaic.version = 11 : i64} {
  func.func @mmfusion_kernel(%arg0: i32, %arg1: memref<8x2x128xf32, #tpu.memory_space<vmem>>, %arg2: memref<2x1xi32, #tpu.memory_space<vmem>>, %arg3: memref<2x1xf32, #tpu.memory_space<vmem>>, %arg4: memref<32x128xbf16, #tpu.memory_space<vmem>>, %arg5: memref<32x32xbf16, #tpu.memory_space<vmem>>, %arg6: memref<1x32xf32, #tpu.memory_space<vmem>>, %arg7: memref<32x32xbf16, #tpu.memory_space<vmem>>, %arg8: memref<1x32xf32, #tpu.memory_space<vmem>>, %arg9: memref<32x32xbf16, #tpu.memory_space<vmem>>, %arg10: memref<32x32xbf16, #tpu.memory_space<vmem>>, %arg11: memref<1x32xf32, #tpu.memory_space<vmem>>, %arg12: memref<2x2048xbf16, #tpu.memory_space<vmem>>, %arg13: memref<2048x32xbf16, #tpu.memory_space<vmem>>, %arg14: memref<1x32xf32, #tpu.memory_space<vmem>>, %arg15: memref<32x3xbf16, #tpu.memory_space<vmem>>, %arg16: memref<32x3xbf16, #tpu.memory_space<vmem>>, %arg17: memref<1x3xf32, #tpu.memory_space<vmem>>, %arg18: memref<2x3xf32, #tpu.memory_space<vmem>>, %arg19: memref<8x2x32xf32, #tpu.memory_space<vmem>>) attributes {dimension_semantics = [#tpu.dimension_semantics<parallel>], iteration_bounds = array<i64: 1>, scalar_prefetch = 0 : i64, scratch_operands = 1 : i64, tpu.core_type = #tpu.core_type<tc>, window_params = [{transform_indices = @transform_0, window_bounds = array<i64: 8, 2, 128>}, {transform_indices = @transform_1, window_bounds = array<i64: 2, 1>}, {transform_indices = @transform_2, window_bounds = array<i64: 2, 1>}, {pipeline_mode = #tpu.pipeline_mode<synchronous>, transform_indices = @transform_3, window_bounds = array<i64: 32, 128>}, {pipeline_mode = #tpu.pipeline_mode<synchronous>, transform_indices = @transform_4, window_bounds = array<i64: 32, 32>}, {pipeline_mode = #tpu.pipeline_mode<synchronous>, transform_indices = @transform_5, window_bounds = array<i64: 1, 32>}, {pipeline_mode = #tpu.pipeline_mode<synchronous>, transform_indices = @transform_6, window_bounds = array<i64: 32, 32>}, {pipeline_mode = #tpu.pipeline_mode<synchronous>, transform_indices = @transform_7, window_bounds = array<i64: 1, 32>}, {pipeline_mode = #tpu.pipeline_mode<synchronous>, transform_indices = @transform_8, window_bounds = array<i64: 32, 32>}, {pipeline_mode = #tpu.pipeline_mode<synchronous>, transform_indices = @transform_9, window_bounds = array<i64: 32, 32>}, {pipeline_mode = #tpu.pipeline_mode<synchronous>, transform_indices = @transform_10, window_bounds = array<i64: 1, 32>}, {transform_indices = @transform_11, window_bounds = array<i64: 2, 2048>}, {pipeline_mode = #tpu.pipeline_mode<synchronous>, transform_indices = @transform_12, window_bounds = array<i64: 2048, 32>}, {pipeline_mode = #tpu.pipeline_mode<synchronous>, transform_indices = @transform_13, window_bounds = array<i64: 1, 32>}, {pipeline_mode = #tpu.pipeline_mode<synchronous>, transform_indices = @transform_14, window_bounds = array<i64: 32, 3>}, {pipeline_mode = #tpu.pipeline_mode<synchronous>, transform_indices = @transform_15, window_bounds = array<i64: 32, 3>}, {pipeline_mode = #tpu.pipeline_mode<synchronous>, transform_indices = @transform_16, window_bounds = array<i64: 1, 3>}, {transform_indices = @transform_17, window_bounds = array<i64: 2, 3>}]} {
    %c0 = arith.constant 0 : index
    %c0_0 = arith.constant 0 : index
    %0 = vector.load %arg12[%c0, %c0_0] : memref<2x2048xbf16, #tpu.memory_space<vmem>>, vector<2x2048xbf16>
    %1 = arith.extf %0 : vector<2x2048xbf16> to vector<2x2048xf32>
    %2 = math.tanh %1 : vector<2x2048xf32>
    %3 = arith.truncf %2 : vector<2x2048xf32> to vector<2x2048xbf16>
    %c0_1 = arith.constant 0 : index
    %c0_2 = arith.constant 0 : index
    %4 = vector.load %arg13[%c0_1, %c0_2] : memref<2048x32xbf16, #tpu.memory_space<vmem>>, vector<2048x32xbf16>
    %cst = arith.constant dense<0.000000e+00> : vector<2x32xf32>
    %5 = tpu.matmul %3, %4, %cst {dimension_numbers = #tpu.dot_dimension_numbers<[1], [0], [0], [1], [0, 0, 1, 1], [], []>} : vector<2x2048xbf16>, vector<2048x32xbf16>, vector<2x32xf32> -> vector<2x32xf32>
    %c0_3 = arith.constant 0 : index
    %c0_4 = arith.constant 0 : index
    %6 = vector.load %arg14[%c0_3, %c0_4] : memref<1x32xf32, #tpu.memory_space<vmem>>, vector<1x32xf32>
    %7 = vector.broadcast %6 : vector<1x32xf32> to vector<2x32xf32>
    %8 = arith.addf %5, %7 : vector<2x32xf32>
    %c0_5 = arith.constant 0 : index
    %c0_6 = arith.constant 0 : index
    %9 = vector.load %arg4[%c0_5, %c0_6] : memref<32x128xbf16, #tpu.memory_space<vmem>>, vector<32x128xbf16>
    %c0_7 = arith.constant 0 : index
    %c0_8 = arith.constant 0 : index
    %10 = vector.load %arg5[%c0_7, %c0_8] : memref<32x32xbf16, #tpu.memory_space<vmem>>, vector<32x32xbf16>
    %c0_9 = arith.constant 0 : index
    %c0_10 = arith.constant 0 : index
    %11 = vector.load %arg2[%c0_9, %c0_10] : memref<2x1xi32, #tpu.memory_space<vmem>>, vector<2x1xi32>
    %cst_11 = arith.constant 0.000000e+00 : f32
    %12 = vector.broadcast %cst_11 : f32 to vector<2x32xf32>
    %cst_12 = arith.constant 0.000000e+00 : f32
    %13 = vector.broadcast %cst_12 : f32 to vector<2x32xf32>
    %cst_13 = arith.constant 0.000000e+00 : f32
    %14 = vector.broadcast %cst_13 : f32 to vector<2x32xf32>
    %c0_14 = arith.constant 0 : index
    %c0_15 = arith.constant 0 : index
    %c0_16 = arith.constant 0 : index
    %15 = vector.load %arg1[%c0_14, %c0_15, %c0_16] : memref<8x2x128xf32, #tpu.memory_space<vmem>>, vector<1x2x128xf32>
    %16 = vector.shape_cast %15 : vector<1x2x128xf32> to vector<2x128xf32>
    %17 = arith.truncf %12 : vector<2x32xf32> to vector<2x32xbf16>
    %cst_17 = arith.constant dense<0.000000e+00> : vector<2x128xf32>
    %18 = tpu.matmul %17, %9, %cst_17 {dimension_numbers = #tpu.dot_dimension_numbers<[1], [0], [0], [1], [0, 0, 1, 1], [], []>} : vector<2x32xbf16>, vector<32x128xbf16>, vector<2x128xf32> -> vector<2x128xf32>
    %19 = arith.addf %16, %18 : vector<2x128xf32>
    %20 = vector.extract_strided_slice %19 {offsets = [0, 0], sizes = [2, 32], strides = [1, 1]} : vector<2x128xf32> to vector<2x32xf32>
    %21 = arith.negf %20 : vector<2x32xf32>
    %22 = math.exp %21 : vector<2x32xf32>
    %cst_18 = arith.constant 1.000000e+00 : f32
    %23 = vector.broadcast %cst_18 : f32 to vector<2x32xf32>
    %24 = arith.addf %23, %22 : vector<2x32xf32>
    %25 = arith.divf %23, %24 : vector<2x32xf32>
    %26 = vector.extract_strided_slice %19 {offsets = [0, 32], sizes = [2, 32], strides = [1, 1]} : vector<2x128xf32> to vector<2x32xf32>
    %27 = arith.negf %26 : vector<2x32xf32>
    %28 = math.exp %27 : vector<2x32xf32>
    %cst_19 = arith.constant 1.000000e+00 : f32
    %29 = vector.broadcast %cst_19 : f32 to vector<2x32xf32>
    %30 = arith.addf %29, %28 : vector<2x32xf32>
    %31 = arith.divf %29, %30 : vector<2x32xf32>
    %32 = vector.extract_strided_slice %19 {offsets = [0, 64], sizes = [2, 32], strides = [1, 1]} : vector<2x128xf32> to vector<2x32xf32>
    %33 = math.tanh %32 : vector<2x32xf32>
    %34 = vector.extract_strided_slice %19 {offsets = [0, 96], sizes = [2, 32], strides = [1, 1]} : vector<2x128xf32> to vector<2x32xf32>
    %35 = arith.negf %34 : vector<2x32xf32>
    %36 = math.exp %35 : vector<2x32xf32>
    %cst_20 = arith.constant 1.000000e+00 : f32
    %37 = vector.broadcast %cst_20 : f32 to vector<2x32xf32>
    %38 = arith.addf %37, %36 : vector<2x32xf32>
    %39 = arith.divf %37, %38 : vector<2x32xf32>
    %40 = arith.mulf %31, %13 : vector<2x32xf32>
    %41 = arith.mulf %25, %33 : vector<2x32xf32>
    %42 = arith.addf %40, %41 : vector<2x32xf32>
    %43 = math.tanh %42 : vector<2x32xf32>
    %44 = arith.mulf %39, %43 : vector<2x32xf32>
    %c0_i32 = arith.constant 0 : i32
    %45 = vector.broadcast %c0_i32 : i32 to vector<2x1xi32>
    %46 = arith.cmpi sgt, %11, %45 : vector<2x1xi32>
    %47 = vector.shape_cast %46 : vector<2x1xi1> to vector<2x1xi1>
    %48 = vector.broadcast %47 : vector<2x1xi1> to vector<2x32xi1>
    %49 = arith.select %48, %42, %13 : vector<2x32xi1>, vector<2x32xf32>
    %cst_21 = arith.constant 0.000000e+00 : f32
    %50 = vector.broadcast %cst_21 : f32 to vector<2x32xf32>
    %51 = arith.select %48, %44, %50 : vector<2x32xi1>, vector<2x32xf32>
    %52 = arith.select %48, %44, %12 : vector<2x32xi1>, vector<2x32xf32>
    %53 = arith.addf %14, %51 : vector<2x32xf32>
    %54 = arith.truncf %51 : vector<2x32xf32> to vector<2x32xbf16>
    %cst_22 = arith.constant dense<0.000000e+00> : vector<2x32xf32>
    %55 = tpu.matmul %54, %10, %cst_22 {dimension_numbers = #tpu.dot_dimension_numbers<[1], [0], [0], [1], [0, 0, 1, 1], [], []>} : vector<2x32xbf16>, vector<32x32xbf16>, vector<2x32xf32> -> vector<2x32xf32>
    %c0_23 = arith.constant 0 : index
    %c0_24 = arith.constant 0 : index
    %c0_25 = arith.constant 0 : index
    %56 = vector.load %arg19[%c0_23, %c0_24, %c0_25] : memref<8x2x32xf32, #tpu.memory_space<vmem>>, vector<1x2x32xf32>
    %57 = vector.shape_cast %56 : vector<1x2x32xf32> to vector<2x32xf32>
    %58 = vector.shape_cast %55 : vector<2x32xf32> to vector<1x2x32xf32>
    tpu.vector_store %arg19[%c0_23, %c0_24, %c0_25], %58 {strides = array<i32>} : memref<8x2x32xf32, #tpu.memory_space<vmem>>, vector<1x2x32xf32>,
    %c1 = arith.constant 1 : index
    %c0_26 = arith.constant 0 : index
    %c0_27 = arith.constant 0 : index
    %59 = vector.load %arg1[%c1, %c0_26, %c0_27] : memref<8x2x128xf32, #tpu.memory_space<vmem>>, vector<1x2x128xf32>
    %60 = vector.shape_cast %59 : vector<1x2x128xf32> to vector<2x128xf32>
    %61 = arith.truncf %52 : vector<2x32xf32> to vector<2x32xbf16>
    %cst_28 = arith.constant dense<0.000000e+00> : vector<2x128xf32>
    %62 = tpu.matmul %61, %9, %cst_28 {dimension_numbers = #tpu.dot_dimension_numbers<[1], [0], [0], [1], [0, 0, 1, 1], [], []>} : vector<2x32xbf16>, vector<32x128xbf16>, vector<2x128xf32> -> vector<2x128xf32>
    %63 = arith.addf %60, %62 : vector<2x128xf32>
    %64 = vector.extract_strided_slice %63 {offsets = [0, 0], sizes = [2, 32], strides = [1, 1]} : vector<2x128xf32> to vector<2x32xf32>
    %65 = arith.negf %64 : vector<2x32xf32>
    %66 = math.exp %65 : vector<2x32xf32>
    %cst_29 = arith.constant 1.000000e+00 : f32
    %67 = vector.broadcast %cst_29 : f32 to vector<2x32xf32>
    %68 = arith.addf %67, %66 : vector<2x32xf32>
    %69 = arith.divf %67, %68 : vector<2x32xf32>
    %70 = vector.extract_strided_slice %63 {offsets = [0, 32], sizes = [2, 32], strides = [1, 1]} : vector<2x128xf32> to vector<2x32xf32>
    %71 = arith.negf %70 : vector<2x32xf32>
    %72 = math.exp %71 : vector<2x32xf32>
    %cst_30 = arith.constant 1.000000e+00 : f32
    %73 = vector.broadcast %cst_30 : f32 to vector<2x32xf32>
    %74 = arith.addf %73, %72 : vector<2x32xf32>
    %75 = arith.divf %73, %74 : vector<2x32xf32>
    %76 = vector.extract_strided_slice %63 {offsets = [0, 64], sizes = [2, 32], strides = [1, 1]} : vector<2x128xf32> to vector<2x32xf32>
    %77 = math.tanh %76 : vector<2x32xf32>
    %78 = vector.extract_strided_slice %63 {offsets = [0, 96], sizes = [2, 32], strides = [1, 1]} : vector<2x128xf32> to vector<2x32xf32>
    %79 = arith.negf %78 : vector<2x32xf32>
    %80 = math.exp %79 : vector<2x32xf32>
    %cst_31 = arith.constant 1.000000e+00 : f32
    %81 = vector.broadcast %cst_31 : f32 to vector<2x32xf32>
    %82 = arith.addf %81, %80 : vector<2x32xf32>
    %83 = arith.divf %81, %82 : vector<2x32xf32>
    %84 = arith.mulf %75, %49 : vector<2x32xf32>
    %85 = arith.mulf %69, %77 : vector<2x32xf32>
    %86 = arith.addf %84, %85 : vector<2x32xf32>
    %87 = math.tanh %86 : vector<2x32xf32>
    %88 = arith.mulf %83, %87 : vector<2x32xf32>
    %c1_i32 = arith.constant 1 : i32
    %89 = vector.broadcast %c1_i32 : i32 to vector<2x1xi32>
    %90 = arith.cmpi sgt, %11, %89 : vector<2x1xi32>
    %91 = vector.shape_cast %90 : vector<2x1xi1> to vector<2x1xi1>
    %92 = vector.broadcast %91 : vector<2x1xi1> to vector<2x32xi1>
    %93 = arith.select %92, %86, %49 : vector<2x32xi1>, vector<2x32xf32>
    %cst_32 = arith.constant 0.000000e+00 : f32
    %94 = vector.broadcast %cst_32 : f32 to vector<2x32xf32>
    %95 = arith.select %92, %88, %94 : vector<2x32xi1>, vector<2x32xf32>
    %96 = arith.select %92, %88, %52 : vector<2x32xi1>, vector<2x32xf32>
    %97 = arith.addf %53, %95 : vector<2x32xf32>
    %98 = arith.truncf %95 : vector<2x32xf32> to vector<2x32xbf16>
    %cst_33 = arith.constant dense<0.000000e+00> : vector<2x32xf32>
    %99 = tpu.matmul %98, %10, %cst_33 {dimension_numbers = #tpu.dot_dimension_numbers<[1], [0], [0], [1], [0, 0, 1, 1], [], []>} : vector<2x32xbf16>, vector<32x32xbf16>, vector<2x32xf32> -> vector<2x32xf32>
    %c1_34 = arith.constant 1 : index
    %c0_35 = arith.constant 0 : index
    %c0_36 = arith.constant 0 : index
    %100 = vector.load %arg19[%c1_34, %c0_35, %c0_36] : memref<8x2x32xf32, #tpu.memory_space<vmem>>, vector<1x2x32xf32>
    %101 = vector.shape_cast %100 : vector<1x2x32xf32> to vector<2x32xf32>
    %102 = vector.shape_cast %99 : vector<2x32xf32> to vector<1x2x32xf32>
    tpu.vector_store %arg19[%c1_34, %c0_35, %c0_36], %102 {strides = array<i32>} : memref<8x2x32xf32, #tpu.memory_space<vmem>>, vector<1x2x32xf32>,
    %c2 = arith.constant 2 : index
    %c0_37 = arith.constant 0 : index
    %c0_38 = arith.constant 0 : index
    %103 = vector.load %arg1[%c2, %c0_37, %c0_38] : memref<8x2x128xf32, #tpu.memory_space<vmem>>, vector<1x2x128xf32>
    %104 = vector.shape_cast %103 : vector<1x2x128xf32> to vector<2x128xf32>
    %105 = arith.truncf %96 : vector<2x32xf32> to vector<2x32xbf16>
    %cst_39 = arith.constant dense<0.000000e+00> : vector<2x128xf32>
    %106 = tpu.matmul %105, %9, %cst_39 {dimension_numbers = #tpu.dot_dimension_numbers<[1], [0], [0], [1], [0, 0, 1, 1], [], []>} : vector<2x32xbf16>, vector<32x128xbf16>, vector<2x128xf32> -> vector<2x128xf32>
    %107 = arith.addf %104, %106 : vector<2x128xf32>
    %108 = vector.extract_strided_slice %107 {offsets = [0, 0], sizes = [2, 32], strides = [1, 1]} : vector<2x128xf32> to vector<2x32xf32>
    %109 = arith.negf %108 : vector<2x32xf32>
    %110 = math.exp %109 : vector<2x32xf32>
    %cst_40 = arith.constant 1.000000e+00 : f32
    %111 = vector.broadcast %cst_40 : f32 to vector<2x32xf32>
    %112 = arith.addf %111, %110 : vector<2x32xf32>
    %113 = arith.divf %111, %112 : vector<2x32xf32>
    %114 = vector.extract_strided_slice %107 {offsets = [0, 32], sizes = [2, 32], strides = [1, 1]} : vector<2x128xf32> to vector<2x32xf32>
    %115 = arith.negf %114 : vector<2x32xf32>
    %116 = math.exp %115 : vector<2x32xf32>
    %cst_41 = arith.constant 1.000000e+00 : f32
    %117 = vector.broadcast %cst_41 : f32 to vector<2x32xf32>
    %118 = arith.addf %117, %116 : vector<2x32xf32>
    %119 = arith.divf %117, %118 : vector<2x32xf32>
    %120 = vector.extract_strided_slice %107 {offsets = [0, 64], sizes = [2, 32], strides = [1, 1]} : vector<2x128xf32> to vector<2x32xf32>
    %121 = math.tanh %120 : vector<2x32xf32>
    %122 = vector.extract_strided_slice %107 {offsets = [0, 96], sizes = [2, 32], strides = [1, 1]} : vector<2x128xf32> to vector<2x32xf32>
    %123 = arith.negf %122 : vector<2x32xf32>
    %124 = math.exp %123 : vector<2x32xf32>
    %cst_42 = arith.constant 1.000000e+00 : f32
    %125 = vector.broadcast %cst_42 : f32 to vector<2x32xf32>
    %126 = arith.addf %125, %124 : vector<2x32xf32>
    %127 = arith.divf %125, %126 : vector<2x32xf32>
    %128 = arith.mulf %119, %93 : vector<2x32xf32>
    %129 = arith.mulf %113, %121 : vector<2x32xf32>
    %130 = arith.addf %128, %129 : vector<2x32xf32>
    %131 = math.tanh %130 : vector<2x32xf32>
    %132 = arith.mulf %127, %131 : vector<2x32xf32>
    %c2_i32 = arith.constant 2 : i32
    %133 = vector.broadcast %c2_i32 : i32 to vector<2x1xi32>
    %134 = arith.cmpi sgt, %11, %133 : vector<2x1xi32>
    %135 = vector.shape_cast %134 : vector<2x1xi1> to vector<2x1xi1>
    %136 = vector.broadcast %135 : vector<2x1xi1> to vector<2x32xi1>
    %137 = arith.select %136, %130, %93 : vector<2x32xi1>, vector<2x32xf32>
    %cst_43 = arith.constant 0.000000e+00 : f32
    %138 = vector.broadcast %cst_43 : f32 to vector<2x32xf32>
    %139 = arith.select %136, %132, %138 : vector<2x32xi1>, vector<2x32xf32>
    %140 = arith.select %136, %132, %96 : vector<2x32xi1>, vector<2x32xf32>
    %141 = arith.addf %97, %139 : vector<2x32xf32>
    %142 = arith.truncf %139 : vector<2x32xf32> to vector<2x32xbf16>
    %cst_44 = arith.constant dense<0.000000e+00> : vector<2x32xf32>
    %143 = tpu.matmul %142, %10, %cst_44 {dimension_numbers = #tpu.dot_dimension_numbers<[1], [0], [0], [1], [0, 0, 1, 1], [], []>} : vector<2x32xbf16>, vector<32x32xbf16>, vector<2x32xf32> -> vector<2x32xf32>
    %c2_45 = arith.constant 2 : index
    %c0_46 = arith.constant 0 : index
    %c0_47 = arith.constant 0 : index
    %144 = vector.load %arg19[%c2_45, %c0_46, %c0_47] : memref<8x2x32xf32, #tpu.memory_space<vmem>>, vector<1x2x32xf32>
    %145 = vector.shape_cast %144 : vector<1x2x32xf32> to vector<2x32xf32>
    %146 = vector.shape_cast %143 : vector<2x32xf32> to vector<1x2x32xf32>
    tpu.vector_store %arg19[%c2_45, %c0_46, %c0_47], %146 {strides = array<i32>} : memref<8x2x32xf32, #tpu.memory_space<vmem>>, vector<1x2x32xf32>,
    %c3 = arith.constant 3 : index
    %c0_48 = arith.constant 0 : index
    %c0_49 = arith.constant 0 : index
    %147 = vector.load %arg1[%c3, %c0_48, %c0_49] : memref<8x2x128xf32, #tpu.memory_space<vmem>>, vector<1x2x128xf32>
    %148 = vector.shape_cast %147 : vector<1x2x128xf32> to vector<2x128xf32>
    %149 = arith.truncf %140 : vector<2x32xf32> to vector<2x32xbf16>
    %cst_50 = arith.constant dense<0.000000e+00> : vector<2x128xf32>
    %150 = tpu.matmul %149, %9, %cst_50 {dimension_numbers = #tpu.dot_dimension_numbers<[1], [0], [0], [1], [0, 0, 1, 1], [], []>} : vector<2x32xbf16>, vector<32x128xbf16>, vector<2x128xf32> -> vector<2x128xf32>
    %151 = arith.addf %148, %150 : vector<2x128xf32>
    %152 = vector.extract_strided_slice %151 {offsets = [0, 0], sizes = [2, 32], strides = [1, 1]} : vector<2x128xf32> to vector<2x32xf32>
    %153 = arith.negf %152 : vector<2x32xf32>
    %154 = math.exp %153 : vector<2x32xf32>
    %cst_51 = arith.constant 1.000000e+00 : f32
    %155 = vector.broadcast %cst_51 : f32 to vector<2x32xf32>
    %156 = arith.addf %155, %154 : vector<2x32xf32>
    %157 = arith.divf %155, %156 : vector<2x32xf32>
    %158 = vector.extract_strided_slice %151 {offsets = [0, 32], sizes = [2, 32], strides = [1, 1]} : vector<2x128xf32> to vector<2x32xf32>
    %159 = arith.negf %158 : vector<2x32xf32>
    %160 = math.exp %159 : vector<2x32xf32>
    %cst_52 = arith.constant 1.000000e+00 : f32
    %161 = vector.broadcast %cst_52 : f32 to vector<2x32xf32>
    %162 = arith.addf %161, %160 : vector<2x32xf32>
    %163 = arith.divf %161, %162 : vector<2x32xf32>
    %164 = vector.extract_strided_slice %151 {offsets = [0, 64], sizes = [2, 32], strides = [1, 1]} : vector<2x128xf32> to vector<2x32xf32>
    %165 = math.tanh %164 : vector<2x32xf32>
    %166 = vector.extract_strided_slice %151 {offsets = [0, 96], sizes = [2, 32], strides = [1, 1]} : vector<2x128xf32> to vector<2x32xf32>
    %167 = arith.negf %166 : vector<2x32xf32>
    %168 = math.exp %167 : vector<2x32xf32>
    %cst_53 = arith.constant 1.000000e+00 : f32
    %169 = vector.broadcast %cst_53 : f32 to vector<2x32xf32>
    %170 = arith.addf %169, %168 : vector<2x32xf32>
    %171 = arith.divf %169, %170 : vector<2x32xf32>
    %172 = arith.mulf %163, %137 : vector<2x32xf32>
    %173 = arith.mulf %157, %165 : vector<2x32xf32>
    %174 = arith.addf %172, %173 : vector<2x32xf32>
    %175 = math.tanh %174 : vector<2x32xf32>
    %176 = arith.mulf %171, %175 : vector<2x32xf32>
    %c3_i32 = arith.constant 3 : i32
    %177 = vector.broadcast %c3_i32 : i32 to vector<2x1xi32>
    %178 = arith.cmpi sgt, %11, %177 : vector<2x1xi32>
    %179 = vector.shape_cast %178 : vector<2x1xi1> to vector<2x1xi1>
    %180 = vector.broadcast %179 : vector<2x1xi1> to vector<2x32xi1>
    %181 = arith.select %180, %174, %137 : vector<2x32xi1>, vector<2x32xf32>
    %cst_54 = arith.constant 0.000000e+00 : f32
    %182 = vector.broadcast %cst_54 : f32 to vector<2x32xf32>
    %183 = arith.select %180, %176, %182 : vector<2x32xi1>, vector<2x32xf32>
    %184 = arith.select %180, %176, %140 : vector<2x32xi1>, vector<2x32xf32>
    %185 = arith.addf %141, %183 : vector<2x32xf32>
    %186 = arith.truncf %183 : vector<2x32xf32> to vector<2x32xbf16>
    %cst_55 = arith.constant dense<0.000000e+00> : vector<2x32xf32>
    %187 = tpu.matmul %186, %10, %cst_55 {dimension_numbers = #tpu.dot_dimension_numbers<[1], [0], [0], [1], [0, 0, 1, 1], [], []>} : vector<2x32xbf16>, vector<32x32xbf16>, vector<2x32xf32> -> vector<2x32xf32>
    %c3_56 = arith.constant 3 : index
    %c0_57 = arith.constant 0 : index
    %c0_58 = arith.constant 0 : index
    %188 = vector.load %arg19[%c3_56, %c0_57, %c0_58] : memref<8x2x32xf32, #tpu.memory_space<vmem>>, vector<1x2x32xf32>
    %189 = vector.shape_cast %188 : vector<1x2x32xf32> to vector<2x32xf32>
    %190 = vector.shape_cast %187 : vector<2x32xf32> to vector<1x2x32xf32>
    tpu.vector_store %arg19[%c3_56, %c0_57, %c0_58], %190 {strides = array<i32>} : memref<8x2x32xf32, #tpu.memory_space<vmem>>, vector<1x2x32xf32>,
    %c4 = arith.constant 4 : index
    %c0_59 = arith.constant 0 : index
    %c0_60 = arith.constant 0 : index
    %191 = vector.load %arg1[%c4, %c0_59, %c0_60] : memref<8x2x128xf32, #tpu.memory_space<vmem>>, vector<1x2x128xf32>
    %192 = vector.shape_cast %191 : vector<1x2x128xf32> to vector<2x128xf32>
    %193 = arith.truncf %184 : vector<2x32xf32> to vector<2x32xbf16>
    %cst_61 = arith.constant dense<0.000000e+00> : vector<2x128xf32>
    %194 = tpu.matmul %193, %9, %cst_61 {dimension_numbers = #tpu.dot_dimension_numbers<[1], [0], [0], [1], [0, 0, 1, 1], [], []>} : vector<2x32xbf16>, vector<32x128xbf16>, vector<2x128xf32> -> vector<2x128xf32>
    %195 = arith.addf %192, %194 : vector<2x128xf32>
    %196 = vector.extract_strided_slice %195 {offsets = [0, 0], sizes = [2, 32], strides = [1, 1]} : vector<2x128xf32> to vector<2x32xf32>
    %197 = arith.negf %196 : vector<2x32xf32>
    %198 = math.exp %197 : vector<2x32xf32>
    %cst_62 = arith.constant 1.000000e+00 : f32
    %199 = vector.broadcast %cst_62 : f32 to vector<2x32xf32>
    %200 = arith.addf %199, %198 : vector<2x32xf32>
    %201 = arith.divf %199, %200 : vector<2x32xf32>
    %202 = vector.extract_strided_slice %195 {offsets = [0, 32], sizes = [2, 32], strides = [1, 1]} : vector<2x128xf32> to vector<2x32xf32>
    %203 = arith.negf %202 : vector<2x32xf32>
    %204 = math.exp %203 : vector<2x32xf32>
    %cst_63 = arith.constant 1.000000e+00 : f32
    %205 = vector.broadcast %cst_63 : f32 to vector<2x32xf32>
    %206 = arith.addf %205, %204 : vector<2x32xf32>
    %207 = arith.divf %205, %206 : vector<2x32xf32>
    %208 = vector.extract_strided_slice %195 {offsets = [0, 64], sizes = [2, 32], strides = [1, 1]} : vector<2x128xf32> to vector<2x32xf32>
    %209 = math.tanh %208 : vector<2x32xf32>
    %210 = vector.extract_strided_slice %195 {offsets = [0, 96], sizes = [2, 32], strides = [1, 1]} : vector<2x128xf32> to vector<2x32xf32>
    %211 = arith.negf %210 : vector<2x32xf32>
    %212 = math.exp %211 : vector<2x32xf32>
    %cst_64 = arith.constant 1.000000e+00 : f32
    %213 = vector.broadcast %cst_64 : f32 to vector<2x32xf32>
    %214 = arith.addf %213, %212 : vector<2x32xf32>
    %215 = arith.divf %213, %214 : vector<2x32xf32>
    %216 = arith.mulf %207, %181 : vector<2x32xf32>
    %217 = arith.mulf %201, %209 : vector<2x32xf32>
    %218 = arith.addf %216, %217 : vector<2x32xf32>
    %219 = math.tanh %218 : vector<2x32xf32>
    %220 = arith.mulf %215, %219 : vector<2x32xf32>
    %c4_i32 = arith.constant 4 : i32
    %221 = vector.broadcast %c4_i32 : i32 to vector<2x1xi32>
    %222 = arith.cmpi sgt, %11, %221 : vector<2x1xi32>
    %223 = vector.shape_cast %222 : vector<2x1xi1> to vector<2x1xi1>
    %224 = vector.broadcast %223 : vector<2x1xi1> to vector<2x32xi1>
    %225 = arith.select %224, %218, %181 : vector<2x32xi1>, vector<2x32xf32>
    %cst_65 = arith.constant 0.000000e+00 : f32
    %226 = vector.broadcast %cst_65 : f32 to vector<2x32xf32>
    %227 = arith.select %224, %220, %226 : vector<2x32xi1>, vector<2x32xf32>
    %228 = arith.select %224, %220, %184 : vector<2x32xi1>, vector<2x32xf32>
    %229 = arith.addf %185, %227 : vector<2x32xf32>
    %230 = arith.truncf %227 : vector<2x32xf32> to vector<2x32xbf16>
    %cst_66 = arith.constant dense<0.000000e+00> : vector<2x32xf32>
    %231 = tpu.matmul %230, %10, %cst_66 {dimension_numbers = #tpu.dot_dimension_numbers<[1], [0], [0], [1], [0, 0, 1, 1], [], []>} : vector<2x32xbf16>, vector<32x32xbf16>, vector<2x32xf32> -> vector<2x32xf32>
    %c4_67 = arith.constant 4 : index
    %c0_68 = arith.constant 0 : index
    %c0_69 = arith.constant 0 : index
    %232 = vector.load %arg19[%c4_67, %c0_68, %c0_69] : memref<8x2x32xf32, #tpu.memory_space<vmem>>, vector<1x2x32xf32>
    %233 = vector.shape_cast %232 : vector<1x2x32xf32> to vector<2x32xf32>
    %234 = vector.shape_cast %231 : vector<2x32xf32> to vector<1x2x32xf32>
    tpu.vector_store %arg19[%c4_67, %c0_68, %c0_69], %234 {strides = array<i32>} : memref<8x2x32xf32, #tpu.memory_space<vmem>>, vector<1x2x32xf32>,
    %c5 = arith.constant 5 : index
    %c0_70 = arith.constant 0 : index
    %c0_71 = arith.constant 0 : index
    %235 = vector.load %arg1[%c5, %c0_70, %c0_71] : memref<8x2x128xf32, #tpu.memory_space<vmem>>, vector<1x2x128xf32>
    %236 = vector.shape_cast %235 : vector<1x2x128xf32> to vector<2x128xf32>
    %237 = arith.truncf %228 : vector<2x32xf32> to vector<2x32xbf16>
    %cst_72 = arith.constant dense<0.000000e+00> : vector<2x128xf32>
    %238 = tpu.matmul %237, %9, %cst_72 {dimension_numbers = #tpu.dot_dimension_numbers<[1], [0], [0], [1], [0, 0, 1, 1], [], []>} : vector<2x32xbf16>, vector<32x128xbf16>, vector<2x128xf32> -> vector<2x128xf32>
    %239 = arith.addf %236, %238 : vector<2x128xf32>
    %240 = vector.extract_strided_slice %239 {offsets = [0, 0], sizes = [2, 32], strides = [1, 1]} : vector<2x128xf32> to vector<2x32xf32>
    %241 = arith.negf %240 : vector<2x32xf32>
    %242 = math.exp %241 : vector<2x32xf32>
    %cst_73 = arith.constant 1.000000e+00 : f32
    %243 = vector.broadcast %cst_73 : f32 to vector<2x32xf32>
    %244 = arith.addf %243, %242 : vector<2x32xf32>
    %245 = arith.divf %243, %244 : vector<2x32xf32>
    %246 = vector.extract_strided_slice %239 {offsets = [0, 32], sizes = [2, 32], strides = [1, 1]} : vector<2x128xf32> to vector<2x32xf32>
    %247 = arith.negf %246 : vector<2x32xf32>
    %248 = math.exp %247 : vector<2x32xf32>
    %cst_74 = arith.constant 1.000000e+00 : f32
    %249 = vector.broadcast %cst_74 : f32 to vector<2x32xf32>
    %250 = arith.addf %249, %248 : vector<2x32xf32>
    %251 = arith.divf %249, %250 : vector<2x32xf32>
    %252 = vector.extract_strided_slice %239 {offsets = [0, 64], sizes = [2, 32], strides = [1, 1]} : vector<2x128xf32> to vector<2x32xf32>
    %253 = math.tanh %252 : vector<2x32xf32>
    %254 = vector.extract_strided_slice %239 {offsets = [0, 96], sizes = [2, 32], strides = [1, 1]} : vector<2x128xf32> to vector<2x32xf32>
    %255 = arith.negf %254 : vector<2x32xf32>
    %256 = math.exp %255 : vector<2x32xf32>
    %cst_75 = arith.constant 1.000000e+00 : f32
    %257 = vector.broadcast %cst_75 : f32 to vector<2x32xf32>
    %258 = arith.addf %257, %256 : vector<2x32xf32>
    %259 = arith.divf %257, %258 : vector<2x32xf32>
    %260 = arith.mulf %251, %225 : vector<2x32xf32>
    %261 = arith.mulf %245, %253 : vector<2x32xf32>
    %262 = arith.addf %260, %261 : vector<2x32xf32>
    %263 = math.tanh %262 : vector<2x32xf32>
    %264 = arith.mulf %259, %263 : vector<2x32xf32>
    %c5_i32 = arith.constant 5 : i32
    %265 = vector.broadcast %c5_i32 : i32 to vector<2x1xi32>
    %266 = arith.cmpi sgt, %11, %265 : vector<2x1xi32>
    %267 = vector.shape_cast %266 : vector<2x1xi1> to vector<2x1xi1>
    %268 = vector.broadcast %267 : vector<2x1xi1> to vector<2x32xi1>
    %269 = arith.select %268, %262, %225 : vector<2x32xi1>, vector<2x32xf32>
    %cst_76 = arith.constant 0.000000e+00 : f32
    %270 = vector.broadcast %cst_76 : f32 to vector<2x32xf32>
    %271 = arith.select %268, %264, %270 : vector<2x32xi1>, vector<2x32xf32>
    %272 = arith.select %268, %264, %228 : vector<2x32xi1>, vector<2x32xf32>
    %273 = arith.addf %229, %271 : vector<2x32xf32>
    %274 = arith.truncf %271 : vector<2x32xf32> to vector<2x32xbf16>
    %cst_77 = arith.constant dense<0.000000e+00> : vector<2x32xf32>
    %275 = tpu.matmul %274, %10, %cst_77 {dimension_numbers = #tpu.dot_dimension_numbers<[1], [0], [0], [1], [0, 0, 1, 1], [], []>} : vector<2x32xbf16>, vector<32x32xbf16>, vector<2x32xf32> -> vector<2x32xf32>
    %c5_78 = arith.constant 5 : index
    %c0_79 = arith.constant 0 : index
    %c0_80 = arith.constant 0 : index
    %276 = vector.load %arg19[%c5_78, %c0_79, %c0_80] : memref<8x2x32xf32, #tpu.memory_space<vmem>>, vector<1x2x32xf32>
    %277 = vector.shape_cast %276 : vector<1x2x32xf32> to vector<2x32xf32>
    %278 = vector.shape_cast %275 : vector<2x32xf32> to vector<1x2x32xf32>
    tpu.vector_store %arg19[%c5_78, %c0_79, %c0_80], %278 {strides = array<i32>} : memref<8x2x32xf32, #tpu.memory_space<vmem>>, vector<1x2x32xf32>,
    %c6 = arith.constant 6 : index
    %c0_81 = arith.constant 0 : index
    %c0_82 = arith.constant 0 : index
    %279 = vector.load %arg1[%c6, %c0_81, %c0_82] : memref<8x2x128xf32, #tpu.memory_space<vmem>>, vector<1x2x128xf32>
    %280 = vector.shape_cast %279 : vector<1x2x128xf32> to vector<2x128xf32>
    %281 = arith.truncf %272 : vector<2x32xf32> to vector<2x32xbf16>
    %cst_83 = arith.constant dense<0.000000e+00> : vector<2x128xf32>
    %282 = tpu.matmul %281, %9, %cst_83 {dimension_numbers = #tpu.dot_dimension_numbers<[1], [0], [0], [1], [0, 0, 1, 1], [], []>} : vector<2x32xbf16>, vector<32x128xbf16>, vector<2x128xf32> -> vector<2x128xf32>
    %283 = arith.addf %280, %282 : vector<2x128xf32>
    %284 = vector.extract_strided_slice %283 {offsets = [0, 0], sizes = [2, 32], strides = [1, 1]} : vector<2x128xf32> to vector<2x32xf32>
    %285 = arith.negf %284 : vector<2x32xf32>
    %286 = math.exp %285 : vector<2x32xf32>
    %cst_84 = arith.constant 1.000000e+00 : f32
    %287 = vector.broadcast %cst_84 : f32 to vector<2x32xf32>
    %288 = arith.addf %287, %286 : vector<2x32xf32>
    %289 = arith.divf %287, %288 : vector<2x32xf32>
    %290 = vector.extract_strided_slice %283 {offsets = [0, 32], sizes = [2, 32], strides = [1, 1]} : vector<2x128xf32> to vector<2x32xf32>
    %291 = arith.negf %290 : vector<2x32xf32>
    %292 = math.exp %291 : vector<2x32xf32>
    %cst_85 = arith.constant 1.000000e+00 : f32
    %293 = vector.broadcast %cst_85 : f32 to vector<2x32xf32>
    %294 = arith.addf %293, %292 : vector<2x32xf32>
    %295 = arith.divf %293, %294 : vector<2x32xf32>
    %296 = vector.extract_strided_slice %283 {offsets = [0, 64], sizes = [2, 32], strides = [1, 1]} : vector<2x128xf32> to vector<2x32xf32>
    %297 = math.tanh %296 : vector<2x32xf32>
    %298 = vector.extract_strided_slice %283 {offsets = [0, 96], sizes = [2, 32], strides = [1, 1]} : vector<2x128xf32> to vector<2x32xf32>
    %299 = arith.negf %298 : vector<2x32xf32>
    %300 = math.exp %299 : vector<2x32xf32>
    %cst_86 = arith.constant 1.000000e+00 : f32
    %301 = vector.broadcast %cst_86 : f32 to vector<2x32xf32>
    %302 = arith.addf %301, %300 : vector<2x32xf32>
    %303 = arith.divf %301, %302 : vector<2x32xf32>
    %304 = arith.mulf %295, %269 : vector<2x32xf32>
    %305 = arith.mulf %289, %297 : vector<2x32xf32>
    %306 = arith.addf %304, %305 : vector<2x32xf32>
    %307 = math.tanh %306 : vector<2x32xf32>
    %308 = arith.mulf %303, %307 : vector<2x32xf32>
    %c6_i32 = arith.constant 6 : i32
    %309 = vector.broadcast %c6_i32 : i32 to vector<2x1xi32>
    %310 = arith.cmpi sgt, %11, %309 : vector<2x1xi32>
    %311 = vector.shape_cast %310 : vector<2x1xi1> to vector<2x1xi1>
    %312 = vector.broadcast %311 : vector<2x1xi1> to vector<2x32xi1>
    %313 = arith.select %312, %306, %269 : vector<2x32xi1>, vector<2x32xf32>
    %cst_87 = arith.constant 0.000000e+00 : f32
    %314 = vector.broadcast %cst_87 : f32 to vector<2x32xf32>
    %315 = arith.select %312, %308, %314 : vector<2x32xi1>, vector<2x32xf32>
    %316 = arith.select %312, %308, %272 : vector<2x32xi1>, vector<2x32xf32>
    %317 = arith.addf %273, %315 : vector<2x32xf32>
    %318 = arith.truncf %315 : vector<2x32xf32> to vector<2x32xbf16>
    %cst_88 = arith.constant dense<0.000000e+00> : vector<2x32xf32>
    %319 = tpu.matmul %318, %10, %cst_88 {dimension_numbers = #tpu.dot_dimension_numbers<[1], [0], [0], [1], [0, 0, 1, 1], [], []>} : vector<2x32xbf16>, vector<32x32xbf16>, vector<2x32xf32> -> vector<2x32xf32>
    %c6_89 = arith.constant 6 : index
    %c0_90 = arith.constant 0 : index
    %c0_91 = arith.constant 0 : index
    %320 = vector.load %arg19[%c6_89, %c0_90, %c0_91] : memref<8x2x32xf32, #tpu.memory_space<vmem>>, vector<1x2x32xf32>
    %321 = vector.shape_cast %320 : vector<1x2x32xf32> to vector<2x32xf32>
    %322 = vector.shape_cast %319 : vector<2x32xf32> to vector<1x2x32xf32>
    tpu.vector_store %arg19[%c6_89, %c0_90, %c0_91], %322 {strides = array<i32>} : memref<8x2x32xf32, #tpu.memory_space<vmem>>, vector<1x2x32xf32>,
    %c7 = arith.constant 7 : index
    %c0_92 = arith.constant 0 : index
    %c0_93 = arith.constant 0 : index
    %323 = vector.load %arg1[%c7, %c0_92, %c0_93] : memref<8x2x128xf32, #tpu.memory_space<vmem>>, vector<1x2x128xf32>
    %324 = vector.shape_cast %323 : vector<1x2x128xf32> to vector<2x128xf32>
    %325 = arith.truncf %316 : vector<2x32xf32> to vector<2x32xbf16>
    %cst_94 = arith.constant dense<0.000000e+00> : vector<2x128xf32>
    %326 = tpu.matmul %325, %9, %cst_94 {dimension_numbers = #tpu.dot_dimension_numbers<[1], [0], [0], [1], [0, 0, 1, 1], [], []>} : vector<2x32xbf16>, vector<32x128xbf16>, vector<2x128xf32> -> vector<2x128xf32>
    %327 = arith.addf %324, %326 : vector<2x128xf32>
    %328 = vector.extract_strided_slice %327 {offsets = [0, 0], sizes = [2, 32], strides = [1, 1]} : vector<2x128xf32> to vector<2x32xf32>
    %329 = arith.negf %328 : vector<2x32xf32>
    %330 = math.exp %329 : vector<2x32xf32>
    %cst_95 = arith.constant 1.000000e+00 : f32
    %331 = vector.broadcast %cst_95 : f32 to vector<2x32xf32>
    %332 = arith.addf %331, %330 : vector<2x32xf32>
    %333 = arith.divf %331, %332 : vector<2x32xf32>
    %334 = vector.extract_strided_slice %327 {offsets = [0, 32], sizes = [2, 32], strides = [1, 1]} : vector<2x128xf32> to vector<2x32xf32>
    %335 = arith.negf %334 : vector<2x32xf32>
    %336 = math.exp %335 : vector<2x32xf32>
    %cst_96 = arith.constant 1.000000e+00 : f32
    %337 = vector.broadcast %cst_96 : f32 to vector<2x32xf32>
    %338 = arith.addf %337, %336 : vector<2x32xf32>
    %339 = arith.divf %337, %338 : vector<2x32xf32>
    %340 = vector.extract_strided_slice %327 {offsets = [0, 64], sizes = [2, 32], strides = [1, 1]} : vector<2x128xf32> to vector<2x32xf32>
    %341 = math.tanh %340 : vector<2x32xf32>
    %342 = vector.extract_strided_slice %327 {offsets = [0, 96], sizes = [2, 32], strides = [1, 1]} : vector<2x128xf32> to vector<2x32xf32>
    %343 = arith.negf %342 : vector<2x32xf32>
    %344 = math.exp %343 : vector<2x32xf32>
    %cst_97 = arith.constant 1.000000e+00 : f32
    %345 = vector.broadcast %cst_97 : f32 to vector<2x32xf32>
    %346 = arith.addf %345, %344 : vector<2x32xf32>
    %347 = arith.divf %345, %346 : vector<2x32xf32>
    %348 = arith.mulf %339, %313 : vector<2x32xf32>
    %349 = arith.mulf %333, %341 : vector<2x32xf32>
    %350 = arith.addf %348, %349 : vector<2x32xf32>
    %351 = math.tanh %350 : vector<2x32xf32>
    %352 = arith.mulf %347, %351 : vector<2x32xf32>
    %c7_i32 = arith.constant 7 : i32
    %353 = vector.broadcast %c7_i32 : i32 to vector<2x1xi32>
    %354 = arith.cmpi sgt, %11, %353 : vector<2x1xi32>
    %355 = vector.shape_cast %354 : vector<2x1xi1> to vector<2x1xi1>
    %356 = vector.broadcast %355 : vector<2x1xi1> to vector<2x32xi1>
    %cst_98 = arith.constant 0.000000e+00 : f32
    %357 = vector.broadcast %cst_98 : f32 to vector<2x32xf32>
    %358 = arith.select %356, %352, %357 : vector<2x32xi1>, vector<2x32xf32>
    %359 = arith.addf %317, %358 : vector<2x32xf32>
    %360 = arith.truncf %358 : vector<2x32xf32> to vector<2x32xbf16>
    %cst_99 = arith.constant dense<0.000000e+00> : vector<2x32xf32>
    %361 = tpu.matmul %360, %10, %cst_99 {dimension_numbers = #tpu.dot_dimension_numbers<[1], [0], [0], [1], [0, 0, 1, 1], [], []>} : vector<2x32xbf16>, vector<32x32xbf16>, vector<2x32xf32> -> vector<2x32xf32>
    %c7_100 = arith.constant 7 : index
    %c0_101 = arith.constant 0 : index
    %c0_102 = arith.constant 0 : index
    %362 = vector.load %arg19[%c7_100, %c0_101, %c0_102] : memref<8x2x32xf32, #tpu.memory_space<vmem>>, vector<1x2x32xf32>
    %363 = vector.shape_cast %362 : vector<1x2x32xf32> to vector<2x32xf32>
    %364 = vector.shape_cast %361 : vector<2x32xf32> to vector<1x2x32xf32>
    tpu.vector_store %arg19[%c7_100, %c0_101, %c0_102], %364 {strides = array<i32>} : memref<8x2x32xf32, #tpu.memory_space<vmem>>, vector<1x2x32xf32>,
    %c0_103 = arith.constant 0 : index
    %c0_104 = arith.constant 0 : index
    %365 = vector.load %arg3[%c0_103, %c0_104] : memref<2x1xf32, #tpu.memory_space<vmem>>, vector<2x1xf32>
    %366 = vector.broadcast %365 : vector<2x1xf32> to vector<2x32xf32>
    %367 = arith.mulf %359, %366 : vector<2x32xf32>
    %368 = arith.truncf %367 : vector<2x32xf32> to vector<2x32xbf16>
    %c0_105 = arith.constant 0 : index
    %c0_106 = arith.constant 0 : index
    %369 = vector.load %arg7[%c0_105, %c0_106] : memref<32x32xbf16, #tpu.memory_space<vmem>>, vector<32x32xbf16>
    %cst_107 = arith.constant dense<0.000000e+00> : vector<2x32xf32>
    %370 = tpu.matmul %368, %369, %cst_107 {dimension_numbers = #tpu.dot_dimension_numbers<[1], [0], [0], [1], [0, 0, 1, 1], [], []>} : vector<2x32xbf16>, vector<32x32xbf16>, vector<2x32xf32> -> vector<2x32xf32>
    %c0_108 = arith.constant 0 : index
    %c0_109 = arith.constant 0 : index
    %371 = vector.load %arg8[%c0_108, %c0_109] : memref<1x32xf32, #tpu.memory_space<vmem>>, vector<1x32xf32>
    %372 = vector.broadcast %371 : vector<1x32xf32> to vector<2x32xf32>
    %373 = arith.addf %370, %372 : vector<2x32xf32>
    %374 = arith.truncf %373 : vector<2x32xf32> to vector<2x32xbf16>
    %c0_110 = arith.constant 0 : index
    %c0_111 = arith.constant 0 : index
    %375 = vector.load %arg9[%c0_110, %c0_111] : memref<32x32xbf16, #tpu.memory_space<vmem>>, vector<32x32xbf16>
    %cst_112 = arith.constant dense<0.000000e+00> : vector<2x32xf32>
    %376 = tpu.matmul %374, %375, %cst_112 {dimension_numbers = #tpu.dot_dimension_numbers<[1], [0], [0], [1], [0, 0, 1, 1], [], []>} : vector<2x32xbf16>, vector<32x32xbf16>, vector<2x32xf32> -> vector<2x32xf32>
    %cst_113 = arith.constant 0xFF800000 : f32
    %377 = vector.broadcast %cst_113 : f32 to vector<2x1xf32>
    %cst_114 = arith.constant 0.000000e+00 : f32
    %378 = vector.broadcast %cst_114 : f32 to vector<2x1xf32>
    %cst_115 = arith.constant 0.000000e+00 : f32
    %379 = vector.broadcast %cst_115 : f32 to vector<2x32xf32>
    %c0_i32_116 = arith.constant 0 : i32
    %380 = arith.index_cast %c0_i32_116 : i32 to index
    %c0_117 = arith.constant 0 : index
    %c0_118 = arith.constant 0 : index
    %381 = vector.load %arg19[%380, %c0_117, %c0_118] : memref<8x2x32xf32, #tpu.memory_space<vmem>>, vector<1x2x32xf32>
    %382 = vector.shape_cast %381 : vector<1x2x32xf32> to vector<2x32xf32>
    %383 = arith.mulf %376, %382 : vector<2x32xf32>
    %cst_119 = arith.constant dense<0.000000e+00> : vector<2xf32>
    %384 = vector.multi_reduction <add>, %383, %cst_119 [1] : vector<2x32xf32> to vector<2xf32>
    %385 = vector.shape_cast %384 : vector<2xf32> to vector<2x1xf32>
    %386 = vector.broadcast %c0_i32_116 : i32 to vector<2x1xi32>
    %387 = arith.cmpi sgt, %11, %386 : vector<2x1xi32>
    %cst_120 = arith.constant -1.000000e+30 : f32
    %388 = vector.broadcast %cst_120 : f32 to vector<2x1xf32>
    %389 = arith.select %387, %385, %388 : vector<2x1xi1>, vector<2x1xf32>
    %390 = arith.maximumf %377, %389 : vector<2x1xf32>
    %391 = arith.subf %377, %390 : vector<2x1xf32>
    %392 = math.exp %391 : vector<2x1xf32>
    %393 = arith.subf %389, %390 : vector<2x1xf32>
    %394 = math.exp %393 : vector<2x1xf32>
    %395 = arith.mulf %392, %378 : vector<2x1xf32>
    %396 = arith.addf %395, %394 : vector<2x1xf32>
    %397 = vector.broadcast %392 : vector<2x1xf32> to vector<2x32xf32>
    %398 = arith.mulf %397, %379 : vector<2x32xf32>
    %399 = vector.broadcast %394 : vector<2x1xf32> to vector<2x32xf32>
    %400 = arith.mulf %399, %382 : vector<2x32xf32>
    %401 = arith.addf %398, %400 : vector<2x32xf32>
    %c1_i32_121 = arith.constant 1 : i32
    %402 = arith.index_cast %c1_i32_121 : i32 to index
    %c0_122 = arith.constant 0 : index
    %c0_123 = arith.constant 0 : index
    %403 = vector.load %arg19[%402, %c0_122, %c0_123] : memref<8x2x32xf32, #tpu.memory_space<vmem>>, vector<1x2x32xf32>
    %404 = vector.shape_cast %403 : vector<1x2x32xf32> to vector<2x32xf32>
    %405 = arith.mulf %376, %404 : vector<2x32xf32>
    %cst_124 = arith.constant dense<0.000000e+00> : vector<2xf32>
    %406 = vector.multi_reduction <add>, %405, %cst_124 [1] : vector<2x32xf32> to vector<2xf32>
    %407 = vector.shape_cast %406 : vector<2xf32> to vector<2x1xf32>
    %408 = vector.broadcast %c1_i32_121 : i32 to vector<2x1xi32>
    %409 = arith.cmpi sgt, %11, %408 : vector<2x1xi32>
    %cst_125 = arith.constant -1.000000e+30 : f32
    %410 = vector.broadcast %cst_125 : f32 to vector<2x1xf32>
    %411 = arith.select %409, %407, %410 : vector<2x1xi1>, vector<2x1xf32>
    %412 = arith.maximumf %390, %411 : vector<2x1xf32>
    %413 = arith.subf %390, %412 : vector<2x1xf32>
    %414 = math.exp %413 : vector<2x1xf32>
    %415 = arith.subf %411, %412 : vector<2x1xf32>
    %416 = math.exp %415 : vector<2x1xf32>
    %417 = arith.mulf %414, %396 : vector<2x1xf32>
    %418 = arith.addf %417, %416 : vector<2x1xf32>
    %419 = vector.broadcast %414 : vector<2x1xf32> to vector<2x32xf32>
    %420 = arith.mulf %419, %401 : vector<2x32xf32>
    %421 = vector.broadcast %416 : vector<2x1xf32> to vector<2x32xf32>
    %422 = arith.mulf %421, %404 : vector<2x32xf32>
    %423 = arith.addf %420, %422 : vector<2x32xf32>
    %c2_i32_126 = arith.constant 2 : i32
    %424 = arith.index_cast %c2_i32_126 : i32 to index
    %c0_127 = arith.constant 0 : index
    %c0_128 = arith.constant 0 : index
    %425 = vector.load %arg19[%424, %c0_127, %c0_128] : memref<8x2x32xf32, #tpu.memory_space<vmem>>, vector<1x2x32xf32>
    %426 = vector.shape_cast %425 : vector<1x2x32xf32> to vector<2x32xf32>
    %427 = arith.mulf %376, %426 : vector<2x32xf32>
    %cst_129 = arith.constant dense<0.000000e+00> : vector<2xf32>
    %428 = vector.multi_reduction <add>, %427, %cst_129 [1] : vector<2x32xf32> to vector<2xf32>
    %429 = vector.shape_cast %428 : vector<2xf32> to vector<2x1xf32>
    %430 = vector.broadcast %c2_i32_126 : i32 to vector<2x1xi32>
    %431 = arith.cmpi sgt, %11, %430 : vector<2x1xi32>
    %cst_130 = arith.constant -1.000000e+30 : f32
    %432 = vector.broadcast %cst_130 : f32 to vector<2x1xf32>
    %433 = arith.select %431, %429, %432 : vector<2x1xi1>, vector<2x1xf32>
    %434 = arith.maximumf %412, %433 : vector<2x1xf32>
    %435 = arith.subf %412, %434 : vector<2x1xf32>
    %436 = math.exp %435 : vector<2x1xf32>
    %437 = arith.subf %433, %434 : vector<2x1xf32>
    %438 = math.exp %437 : vector<2x1xf32>
    %439 = arith.mulf %436, %418 : vector<2x1xf32>
    %440 = arith.addf %439, %438 : vector<2x1xf32>
    %441 = vector.broadcast %436 : vector<2x1xf32> to vector<2x32xf32>
    %442 = arith.mulf %441, %423 : vector<2x32xf32>
    %443 = vector.broadcast %438 : vector<2x1xf32> to vector<2x32xf32>
    %444 = arith.mulf %443, %426 : vector<2x32xf32>
    %445 = arith.addf %442, %444 : vector<2x32xf32>
    %c3_i32_131 = arith.constant 3 : i32
    %446 = arith.index_cast %c3_i32_131 : i32 to index
    %c0_132 = arith.constant 0 : index
    %c0_133 = arith.constant 0 : index
    %447 = vector.load %arg19[%446, %c0_132, %c0_133] : memref<8x2x32xf32, #tpu.memory_space<vmem>>, vector<1x2x32xf32>
    %448 = vector.shape_cast %447 : vector<1x2x32xf32> to vector<2x32xf32>
    %449 = arith.mulf %376, %448 : vector<2x32xf32>
    %cst_134 = arith.constant dense<0.000000e+00> : vector<2xf32>
    %450 = vector.multi_reduction <add>, %449, %cst_134 [1] : vector<2x32xf32> to vector<2xf32>
    %451 = vector.shape_cast %450 : vector<2xf32> to vector<2x1xf32>
    %452 = vector.broadcast %c3_i32_131 : i32 to vector<2x1xi32>
    %453 = arith.cmpi sgt, %11, %452 : vector<2x1xi32>
    %cst_135 = arith.constant -1.000000e+30 : f32
    %454 = vector.broadcast %cst_135 : f32 to vector<2x1xf32>
    %455 = arith.select %453, %451, %454 : vector<2x1xi1>, vector<2x1xf32>
    %456 = arith.maximumf %434, %455 : vector<2x1xf32>
    %457 = arith.subf %434, %456 : vector<2x1xf32>
    %458 = math.exp %457 : vector<2x1xf32>
    %459 = arith.subf %455, %456 : vector<2x1xf32>
    %460 = math.exp %459 : vector<2x1xf32>
    %461 = arith.mulf %458, %440 : vector<2x1xf32>
    %462 = arith.addf %461, %460 : vector<2x1xf32>
    %463 = vector.broadcast %458 : vector<2x1xf32> to vector<2x32xf32>
    %464 = arith.mulf %463, %445 : vector<2x32xf32>
    %465 = vector.broadcast %460 : vector<2x1xf32> to vector<2x32xf32>
    %466 = arith.mulf %465, %448 : vector<2x32xf32>
    %467 = arith.addf %464, %466 : vector<2x32xf32>
    %c4_i32_136 = arith.constant 4 : i32
    %468 = arith.index_cast %c4_i32_136 : i32 to index
    %c0_137 = arith.constant 0 : index
    %c0_138 = arith.constant 0 : index
    %469 = vector.load %arg19[%468, %c0_137, %c0_138] : memref<8x2x32xf32, #tpu.memory_space<vmem>>, vector<1x2x32xf32>
    %470 = vector.shape_cast %469 : vector<1x2x32xf32> to vector<2x32xf32>
    %471 = arith.mulf %376, %470 : vector<2x32xf32>
    %cst_139 = arith.constant dense<0.000000e+00> : vector<2xf32>
    %472 = vector.multi_reduction <add>, %471, %cst_139 [1] : vector<2x32xf32> to vector<2xf32>
    %473 = vector.shape_cast %472 : vector<2xf32> to vector<2x1xf32>
    %474 = vector.broadcast %c4_i32_136 : i32 to vector<2x1xi32>
    %475 = arith.cmpi sgt, %11, %474 : vector<2x1xi32>
    %cst_140 = arith.constant -1.000000e+30 : f32
    %476 = vector.broadcast %cst_140 : f32 to vector<2x1xf32>
    %477 = arith.select %475, %473, %476 : vector<2x1xi1>, vector<2x1xf32>
    %478 = arith.maximumf %456, %477 : vector<2x1xf32>
    %479 = arith.subf %456, %478 : vector<2x1xf32>
    %480 = math.exp %479 : vector<2x1xf32>
    %481 = arith.subf %477, %478 : vector<2x1xf32>
    %482 = math.exp %481 : vector<2x1xf32>
    %483 = arith.mulf %480, %462 : vector<2x1xf32>
    %484 = arith.addf %483, %482 : vector<2x1xf32>
    %485 = vector.broadcast %480 : vector<2x1xf32> to vector<2x32xf32>
    %486 = arith.mulf %485, %467 : vector<2x32xf32>
    %487 = vector.broadcast %482 : vector<2x1xf32> to vector<2x32xf32>
    %488 = arith.mulf %487, %470 : vector<2x32xf32>
    %489 = arith.addf %486, %488 : vector<2x32xf32>
    %c5_i32_141 = arith.constant 5 : i32
    %490 = arith.index_cast %c5_i32_141 : i32 to index
    %c0_142 = arith.constant 0 : index
    %c0_143 = arith.constant 0 : index
    %491 = vector.load %arg19[%490, %c0_142, %c0_143] : memref<8x2x32xf32, #tpu.memory_space<vmem>>, vector<1x2x32xf32>
    %492 = vector.shape_cast %491 : vector<1x2x32xf32> to vector<2x32xf32>
    %493 = arith.mulf %376, %492 : vector<2x32xf32>
    %cst_144 = arith.constant dense<0.000000e+00> : vector<2xf32>
    %494 = vector.multi_reduction <add>, %493, %cst_144 [1] : vector<2x32xf32> to vector<2xf32>
    %495 = vector.shape_cast %494 : vector<2xf32> to vector<2x1xf32>
    %496 = vector.broadcast %c5_i32_141 : i32 to vector<2x1xi32>
    %497 = arith.cmpi sgt, %11, %496 : vector<2x1xi32>
    %cst_145 = arith.constant -1.000000e+30 : f32
    %498 = vector.broadcast %cst_145 : f32 to vector<2x1xf32>
    %499 = arith.select %497, %495, %498 : vector<2x1xi1>, vector<2x1xf32>
    %500 = arith.maximumf %478, %499 : vector<2x1xf32>
    %501 = arith.subf %478, %500 : vector<2x1xf32>
    %502 = math.exp %501 : vector<2x1xf32>
    %503 = arith.subf %499, %500 : vector<2x1xf32>
    %504 = math.exp %503 : vector<2x1xf32>
    %505 = arith.mulf %502, %484 : vector<2x1xf32>
    %506 = arith.addf %505, %504 : vector<2x1xf32>
    %507 = vector.broadcast %502 : vector<2x1xf32> to vector<2x32xf32>
    %508 = arith.mulf %507, %489 : vector<2x32xf32>
    %509 = vector.broadcast %504 : vector<2x1xf32> to vector<2x32xf32>
    %510 = arith.mulf %509, %492 : vector<2x32xf32>
    %511 = arith.addf %508, %510 : vector<2x32xf32>
    %c6_i32_146 = arith.constant 6 : i32
    %512 = arith.index_cast %c6_i32_146 : i32 to index
    %c0_147 = arith.constant 0 : index
    %c0_148 = arith.constant 0 : index
    %513 = vector.load %arg19[%512, %c0_147, %c0_148] : memref<8x2x32xf32, #tpu.memory_space<vmem>>, vector<1x2x32xf32>
    %514 = vector.shape_cast %513 : vector<1x2x32xf32> to vector<2x32xf32>
    %515 = arith.mulf %376, %514 : vector<2x32xf32>
    %cst_149 = arith.constant dense<0.000000e+00> : vector<2xf32>
    %516 = vector.multi_reduction <add>, %515, %cst_149 [1] : vector<2x32xf32> to vector<2xf32>
    %517 = vector.shape_cast %516 : vector<2xf32> to vector<2x1xf32>
    %518 = vector.broadcast %c6_i32_146 : i32 to vector<2x1xi32>
    %519 = arith.cmpi sgt, %11, %518 : vector<2x1xi32>
    %cst_150 = arith.constant -1.000000e+30 : f32
    %520 = vector.broadcast %cst_150 : f32 to vector<2x1xf32>
    %521 = arith.select %519, %517, %520 : vector<2x1xi1>, vector<2x1xf32>
    %522 = arith.maximumf %500, %521 : vector<2x1xf32>
    %523 = arith.subf %500, %522 : vector<2x1xf32>
    %524 = math.exp %523 : vector<2x1xf32>
    %525 = arith.subf %521, %522 : vector<2x1xf32>
    %526 = math.exp %525 : vector<2x1xf32>
    %527 = arith.mulf %524, %506 : vector<2x1xf32>
    %528 = arith.addf %527, %526 : vector<2x1xf32>
    %529 = vector.broadcast %524 : vector<2x1xf32> to vector<2x32xf32>
    %530 = arith.mulf %529, %511 : vector<2x32xf32>
    %531 = vector.broadcast %526 : vector<2x1xf32> to vector<2x32xf32>
    %532 = arith.mulf %531, %514 : vector<2x32xf32>
    %533 = arith.addf %530, %532 : vector<2x32xf32>
    %c7_i32_151 = arith.constant 7 : i32
    %534 = arith.index_cast %c7_i32_151 : i32 to index
    %c0_152 = arith.constant 0 : index
    %c0_153 = arith.constant 0 : index
    %535 = vector.load %arg19[%534, %c0_152, %c0_153] : memref<8x2x32xf32, #tpu.memory_space<vmem>>, vector<1x2x32xf32>
    %536 = vector.shape_cast %535 : vector<1x2x32xf32> to vector<2x32xf32>
    %537 = arith.mulf %376, %536 : vector<2x32xf32>
    %cst_154 = arith.constant dense<0.000000e+00> : vector<2xf32>
    %538 = vector.multi_reduction <add>, %537, %cst_154 [1] : vector<2x32xf32> to vector<2xf32>
    %539 = vector.shape_cast %538 : vector<2xf32> to vector<2x1xf32>
    %540 = vector.broadcast %c7_i32_151 : i32 to vector<2x1xi32>
    %541 = arith.cmpi sgt, %11, %540 : vector<2x1xi32>
    %cst_155 = arith.constant -1.000000e+30 : f32
    %542 = vector.broadcast %cst_155 : f32 to vector<2x1xf32>
    %543 = arith.select %541, %539, %542 : vector<2x1xi1>, vector<2x1xf32>
    %544 = arith.maximumf %522, %543 : vector<2x1xf32>
    %545 = arith.subf %522, %544 : vector<2x1xf32>
    %546 = math.exp %545 : vector<2x1xf32>
    %547 = arith.subf %543, %544 : vector<2x1xf32>
    %548 = math.exp %547 : vector<2x1xf32>
    %549 = arith.mulf %546, %528 : vector<2x1xf32>
    %550 = arith.addf %549, %548 : vector<2x1xf32>
    %551 = vector.broadcast %546 : vector<2x1xf32> to vector<2x32xf32>
    %552 = arith.mulf %551, %533 : vector<2x32xf32>
    %553 = vector.broadcast %548 : vector<2x1xf32> to vector<2x32xf32>
    %554 = arith.mulf %553, %536 : vector<2x32xf32>
    %555 = arith.addf %552, %554 : vector<2x32xf32>
    %c8_i32 = arith.constant 8 : i32
    %556 = tpu.reciprocal %550 {approx = true} : vector<2x1xf32> -> vector<2x1xf32>
    %557 = vector.broadcast %556 : vector<2x1xf32> to vector<2x32xf32>
    %558 = arith.mulf %555, %557 : vector<2x32xf32>
    %c0_156 = arith.constant 0 : index
    %c0_157 = arith.constant 0 : index
    %559 = vector.load %arg6[%c0_156, %c0_157] : memref<1x32xf32, #tpu.memory_space<vmem>>, vector<1x32xf32>
    %560 = vector.broadcast %559 : vector<1x32xf32> to vector<2x32xf32>
    %561 = arith.addf %558, %560 : vector<2x32xf32>
    %562 = arith.truncf %561 : vector<2x32xf32> to vector<2x32xbf16>
    %c0_158 = arith.constant 0 : index
    %c0_159 = arith.constant 0 : index
    %563 = vector.load %arg10[%c0_158, %c0_159] : memref<32x32xbf16, #tpu.memory_space<vmem>>, vector<32x32xbf16>
    %cst_160 = arith.constant dense<0.000000e+00> : vector<2x32xf32>
    %564 = tpu.matmul %562, %563, %cst_160 {dimension_numbers = #tpu.dot_dimension_numbers<[1], [0], [0], [1], [0, 0, 1, 1], [], []>} : vector<2x32xbf16>, vector<32x32xbf16>, vector<2x32xf32> -> vector<2x32xf32>
    %c0_161 = arith.constant 0 : index
    %c0_162 = arith.constant 0 : index
    %565 = vector.load %arg11[%c0_161, %c0_162] : memref<1x32xf32, #tpu.memory_space<vmem>>, vector<1x32xf32>
    %566 = vector.broadcast %565 : vector<1x32xf32> to vector<2x32xf32>
    %567 = arith.addf %564, %566 : vector<2x32xf32>
    %568 = arith.truncf %567 : vector<2x32xf32> to vector<2x32xbf16>
    %c0_163 = arith.constant 0 : index
    %c0_164 = arith.constant 0 : index
    %569 = vector.load %arg15[%c0_163, %c0_164] : memref<32x3xbf16, #tpu.memory_space<vmem>>, vector<32x3xbf16>
    %cst_165 = arith.constant dense<0.000000e+00> : vector<2x3xf32>
    %570 = tpu.matmul %568, %569, %cst_165 {dimension_numbers = #tpu.dot_dimension_numbers<[1], [0], [0], [1], [0, 0, 1, 1], [], []>} : vector<2x32xbf16>, vector<32x3xbf16>, vector<2x3xf32> -> vector<2x3xf32>
    %571 = arith.truncf %8 : vector<2x32xf32> to vector<2x32xbf16>
    %c0_166 = arith.constant 0 : index
    %c0_167 = arith.constant 0 : index
    %572 = vector.load %arg16[%c0_166, %c0_167] : memref<32x3xbf16, #tpu.memory_space<vmem>>, vector<32x3xbf16>
    %cst_168 = arith.constant dense<0.000000e+00> : vector<2x3xf32>
    %573 = tpu.matmul %571, %572, %cst_168 {dimension_numbers = #tpu.dot_dimension_numbers<[1], [0], [0], [1], [0, 0, 1, 1], [], []>} : vector<2x32xbf16>, vector<32x3xbf16>, vector<2x3xf32> -> vector<2x3xf32>
    %574 = arith.addf %570, %573 : vector<2x3xf32>
    %c0_169 = arith.constant 0 : index
    %c0_170 = arith.constant 0 : index
    %575 = vector.load %arg17[%c0_169, %c0_170] : memref<1x3xf32, #tpu.memory_space<vmem>>, vector<1x3xf32>
    %576 = vector.broadcast %575 : vector<1x3xf32> to vector<2x3xf32>
    %577 = arith.addf %574, %576 : vector<2x3xf32>
    %c0_171 = arith.constant 0 : index
    %c0_172 = arith.constant 0 : index
    %578 = vector.load %arg18[%c0_171, %c0_172] : memref<2x3xf32, #tpu.memory_space<vmem>>, vector<2x3xf32>
    tpu.vector_store %arg18[%c0_171, %c0_172], %577 {strides = array<i32>} : memref<2x3xf32, #tpu.memory_space<vmem>>, vector<2x3xf32>,
    return
  }
  func.func @transform_0(%arg0: i32) -> (i32, i32, i32) {
    %c0_i32 = arith.constant 0 : i32
    %c0_i32_0 = arith.constant 0 : i32
    %c0_i32_1 = arith.constant 0 : i32
    return %c0_i32, %arg0, %c0_i32_0 : i32, i32, i32
  }
  func.func @transform_1(%arg0: i32) -> (i32, i32) {
    %c0_i32 = arith.constant 0 : i32
    %c0_i32_0 = arith.constant 0 : i32
    return %arg0, %c0_i32 : i32, i32
  }
  func.func @transform_2(%arg0: i32) -> (i32, i32) {
    %c0_i32 = arith.constant 0 : i32
    %c0_i32_0 = arith.constant 0 : i32
    return %arg0, %c0_i32 : i32, i32
  }
  func.func @transform_3(%arg0: i32) -> (i32, i32) {
    %c0_i32 = arith.constant 0 : i32
    %c0_i32_0 = arith.constant 0 : i32
    %c0_i32_1 = arith.constant 0 : i32
    return %c0_i32, %c0_i32_0 : i32, i32
  }
  func.func @transform_4(%arg0: i32) -> (i32, i32) {
    %c0_i32 = arith.constant 0 : i32
    %c0_i32_0 = arith.constant 0 : i32
    %c0_i32_1 = arith.constant 0 : i32
    return %c0_i32, %c0_i32_0 : i32, i32
  }
  func.func @transform_5(%arg0: i32) -> (i32, i32) {
    %c0_i32 = arith.constant 0 : i32
    %c0_i32_0 = arith.constant 0 : i32
    %c0_i32_1 = arith.constant 0 : i32
    return %c0_i32, %c0_i32_0 : i32, i32
  }
  func.func @transform_6(%arg0: i32) -> (i32, i32) {
    %c0_i32 = arith.constant 0 : i32
    %c0_i32_0 = arith.constant 0 : i32
    %c0_i32_1 = arith.constant 0 : i32
    return %c0_i32, %c0_i32_0 : i32, i32
  }
  func.func @transform_7(%arg0: i32) -> (i32, i32) {
    %c0_i32 = arith.constant 0 : i32
    %c0_i32_0 = arith.constant 0 : i32
    %c0_i32_1 = arith.constant 0 : i32
    return %c0_i32, %c0_i32_0 : i32, i32
  }
  func.func @transform_8(%arg0: i32) -> (i32, i32) {
    %c0_i32 = arith.constant 0 : i32
    %c0_i32_0 = arith.constant 0 : i32
    %c0_i32_1 = arith.constant 0 : i32
    return %c0_i32, %c0_i32_0 : i32, i32
  }
  func.func @transform_9(%arg0: i32) -> (i32, i32) {
    %c0_i32 = arith.constant 0 : i32
    %c0_i32_0 = arith.constant 0 : i32
    %c0_i32_1 = arith.constant 0 : i32
    return %c0_i32, %c0_i32_0 : i32, i32
  }
  func.func @transform_10(%arg0: i32) -> (i32, i32) {
    %c0_i32 = arith.constant 0 : i32
    %c0_i32_0 = arith.constant 0 : i32
    %c0_i32_1 = arith.constant 0 : i32
    return %c0_i32, %c0_i32_0 : i32, i32
  }
  func.func @transform_11(%arg0: i32) -> (i32, i32) {
    %c0_i32 = arith.constant 0 : i32
    %c0_i32_0 = arith.constant 0 : i32
    return %arg0, %c0_i32 : i32, i32
  }
  func.func @transform_12(%arg0: i32) -> (i32, i32) {
    %c0_i32 = arith.constant 0 : i32
    %c0_i32_0 = arith.constant 0 : i32
    %c0_i32_1 = arith.constant 0 : i32
    return %c0_i32, %c0_i32_0 : i32, i32
  }
  func.func @transform_13(%arg0: i32) -> (i32, i32) {
    %c0_i32 = arith.constant 0 : i32
    %c0_i32_0 = arith.constant 0 : i32
    %c0_i32_1 = arith.constant 0 : i32
    return %c0_i32, %c0_i32_0 : i32, i32
  }
  func.func @transform_14(%arg0: i32) -> (i32, i32) {
    %c0_i32 = arith.constant 0 : i32
    %c0_i32_0 = arith.constant 0 : i32
    %c0_i32_1 = arith.constant 0 : i32
    return %c0_i32, %c0_i32_0 : i32, i32
  }
  func.func @transform_15(%arg0: i32) -> (i32, i32) {
    %c0_i32 = arith.constant 0 : i32
    %c0_i32_0 = arith.constant 0 : i32
    %c0_i32_1 = arith.constant 0 : i32
    return %c0_i32, %c0_i32_0 : i32, i32
  }
  func.func @transform_16(%arg0: i32) -> (i32, i32) {
    %c0_i32 = arith.constant 0 : i32
    %c0_i32_0 = arith.constant 0 : i32
    %c0_i32_1 = arith.constant 0 : i32
    return %c0_i32, %c0_i32_0 : i32, i32
  }
  func.func @transform_17(%arg0: i32) -> (i32, i32) {
    %c0_i32 = arith.constant 0 : i32
    %c0_i32_0 = arith.constant 0 : i32
    return %arg0, %c0_i32 : i32, i32
  }
}

</mosaic_0001>

<llo_original>
// kernel: tpu_custom_call.1
$region0: #{tpu_custom_call.1}
  #allocation0 [shape = 'u32[]', space=smem, size = 0x4, offset = 0x4, fixed_abs, tag = 'smem constant byte address 0x4 - core index']
  #allocation1 [shape = 'u32[72,128]{1,0:T(1,128)}', space=vmem, size = 0x9000, scoped, tag = 'internal scratch']
  #allocation2 [shape = 'f32[8,2,32]{2,1,0:T(2,128)}', space=vmem, size = 0x2000, scoped, tag = 'scratch operand']
  %s0 = inlined_call_operand.vmem [shape: f32[8,2,128], index: 0, kind: input, shape index: {}]
  %s1 = inlined_call_operand.vmem [shape: s32[2,1], index: 1, kind: input, shape index: {}]
  %s2 = inlined_call_operand.vmem [shape: f32[2,1], index: 2, kind: input, shape index: {}]
  %s3 = inlined_call_operand.vmem [shape: bf16[32,128], index: 3, kind: input, shape index: {}]
  %s4 = inlined_call_operand.vmem [shape: bf16[32,32], index: 4, kind: input, shape index: {}]
  %s5 = inlined_call_operand.vmem [shape: f32[1,32], index: 5, kind: input, shape index: {}]
  %s6 = inlined_call_operand.vmem [shape: bf16[32,32], index: 6, kind: input, shape index: {}]
  %s7 = inlined_call_operand.vmem [shape: f32[1,32], index: 7, kind: input, shape index: {}]
  %s8 = inlined_call_operand.vmem [shape: bf16[32,32], index: 8, kind: input, shape index: {}]
  %s9 = inlined_call_operand.vmem [shape: bf16[32,32], index: 9, kind: input, shape index: {}]
  %s10 = inlined_call_operand.vmem [shape: f32[1,32], index: 10, kind: input, shape index: {}]
  %s11 = inlined_call_operand.vmem [shape: bf16[2,2048], index: 11, kind: input, shape index: {}]
  %s12 = inlined_call_operand.vmem [shape: bf16[2048,32], index: 12, kind: input, shape index: {}]
  %s13 = inlined_call_operand.vmem [shape: f32[1,32], index: 13, kind: input, shape index: {}]
  %s14 = inlined_call_operand.vmem [shape: bf16[32,3], index: 14, kind: input, shape index: {}]
  %s15 = inlined_call_operand.vmem [shape: bf16[32,3], index: 15, kind: input, shape index: {}]
  %s16 = inlined_call_operand.vmem [shape: f32[1,3], index: 16, kind: input, shape index: {}]
  %s17 = inlined_call_operand.hbm [shape: f32[2,3], index: 17, kind: output, shape index: {}]
  %s18 = sld [smem:[#allocation0]]
  $region78: #{tpu_custom_call.1} parent=0
    _
  %s20 = ssub.s32 1, %s18
  %s21 = scalar_select 0, %s20, %s18
  $region1: #{tpu_custom_call.1} parent=0
    #allocation3 [shape = 'u8[1024]{0}', space=vmem, size = 0x400, scoped, tag = 'output window, operand 0, single buffered']
    #allocation4 [shape = 's32[1]{0}', space=sflag, size = 0x4, scoped, tag = 'scoped memory for tpu_custom_call.1']
    %22 = vsyncpa [#allocation4], 0
    // Predicated region
    $region2: #{tpu_custom_call.1} parent=1 // pred_check
      _
    $region3: #{tpu_custom_call.1} parent=1 // pred_check_branch
      %24 = sbr.rel (0) target = $region5
    $region4: #{tpu_custom_call.1} parent=1 // pred_region
      _
    $region5: #{tpu_custom_call.1} parent=1 // pred_fallthru
      _
    // Predicated region
    $region6: #{tpu_custom_call.1} parent=1 // pred_check
      _
    $region7: #{tpu_custom_call.1} parent=1 // pred_check_branch
      %26 = sbr.rel (0) target = $region9
    $region8: #{tpu_custom_call.1} parent=1 // pred_region
      _
    $region9: #{tpu_custom_call.1} parent=1 // pred_fallthru
      _
    // Predicated region
    $region10: #{tpu_custom_call.1} parent=1 // pred_check
      _
    $region11: #{tpu_custom_call.1} parent=1 // pred_check_branch
      %28 = sbr.rel (0) target = $region13
    $region12: #{tpu_custom_call.1} parent=1 // pred_region
      _
    $region13: #{tpu_custom_call.1} parent=1 // pred_fallthru
      _
    // Predicated region
    $region14: #{tpu_custom_call.1} parent=1 // pred_check
      _
    $region15: #{tpu_custom_call.1} parent=1 // pred_check_branch
      %30 = sbr.rel (0) target = $region17
    $region16: #{tpu_custom_call.1} parent=1 // pred_region
      _
    $region17: #{tpu_custom_call.1} parent=1 // pred_fallthru
      _
    // Predicated region
    $region18: #{tpu_custom_call.1} parent=1 // pred_check
      _
    $region19: #{tpu_custom_call.1} parent=1 // pred_check_branch
      %32 = sbr.rel (0) target = $region21
    $region20: #{tpu_custom_call.1} parent=1 // pred_region
      _
    $region21: #{tpu_custom_call.1} parent=1 // pred_fallthru
      _
    // Predicated region
    $region22: #{tpu_custom_call.1} parent=1 // pred_check
      _
    $region23: #{tpu_custom_call.1} parent=1 // pred_check_branch
      %34 = sbr.rel (0) target = $region25
    $region24: #{tpu_custom_call.1} parent=1 // pred_region
      _
    $region25: #{tpu_custom_call.1} parent=1 // pred_fallthru
      _
    // Predicated region
    $region26: #{tpu_custom_call.1} parent=1 // pred_check
      _
    $region27: #{tpu_custom_call.1} parent=1 // pred_check_branch
      %36 = sbr.rel (0) target = $region29
    $region28: #{tpu_custom_call.1} parent=1 // pred_region
      _
    $region29: #{tpu_custom_call.1} parent=1 // pred_fallthru
      _
    // Predicated region
    $region30: #{tpu_custom_call.1} parent=1 // pred_check
      _
    $region31: #{tpu_custom_call.1} parent=1 // pred_check_branch
      %38 = sbr.rel (0) target = $region33
    $region32: #{tpu_custom_call.1} parent=1 // pred_region
      _
    $region33: #{tpu_custom_call.1} parent=1 // pred_fallthru
      _
    // Predicated region
    $region34: #{tpu_custom_call.1} parent=1 // pred_check
      _
    $region35: #{tpu_custom_call.1} parent=1 // pred_check_branch
      %40 = sbr.rel (0) target = $region37
    $region36: #{tpu_custom_call.1} parent=1 // pred_region
      _
    $region37: #{tpu_custom_call.1} parent=1 // pred_fallthru
      _
    // Predicated region
    $region38: #{tpu_custom_call.1} parent=1 // pred_check
      _
    $region39: #{tpu_custom_call.1} parent=1 // pred_check_branch
      %42 = sbr.rel (0) target = $region41
    $region40: #{tpu_custom_call.1} parent=1 // pred_region
      _
    $region41: #{tpu_custom_call.1} parent=1 // pred_fallthru
      _
    // Predicated region
    $region42: #{tpu_custom_call.1} parent=1 // pred_check
      _
    $region43: #{tpu_custom_call.1} parent=1 // pred_check_branch
      %44 = sbr.rel (0) target = $region45
    $region44: #{tpu_custom_call.1} parent=1 // pred_region
      _
    $region45: #{tpu_custom_call.1} parent=1 // pred_fallthru
      _
    // Predicated region
    $region46: #{tpu_custom_call.1} parent=1 // pred_check
      _
    $region47: #{tpu_custom_call.1} parent=1 // pred_check_branch
      %46 = sbr.rel (0) target = $region49
    $region48: #{tpu_custom_call.1} parent=1 // pred_region
      _
    $region49: #{tpu_custom_call.1} parent=1 // pred_fallthru
      _
    // Predicated region
    $region50: #{tpu_custom_call.1} parent=1 // pred_check
      _
    $region51: #{tpu_custom_call.1} parent=1 // pred_check_branch
      %48 = sbr.rel (0) target = $region53
    $region52: #{tpu_custom_call.1} parent=1 // pred_region
      _
    $region53: #{tpu_custom_call.1} parent=1 // pred_fallthru
      _
    // Predicated region
    $region54: #{tpu_custom_call.1} parent=1 // pred_check
      _
    $region55: #{tpu_custom_call.1} parent=1 // pred_check_branch
      %50 = sbr.rel (0) target = $region57
    $region56: #{tpu_custom_call.1} parent=1 // pred_region
      _
    $region57: #{tpu_custom_call.1} parent=1 // pred_fallthru
      _
    // Predicated region
    $region58: #{tpu_custom_call.1} parent=1 // pred_check
      _
    $region59: #{tpu_custom_call.1} parent=1 // pred_check_branch
      %52 = sbr.rel (0) target = $region61
    $region60: #{tpu_custom_call.1} parent=1 // pred_region
      _
    $region61: #{tpu_custom_call.1} parent=1 // pred_fallthru
      _
    // Predicated region
    $region62: #{tpu_custom_call.1} parent=1 // pred_check
      _
    $region63: #{tpu_custom_call.1} parent=1 // pred_check_branch
      %54 = sbr.rel (0) target = $region65
    $region64: #{tpu_custom_call.1} parent=1 // pred_region
      _
    $region65: #{tpu_custom_call.1} parent=1 // pred_fallthru
      _
    // Predicated region
    $region66: #{tpu_custom_call.1} parent=1 // pred_check
      _
    $region67: #{tpu_custom_call.1} parent=1 // pred_check_branch
      %56 = sbr.rel (0) target = $region69
    $region68: #{tpu_custom_call.1} parent=1 // pred_region
      _
    $region69: #{tpu_custom_call.1} parent=1 // pred_fallthru
      _
    %v58 = vld [vmem:[%s11] sm:$0xff]
    %v59 = vld [vmem:[%s11 + $0x8] sm:$0xff]
    %v60 = vunpack.c.l.bf16 %v58
    %v61 = vunpack.c.h.bf16 %v58
    %v62 = vunpack.c.l.bf16 %v59
    %v63 = vunpack.c.h.bf16 %v59
    %v64 = vtanh.pop %v60
    %v65 = vtanh.pop %v61
    %v66 = vtanh.pop %v62
    %v67 = vtanh.pop %v63
    %72 = vst [vmem:[#allocation1] ss:$4 sm:$0xff] %v64
    %s73 = scalar_lea.vmem [#allocation1], 32
    %74 = vst [vmem:[%s73] ss:$4 sm:$0xff] %v65
    %v75 = vld.sshfl [vmem:[#allocation1] sm:$0xff pattern:$0x73625140]
    %v76 = vld.sshfl [vmem:[#allocation1 + $0x8] sm:$0xff pattern:$0x73625140]
    %v77 = vld.sshfl [vmem:[#allocation1 + $0x10] sm:$0xff pattern:$0x73625140]
    %v78 = vld.sshfl [vmem:[#allocation1 + $0x18] sm:$0xff pattern:$0x73625140]
    %v79 = vld.sshfl [vmem:[#allocation1 + $0x20] sm:$0xff pattern:$0x73625140]
    %v80 = vld.sshfl [vmem:[#allocation1 + $0x28] sm:$0xff pattern:$0x73625140]
    %v81 = vld.sshfl [vmem:[#allocation1 + $0x30] sm:$0xff pattern:$0x73625140]
    %v82 = vld.sshfl [vmem:[#allocation1 + $0x38] sm:$0xff pattern:$0x73625140]
    %83 = vst [vmem:[#allocation1] ss:$4 sm:$0xff] %v66
    %84 = vst [vmem:[%s73] ss:$4 sm:$0xff] %v67
    %v85 = vld.sshfl [vmem:[#allocation1] sm:$0xff pattern:$0x73625140]
    %v86 = vld.sshfl [vmem:[#allocation1 + $0x8] sm:$0xff pattern:$0x73625140]
    %v87 = vld.sshfl [vmem:[#allocation1 + $0x10] sm:$0xff pattern:$0x73625140]
    %v88 = vld.sshfl [vmem:[#allocation1 + $0x18] sm:$0xff pattern:$0x73625140]
    %v89 = vld.sshfl [vmem:[#allocation1 + $0x20] sm:$0xff pattern:$0x73625140]
    %v90 = vld.sshfl [vmem:[#allocation1 + $0x28] sm:$0xff pattern:$0x73625140]
    %v91 = vld.sshfl [vmem:[#allocation1 + $0x30] sm:$0xff pattern:$0x73625140]
    %v92 = vld.sshfl [vmem:[#allocation1 + $0x38] sm:$0xff pattern:$0x73625140]
    %v109 = vpack.c.bf16 %v75, %v75
    %v110 = vpack.c.bf16 %v76, %v76
    %v111 = vpack.c.bf16 %v77, %v77
    %v112 = vpack.c.bf16 %v78, %v78
    %v113 = vpack.c.bf16 %v79, %v79
    %v114 = vpack.c.bf16 %v80, %v80
    %v115 = vpack.c.bf16 %v81, %v81
    %v116 = vpack.c.bf16 %v82, %v82
    %v117 = vpack.c.bf16 %v85, %v85
    %v118 = vpack.c.bf16 %v86, %v86
    %v119 = vpack.c.bf16 %v87, %v87
    %v120 = vpack.c.bf16 %v88, %v88
    %v121 = vpack.c.bf16 %v89, %v89
    %v122 = vpack.c.bf16 %v90, %v90
    %v123 = vpack.c.bf16 %v91, %v91
    %v124 = vpack.c.bf16 %v92, %v92
    %v125 = vld [vmem:[%s12] sm:$0xf]
    %v126 = vld [vmem:[%s12 + $0x4] sm:$0xf]
    %v127 = vld [vmem:[%s12 + $0x8] sm:$0xf]
    %v128 = vld [vmem:[%s12 + $0xc] sm:$0xf]
    %v129 = vld [vmem:[%s12 + $0x10] sm:$0xf]
    %v130 = vld [vmem:[%s12 + $0x14] sm:$0xf]
    %v131 = vld [vmem:[%s12 + $0x18] sm:$0xf]
    %v132 = vld [vmem:[%s12 + $0x1c] sm:$0xf]
    %v133 = vld [vmem:[%s12 + $0x20] sm:$0xf]
    %v134 = vld [vmem:[%s12 + $0x24] sm:$0xf]
    %v135 = vld [vmem:[%s12 + $0x28] sm:$0xf]
    %v136 = vld [vmem:[%s12 + $0x2c] sm:$0xf]
    %v137 = vld [vmem:[%s12 + $0x30] sm:$0xf]
    %v138 = vld [vmem:[%s12 + $0x34] sm:$0xf]
    %v139 = vld [vmem:[%s12 + $0x38] sm:$0xf]
    %v140 = vld [vmem:[%s12 + $0x3c] sm:$0xf]
    %v141 = vld [vmem:[%s12 + $0x40] sm:$0xf]
    %v142 = vld [vmem:[%s12 + $0x44] sm:$0xf]
    %v143 = vld [vmem:[%s12 + $0x48] sm:$0xf]
    %v144 = vld [vmem:[%s12 + $0x4c] sm:$0xf]
    %v145 = vld [vmem:[%s12 + $0x50] sm:$0xf]
    %v146 = vld [vmem:[%s12 + $0x54] sm:$0xf]
    %v147 = vld [vmem:[%s12 + $0x58] sm:$0xf]
    %v148 = vld [vmem:[%s12 + $0x5c] sm:$0xf]
    %v149 = vld [vmem:[%s12 + $0x60] sm:$0xf]
    %v150 = vld [vmem:[%s12 + $0x64] sm:$0xf]
    %v151 = vld [vmem:[%s12 + $0x68] sm:$0xf]
    %v152 = vld [vmem:[%s12 + $0x6c] sm:$0xf]
    %v153 = vld [vmem:[%s12 + $0x70] sm:$0xf]
    %v154 = vld [vmem:[%s12 + $0x74] sm:$0xf]
    %v155 = vld [vmem:[%s12 + $0x78] sm:$0xf]
    %v156 = vld [vmem:[%s12 + $0x7c] sm:$0xf]
    %v157 = vld [vmem:[%s12 + $0x80] sm:$0xf]
    %v158 = vld [vmem:[%s12 + $0x84] sm:$0xf]
    %v159 = vld [vmem:[%s12 + $0x88] sm:$0xf]
    %v160 = vld [vmem:[%s12 + $0x8c] sm:$0xf]
    %v161 = vld [vmem:[%s12 + $0x90] sm:$0xf]
    %v162 = vld [vmem:[%s12 + $0x94] sm:$0xf]
    %v163 = vld [vmem:[%s12 + $0x98] sm:$0xf]
    %v164 = vld [vmem:[%s12 + $0x9c] sm:$0xf]
    %v165 = vld [vmem:[%s12 + $0xa0] sm:$0xf]
    %v166 = vld [vmem:[%s12 + $0xa4] sm:$0xf]
    %v167 = vld [vmem:[%s12 + $0xa8] sm:$0xf]
    %v168 = vld [vmem:[%s12 + $0xac] sm:$0xf]
    %v169 = vld [vmem:[%s12 + $0xb0] sm:$0xf]
    %v170 = vld [vmem:[%s12 + $0xb4] sm:$0xf]
    %v171 = vld [vmem:[%s12 + $0xb8] sm:$0xf]
    %v172 = vld [vmem:[%s12 + $0xbc] sm:$0xf]
    %v173 = vld [vmem:[%s12 + $0xc0] sm:$0xf]
    %v174 = vld [vmem:[%s12 + $0xc4] sm:$0xf]
    %v175 = vld [vmem:[%s12 + $0xc8] sm:$0xf]
    %v176 = vld [vmem:[%s12 + $0xcc] sm:$0xf]
    %v177 = vld [vmem:[%s12 + $0xd0] sm:$0xf]
    %v178 = vld [vmem:[%s12 + $0xd4] sm:$0xf]
    %v179 = vld [vmem:[%s12 + $0xd8] sm:$0xf]
    %v180 = vld [vmem:[%s12 + $0xdc] sm:$0xf]
    %v181 = vld [vmem:[%s12 + $0xe0] sm:$0xf]
    %v182 = vld [vmem:[%s12 + $0xe4] sm:$0xf]
    %v183 = vld [vmem:[%s12 + $0xe8] sm:$0xf]
    %v184 = vld [vmem:[%s12 + $0xec] sm:$0xf]
    %v185 = vld [vmem:[%s12 + $0xf0] sm:$0xf]
    %v186 = vld [vmem:[%s12 + $0xf4] sm:$0xf]
    %v187 = vld [vmem:[%s12 + $0xf8] sm:$0xf]
    %v188 = vld [vmem:[%s12 + $0xfc] sm:$0xf]
    %v189 = vld [vmem:[%s12 + $0x100] sm:$0xf]
    %v190 = vld [vmem:[%s12 + $0x104] sm:$0xf]
    %v191 = vld [vmem:[%s12 + $0x108] sm:$0xf]
    %v192 = vld [vmem:[%s12 + $0x10c] sm:$0xf]
    %v193 = vld [vmem:[%s12 + $0x110] sm:$0xf]
    %v194 = vld [vmem:[%s12 + $0x114] sm:$0xf]
    %v195 = vld [vmem:[%s12 + $0x118] sm:$0xf]
    %v196 = vld [vmem:[%s12 + $0x11c] sm:$0xf]
    %v197 = vld [vmem:[%s12 + $0x120] sm:$0xf]
    %v198 = vld [vmem:[%s12 + $0x124] sm:$0xf]
    %v199 = vld [vmem:[%s12 + $0x128] sm:$0xf]
    %v200 = vld [vmem:[%s12 + $0x12c] sm:$0xf]
    %v201 = vld [vmem:[%s12 + $0x130] sm:$0xf]
    %v202 = vld [vmem:[%s12 + $0x134] sm:$0xf]
    %v203 = vld [vmem:[%s12 + $0x138] sm:$0xf]
    %v204 = vld [vmem:[%s12 + $0x13c] sm:$0xf]
    %v205 = vld [vmem:[%s12 + $0x140] sm:$0xf]
    %v206 = vld [vmem:[%s12 + $0x144] sm:$0xf]
    %v207 = vld [vmem:[%s12 + $0x148] sm:$0xf]
    %v208 = vld [vmem:[%s12 + $0x14c] sm:$0xf]
    %v209 = vld [vmem:[%s12 + $0x150] sm:$0xf]
    %v210 = vld [vmem:[%s12 + $0x154] sm:$0xf]
    %v211 = vld [vmem:[%s12 + $0x158] sm:$0xf]
    %v212 = vld [vmem:[%s12 + $0x15c] sm:$0xf]
    %v213 = vld [vmem:[%s12 + $0x160] sm:$0xf]
    %v214 = vld [vmem:[%s12 + $0x164] sm:$0xf]
    %v215 = vld [vmem:[%s12 + $0x168] sm:$0xf]
    %v216 = vld [vmem:[%s12 + $0x16c] sm:$0xf]
    %v217 = vld [vmem:[%s12 + $0x170] sm:$0xf]
    %v218 = vld [vmem:[%s12 + $0x174] sm:$0xf]
    %v219 = vld [vmem:[%s12 + $0x178] sm:$0xf]
    %v220 = vld [vmem:[%s12 + $0x17c] sm:$0xf]
    %v221 = vld [vmem:[%s12 + $0x180] sm:$0xf]
    %v222 = vld [vmem:[%s12 + $0x184] sm:$0xf]
    %v223 = vld [vmem:[%s12 + $0x188] sm:$0xf]
    %v224 = vld [vmem:[%s12 + $0x18c] sm:$0xf]
    %v225 = vld [vmem:[%s12 + $0x190] sm:$0xf]
    %v226 = vld [vmem:[%s12 + $0x194] sm:$0xf]
    %v227 = vld [vmem:[%s12 + $0x198] sm:$0xf]
    %v228 = vld [vmem:[%s12 + $0x19c] sm:$0xf]
    %v229 = vld [vmem:[%s12 + $0x1a0] sm:$0xf]
    %v230 = vld [vmem:[%s12 + $0x1a4] sm:$0xf]
    %v231 = vld [vmem:[%s12 + $0x1a8] sm:$0xf]
    %v232 = vld [vmem:[%s12 + $0x1ac] sm:$0xf]
    %v233 = vld [vmem:[%s12 + $0x1b0] sm:$0xf]
    %v234 = vld [vmem:[%s12 + $0x1b4] sm:$0xf]
    %v235 = vld [vmem:[%s12 + $0x1b8] sm:$0xf]
    %v236 = vld [vmem:[%s12 + $0x1bc] sm:$0xf]
    %v237 = vld [vmem:[%s12 + $0x1c0] sm:$0xf]
    %v238 = vld [vmem:[%s12 + $0x1c4] sm:$0xf]
    %v239 = vld [vmem:[%s12 + $0x1c8] sm:$0xf]
    %v240 = vld [vmem:[%s12 + $0x1cc] sm:$0xf]
    %v241 = vld [vmem:[%s12 + $0x1d0] sm:$0xf]
    %v242 = vld [vmem:[%s12 + $0x1d4] sm:$0xf]
    %v243 = vld [vmem:[%s12 + $0x1d8] sm:$0xf]
    %v244 = vld [vmem:[%s12 + $0x1dc] sm:$0xf]
    %v245 = vld [vmem:[%s12 + $0x1e0] sm:$0xf]
    %v246 = vld [vmem:[%s12 + $0x1e4] sm:$0xf]
    %v247 = vld [vmem:[%s12 + $0x1e8] sm:$0xf]
    %v248 = vld [vmem:[%s12 + $0x1ec] sm:$0xf]
    %v249 = vld [vmem:[%s12 + $0x1f0] sm:$0xf]
    %v250 = vld [vmem:[%s12 + $0x1f4] sm:$0xf]
    %v251 = vld [vmem:[%s12 + $0x1f8] sm:$0xf]
    %v252 = vld [vmem:[%s12 + $0x1fc] sm:$0xf]
    %v253 = vld [vmem:[%s12 + $0x200] sm:$0xf]
    %v254 = vld [vmem:[%s12 + $0x204] sm:$0xf]
    %v255 = vld [vmem:[%s12 + $0x208] sm:$0xf]
    %v256 = vld [vmem:[%s12 + $0x20c] sm:$0xf]
    %v257 = vld [vmem:[%s12 + $0x210] sm:$0xf]
    %v258 = vld [vmem:[%s12 + $0x214] sm:$0xf]
    %v259 = vld [vmem:[%s12 + $0x218] sm:$0xf]
    %v260 = vld [vmem:[%s12 + $0x21c] sm:$0xf]
    %v261 = vld [vmem:[%s12 + $0x220] sm:$0xf]
    %v262 = vld [vmem:[%s12 + $0x224] sm:$0xf]
    %v263 = vld [vmem:[%s12 + $0x228] sm:$0xf]
    %v264 = vld [vmem:[%s12 + $0x22c] sm:$0xf]
    %v265 = vld [vmem:[%s12 + $0x230] sm:$0xf]
    %v266 = vld [vmem:[%s12 + $0x234] sm:$0xf]
    %v267 = vld [vmem:[%s12 + $0x238] sm:$0xf]
    %v268 = vld [vmem:[%s12 + $0x23c] sm:$0xf]
    %v269 = vld [vmem:[%s12 + $0x240] sm:$0xf]
    %v270 = vld [vmem:[%s12 + $0x244] sm:$0xf]
    %v271 = vld [vmem:[%s12 + $0x248] sm:$0xf]
    %v272 = vld [vmem:[%s12 + $0x24c] sm:$0xf]
    %v273 = vld [vmem:[%s12 + $0x250] sm:$0xf]
    %v274 = vld [vmem:[%s12 + $0x254] sm:$0xf]
    %v275 = vld [vmem:[%s12 + $0x258] sm:$0xf]
    %v276 = vld [vmem:[%s12 + $0x25c] sm:$0xf]
    %v277 = vld [vmem:[%s12 + $0x260] sm:$0xf]
    %v278 = vld [vmem:[%s12 + $0x264] sm:$0xf]
    %v279 = vld [vmem:[%s12 + $0x268] sm:$0xf]
    %v280 = vld [vmem:[%s12 + $0x26c] sm:$0xf]
    %v281 = vld [vmem:[%s12 + $0x270] sm:$0xf]
    %v282 = vld [vmem:[%s12 + $0x274] sm:$0xf]
    %v283 = vld [vmem:[%s12 + $0x278] sm:$0xf]
    %v284 = vld [vmem:[%s12 + $0x27c] sm:$0xf]
    %v285 = vld [vmem:[%s12 + $0x280] sm:$0xf]
    %v286 = vld [vmem:[%s12 + $0x284] sm:$0xf]
    %v287 = vld [vmem:[%s12 + $0x288] sm:$0xf]
    %v288 = vld [vmem:[%s12 + $0x28c] sm:$0xf]
    %v289 = vld [vmem:[%s12 + $0x290] sm:$0xf]
    %v290 = vld [vmem:[%s12 + $0x294] sm:$0xf]
    %v291 = vld [vmem:[%s12 + $0x298] sm:$0xf]
    %v292 = vld [vmem:[%s12 + $0x29c] sm:$0xf]
    %v293 = vld [vmem:[%s12 + $0x2a0] sm:$0xf]
    %v294 = vld [vmem:[%s12 + $0x2a4] sm:$0xf]
    %v295 = vld [vmem:[%s12 + $0x2a8] sm:$0xf]
    %v296 = vld [vmem:[%s12 + $0x2ac] sm:$0xf]
    %v297 = vld [vmem:[%s12 + $0x2b0] sm:$0xf]
    %v298 = vld [vmem:[%s12 + $0x2b4] sm:$0xf]
    %v299 = vld [vmem:[%s12 + $0x2b8] sm:$0xf]
    %v300 = vld [vmem:[%s12 + $0x2bc] sm:$0xf]
    %v301 = vld [vmem:[%s12 + $0x2c0] sm:$0xf]
    %v302 = vld [vmem:[%s12 + $0x2c4] sm:$0xf]
    %v303 = vld [vmem:[%s12 + $0x2c8] sm:$0xf]
    %v304 = vld [vmem:[%s12 + $0x2cc] sm:$0xf]
    %v305 = vld [vmem:[%s12 + $0x2d0] sm:$0xf]
    %v306 = vld [vmem:[%s12 + $0x2d4] sm:$0xf]
    %v307 = vld [vmem:[%s12 + $0x2d8] sm:$0xf]
    %v308 = vld [vmem:[%s12 + $0x2dc] sm:$0xf]
    %v309 = vld [vmem:[%s12 + $0x2e0] sm:$0xf]
    %v310 = vld [vmem:[%s12 + $0x2e4] sm:$0xf]
    %v311 = vld [vmem:[%s12 + $0x2e8] sm:$0xf]
    %v312 = vld [vmem:[%s12 + $0x2ec] sm:$0xf]
    %v313 = vld [vmem:[%s12 + $0x2f0] sm:$0xf]
    %v314 = vld [vmem:[%s12 + $0x2f4] sm:$0xf]
    %v315 = vld [vmem:[%s12 + $0x2f8] sm:$0xf]
    %v316 = vld [vmem:[%s12 + $0x2fc] sm:$0xf]
    %v317 = vld [vmem:[%s12 + $0x300] sm:$0xf]
    %v318 = vld [vmem:[%s12 + $0x304] sm:$0xf]
    %v319 = vld [vmem:[%s12 + $0x308] sm:$0xf]
    %v320 = vld [vmem:[%s12 + $0x30c] sm:$0xf]
    %v321 = vld [vmem:[%s12 + $0x310] sm:$0xf]
    %v322 = vld [vmem:[%s12 + $0x314] sm:$0xf]
    %v323 = vld [vmem:[%s12 + $0x318] sm:$0xf]
    %v324 = vld [vmem:[%s12 + $0x31c] sm:$0xf]
    %v325 = vld [vmem:[%s12 + $0x320] sm:$0xf]
    %v326 = vld [vmem:[%s12 + $0x324] sm:$0xf]
    %v327 = vld [vmem:[%s12 + $0x328] sm:$0xf]
    %v328 = vld [vmem:[%s12 + $0x32c] sm:$0xf]
    %v329 = vld [vmem:[%s12 + $0x330] sm:$0xf]
    %v330 = vld [vmem:[%s12 + $0x334] sm:$0xf]
    %v331 = vld [vmem:[%s12 + $0x338] sm:$0xf]
    %v332 = vld [vmem:[%s12 + $0x33c] sm:$0xf]
    %v333 = vld [vmem:[%s12 + $0x340] sm:$0xf]
    %v334 = vld [vmem:[%s12 + $0x344] sm:$0xf]
    %v335 = vld [vmem:[%s12 + $0x348] sm:$0xf]
    %v336 = vld [vmem:[%s12 + $0x34c] sm:$0xf]
    %v337 = vld [vmem:[%s12 + $0x350] sm:$0xf]
    %v338 = vld [vmem:[%s12 + $0x354] sm:$0xf]
    %v339 = vld [vmem:[%s12 + $0x358] sm:$0xf]
    %v340 = vld [vmem:[%s12 + $0x35c] sm:$0xf]
    %v341 = vld [vmem:[%s12 + $0x360] sm:$0xf]
    %v342 = vld [vmem:[%s12 + $0x364] sm:$0xf]
    %v343 = vld [vmem:[%s12 + $0x368] sm:$0xf]
    %v344 = vld [vmem:[%s12 + $0x36c] sm:$0xf]
    %v345 = vld [vmem:[%s12 + $0x370] sm:$0xf]
    %v346 = vld [vmem:[%s12 + $0x374] sm:$0xf]
    %v347 = vld [vmem:[%s12 + $0x378] sm:$0xf]
    %v348 = vld [vmem:[%s12 + $0x37c] sm:$0xf]
    %v349 = vld [vmem:[%s12 + $0x380] sm:$0xf]
    %v350 = vld [vmem:[%s12 + $0x384] sm:$0xf]
    %v351 = vld [vmem:[%s12 + $0x388] sm:$0xf]
    %v352 = vld [vmem:[%s12 + $0x38c] sm:$0xf]
    %v353 = vld [vmem:[%s12 + $0x390] sm:$0xf]
    %v354 = vld [vmem:[%s12 + $0x394] sm:$0xf]
    %v355 = vld [vmem:[%s12 + $0x398] sm:$0xf]
    %v356 = vld [vmem:[%s12 + $0x39c] sm:$0xf]
    %v357 = vld [vmem:[%s12 + $0x3a0] sm:$0xf]
    %v358 = vld [vmem:[%s12 + $0x3a4] sm:$0xf]
    %v359 = vld [vmem:[%s12 + $0x3a8] sm:$0xf]
    %v360 = vld [vmem:[%s12 + $0x3ac] sm:$0xf]
    %v361 = vld [vmem:[%s12 + $0x3b0] sm:$0xf]
    %v362 = vld [vmem:[%s12 + $0x3b4] sm:$0xf]
    %v363 = vld [vmem:[%s12 + $0x3b8] sm:$0xf]
    %v364 = vld [vmem:[%s12 + $0x3bc] sm:$0xf]
    %v365 = vld [vmem:[%s12 + $0x3c0] sm:$0xf]
    %v366 = vld [vmem:[%s12 + $0x3c4] sm:$0xf]
    %v367 = vld [vmem:[%s12 + $0x3c8] sm:$0xf]
    %v368 = vld [vmem:[%s12 + $0x3cc] sm:$0xf]
    %v369 = vld [vmem:[%s12 + $0x3d0] sm:$0xf]
    %v370 = vld [vmem:[%s12 + $0x3d4] sm:$0xf]
    %v371 = vld [vmem:[%s12 + $0x3d8] sm:$0xf]
    %v372 = vld [vmem:[%s12 + $0x3dc] sm:$0xf]
    %v373 = vld [vmem:[%s12 + $0x3e0] sm:$0xf]
    %v374 = vld [vmem:[%s12 + $0x3e4] sm:$0xf]
    %v375 = vld [vmem:[%s12 + $0x3e8] sm:$0xf]
    %v376 = vld [vmem:[%s12 + $0x3ec] sm:$0xf]
    %v377 = vld [vmem:[%s12 + $0x3f0] sm:$0xf]
    %v378 = vld [vmem:[%s12 + $0x3f4] sm:$0xf]
    %v379 = vld [vmem:[%s12 + $0x3f8] sm:$0xf]
    %v380 = vld [vmem:[%s12 + $0x3fc] sm:$0xf]
    %v381 = vld [vmem:[%s13] sm:$0x1]
    %v383 = vperm.slane %v381, 0
    %v641 = vunpack.c.l.b16 %v125
    %v642 = vunpack.c.l.b16 %v126
    %v643 = vunpack.c.l.b16 %v127
    %v644 = vunpack.c.l.b16 %v128
    %v645 = vunpack.c.l.b16 %v129
    %v646 = vunpack.c.l.b16 %v130
    %v647 = vunpack.c.l.b16 %v131
    %v648 = vunpack.c.l.b16 %v132
    %v649 = vunpack.c.l.b16 %v133
    %v650 = vunpack.c.l.b16 %v134
    %v651 = vunpack.c.l.b16 %v135
    %v652 = vunpack.c.l.b16 %v136
    %v653 = vunpack.c.l.b16 %v137
    %v654 = vunpack.c.l.b16 %v138
    %v655 = vunpack.c.l.b16 %v139
    %v656 = vunpack.c.l.b16 %v140
    %v657 = vunpack.c.l.b16 %v141
    %v658 = vunpack.c.l.b16 %v142
    %v659 = vunpack.c.l.b16 %v143
    %v660 = vunpack.c.l.b16 %v144
    %v661 = vunpack.c.l.b16 %v145
    %v662 = vunpack.c.l.b16 %v146
    %v663 = vunpack.c.l.b16 %v147
    %v664 = vunpack.c.l.b16 %v148
    %v665 = vunpack.c.l.b16 %v149
    %v666 = vunpack.c.l.b16 %v150
    %v667 = vunpack.c.l.b16 %v151
    %v668 = vunpack.c.l.b16 %v152
    %v669 = vunpack.c.l.b16 %v153
    %v670 = vunpack.c.l.b16 %v154
    %v671 = vunpack.c.l.b16 %v155
    %v672 = vunpack.c.l.b16 %v156
    %v673 = vunpack.c.l.b16 %v157
    %v674 = vunpack.c.l.b16 %v158
    %v675 = vunpack.c.l.b16 %v159
    %v676 = vunpack.c.l.b16 %v160
    %v677 = vunpack.c.l.b16 %v161
    %v678 = vunpack.c.l.b16 %v162
    %v679 = vunpack.c.l.b16 %v163
    %v680 = vunpack.c.l.b16 %v164
    %v681 = vunpack.c.l.b16 %v165
    %v682 = vunpack.c.l.b16 %v166
    %v683 = vunpack.c.l.b16 %v167
    %v684 = vunpack.c.l.b16 %v168
    %v685 = vunpack.c.l.b16 %v169
    %v686 = vunpack.c.l.b16 %v170
    %v687 = vunpack.c.l.b16 %v171
    %v688 = vunpack.c.l.b16 %v172
    %v689 = vunpack.c.l.b16 %v173
    %v690 = vunpack.c.l.b16 %v174
    %v691 = vunpack.c.l.b16 %v175
    %v692 = vunpack.c.l.b16 %v176
    %v693 = vunpack.c.l.b16 %v177
    %v694 = vunpack.c.l.b16 %v178
    %v695 = vunpack.c.l.b16 %v179
    %v696 = vunpack.c.l.b16 %v180
    %v697 = vunpack.c.l.b16 %v181
    %v698 = vunpack.c.l.b16 %v182
    %v699 = vunpack.c.l.b16 %v183
    %v700 = vunpack.c.l.b16 %v184
    %v701 = vunpack.c.l.b16 %v185
    %v702 = vunpack.c.l.b16 %v186
    %v703 = vunpack.c.l.b16 %v187
    %v704 = vunpack.c.l.b16 %v188
    %v705 = vunpack.c.l.b16 %v189
    %v706 = vunpack.c.l.b16 %v190
    %v707 = vunpack.c.l.b16 %v191
    %v708 = vunpack.c.l.b16 %v192
    %v709 = vunpack.c.l.b16 %v193
    %v710 = vunpack.c.l.b16 %v194
    %v711 = vunpack.c.l.b16 %v195
    %v712 = vunpack.c.l.b16 %v196
    %v713 = vunpack.c.l.b16 %v197
    %v714 = vunpack.c.l.b16 %v198
    %v715 = vunpack.c.l.b16 %v199
    %v716 = vunpack.c.l.b16 %v200
    %v717 = vunpack.c.l.b16 %v201
    %v718 = vunpack.c.l.b16 %v202
    %v719 = vunpack.c.l.b16 %v203
    %v720 = vunpack.c.l.b16 %v204
    %v721 = vunpack.c.l.b16 %v205
    %v722 = vunpack.c.l.b16 %v206
    %v723 = vunpack.c.l.b16 %v207
    %v724 = vunpack.c.l.b16 %v208
    %v725 = vunpack.c.l.b16 %v209
    %v726 = vunpack.c.l.b16 %v210
    %v727 = vunpack.c.l.b16 %v211
    %v728 = vunpack.c.l.b16 %v212
    %v729 = vunpack.c.l.b16 %v213
    %v730 = vunpack.c.l.b16 %v214
    %v731 = vunpack.c.l.b16 %v215
    %v732 = vunpack.c.l.b16 %v216
    %v733 = vunpack.c.l.b16 %v217
    %v734 = vunpack.c.l.b16 %v218
    %v735 = vunpack.c.l.b16 %v219
    %v736 = vunpack.c.l.b16 %v220
    %v737 = vunpack.c.l.b16 %v221
    %v738 = vunpack.c.l.b16 %v222
    %v739 = vunpack.c.l.b16 %v223
    %v740 = vunpack.c.l.b16 %v224
    %v741 = vunpack.c.l.b16 %v225
    %v742 = vunpack.c.l.b16 %v226
    %v743 = vunpack.c.l.b16 %v227
    %v744 = vunpack.c.l.b16 %v228
    %v745 = vunpack.c.l.b16 %v229
    %v746 = vunpack.c.l.b16 %v230
    %v747 = vunpack.c.l.b16 %v231
    %v748 = vunpack.c.l.b16 %v232
    %v749 = vunpack.c.l.b16 %v233
    %v750 = vunpack.c.l.b16 %v234
    %v751 = vunpack.c.l.b16 %v235
    %v752 = vunpack.c.l.b16 %v236
    %v753 = vunpack.c.l.b16 %v237
    %v754 = vunpack.c.l.b16 %v238
    %v755 = vunpack.c.l.b16 %v239
    %v756 = vunpack.c.l.b16 %v240
    %v757 = vunpack.c.l.b16 %v241
    %v758 = vunpack.c.l.b16 %v242
    %v759 = vunpack.c.l.b16 %v243
    %v760 = vunpack.c.l.b16 %v244
    %v761 = vunpack.c.l.b16 %v245
    %v762 = vunpack.c.l.b16 %v246
    %v763 = vunpack.c.l.b16 %v247
    %v764 = vunpack.c.l.b16 %v248
    %v765 = vunpack.c.l.b16 %v249
    %v766 = vunpack.c.l.b16 %v250
    %v767 = vunpack.c.l.b16 %v251
    %v768 = vunpack.c.l.b16 %v252
    %v769 = vunpack.c.l.b16 %v253
    %v770 = vunpack.c.l.b16 %v254
    %v771 = vunpack.c.l.b16 %v255
    %v772 = vunpack.c.l.b16 %v256
    %v773 = vunpack.c.l.b16 %v257
    %v774 = vunpack.c.l.b16 %v258
    %v775 = vunpack.c.l.b16 %v259
    %v776 = vunpack.c.l.b16 %v260
    %v777 = vunpack.c.l.b16 %v261
    %v778 = vunpack.c.l.b16 %v262
    %v779 = vunpack.c.l.b16 %v263
    %v780 = vunpack.c.l.b16 %v264
    %v781 = vunpack.c.l.b16 %v265
    %v782 = vunpack.c.l.b16 %v266
    %v783 = vunpack.c.l.b16 %v267
    %v784 = vunpack.c.l.b16 %v268
    %v785 = vunpack.c.l.b16 %v269
    %v786 = vunpack.c.l.b16 %v270
    %v787 = vunpack.c.l.b16 %v271
    %v788 = vunpack.c.l.b16 %v272
    %v789 = vunpack.c.l.b16 %v273
    %v790 = vunpack.c.l.b16 %v274
    %v791 = vunpack.c.l.b16 %v275
    %v792 = vunpack.c.l.b16 %v276
    %v793 = vunpack.c.l.b16 %v277
    %v794 = vunpack.c.l.b16 %v278
    %v795 = vunpack.c.l.b16 %v279
    %v796 = vunpack.c.l.b16 %v280
    %v797 = vunpack.c.l.b16 %v281
    %v798 = vunpack.c.l.b16 %v282
    %v799 = vunpack.c.l.b16 %v283
    %v800 = vunpack.c.l.b16 %v284
    %v801 = vunpack.c.l.b16 %v285
    %v802 = vunpack.c.l.b16 %v286
    %v803 = vunpack.c.l.b16 %v287
    %v804 = vunpack.c.l.b16 %v288
    %v805 = vunpack.c.l.b16 %v289
    %v806 = vunpack.c.l.b16 %v290
    %v807 = vunpack.c.l.b16 %v291
    %v808 = vunpack.c.l.b16 %v292
    %v809 = vunpack.c.l.b16 %v293
    %v810 = vunpack.c.l.b16 %v294
    %v811 = vunpack.c.l.b16 %v295
    %v812 = vunpack.c.l.b16 %v296
    %v813 = vunpack.c.l.b16 %v297
    %v814 = vunpack.c.l.b16 %v298
    %v815 = vunpack.c.l.b16 %v299
    %v816 = vunpack.c.l.b16 %v300
    %v817 = vunpack.c.l.b16 %v301
    %v818 = vunpack.c.l.b16 %v302
    %v819 = vunpack.c.l.b16 %v303
    %v820 = vunpack.c.l.b16 %v304
    %v821 = vunpack.c.l.b16 %v305
    %v822 = vunpack.c.l.b16 %v306
    %v823 = vunpack.c.l.b16 %v307
    %v824 = vunpack.c.l.b16 %v308
    %v825 = vunpack.c.l.b16 %v309
    %v826 = vunpack.c.l.b16 %v310
    %v827 = vunpack.c.l.b16 %v311
    %v828 = vunpack.c.l.b16 %v312
    %v829 = vunpack.c.l.b16 %v313
    %v830 = vunpack.c.l.b16 %v314
    %v831 = vunpack.c.l.b16 %v315
    %v832 = vunpack.c.l.b16 %v316
    %v833 = vunpack.c.l.b16 %v317
    %v834 = vunpack.c.l.b16 %v318
    %v835 = vunpack.c.l.b16 %v319
    %v836 = vunpack.c.l.b16 %v320
    %v837 = vunpack.c.l.b16 %v321
    %v838 = vunpack.c.l.b16 %v322
    %v839 = vunpack.c.l.b16 %v323
    %v840 = vunpack.c.l.b16 %v324
    %v841 = vunpack.c.l.b16 %v325
    %v842 = vunpack.c.l.b16 %v326
    %v843 = vunpack.c.l.b16 %v327
    %v844 = vunpack.c.l.b16 %v328
    %v845 = vunpack.c.l.b16 %v329
    %v846 = vunpack.c.l.b16 %v330
    %v847 = vunpack.c.l.b16 %v331
    %v848 = vunpack.c.l.b16 %v332
    %v849 = vunpack.c.l.b16 %v333
    %v850 = vunpack.c.l.b16 %v334
    %v851 = vunpack.c.l.b16 %v335
    %v852 = vunpack.c.l.b16 %v336
    %v853 = vunpack.c.l.b16 %v337
    %v854 = vunpack.c.l.b16 %v338
    %v855 = vunpack.c.l.b16 %v339
    %v856 = vunpack.c.l.b16 %v340
    %v857 = vunpack.c.l.b16 %v341
    %v858 = vunpack.c.l.b16 %v342
    %v859 = vunpack.c.l.b16 %v343
    %v860 = vunpack.c.l.b16 %v344
    %v861 = vunpack.c.l.b16 %v345
    %v862 = vunpack.c.l.b16 %v346
    %v863 = vunpack.c.l.b16 %v347
    %v864 = vunpack.c.l.b16 %v348
    %v865 = vunpack.c.l.b16 %v349
    %v866 = vunpack.c.l.b16 %v350
    %v867 = vunpack.c.l.b16 %v351
    %v868 = vunpack.c.l.b16 %v352
    %v869 = vunpack.c.l.b16 %v353
    %v870 = vunpack.c.l.b16 %v354
    %v871 = vunpack.c.l.b16 %v355
    %v872 = vunpack.c.l.b16 %v356
    %v873 = vunpack.c.l.b16 %v357
    %v874 = vunpack.c.l.b16 %v358
    %v875 = vunpack.c.l.b16 %v359
    %v876 = vunpack.c.l.b16 %v360
    %v877 = vunpack.c.l.b16 %v361
    %v878 = vunpack.c.l.b16 %v362
    %v879 = vunpack.c.l.b16 %v363
    %v880 = vunpack.c.l.b16 %v364
    %v881 = vunpack.c.l.b16 %v365
    %v882 = vunpack.c.l.b16 %v366
    %v883 = vunpack.c.l.b16 %v367
    %v884 = vunpack.c.l.b16 %v368
    %v885 = vunpack.c.l.b16 %v369
    %v886 = vunpack.c.l.b16 %v370
    %v887 = vunpack.c.l.b16 %v371
    %v888 = vunpack.c.l.b16 %v372
    %v889 = vunpack.c.l.b16 %v373
    %v890 = vunpack.c.l.b16 %v374
    %v891 = vunpack.c.l.b16 %v375
    %v892 = vunpack.c.l.b16 %v376
    %v893 = vunpack.c.l.b16 %v377
    %v894 = vunpack.c.l.b16 %v378
    %v895 = vunpack.c.l.b16 %v379
    %v896 = vunpack.c.l.b16 %v380
    %v897 = vpack.c.b16 %v642, %v641
    %v898 = vpack.c.b16 %v644, %v643
    %v899 = vpack.c.b16 %v646, %v645
    %v900 = vpack.c.b16 %v648, %v647
    %v901 = vpack.c.b16 %v650, %v649
    %v902 = vpack.c.b16 %v652, %v651
    %v903 = vpack.c.b16 %v654, %v653
    %v904 = vpack.c.b16 %v656, %v655
    %v905 = vpack.c.b16 %v658, %v657
    %v906 = vpack.c.b16 %v660, %v659
    %v907 = vpack.c.b16 %v662, %v661
    %v908 = vpack.c.b16 %v664, %v663
    %v909 = vpack.c.b16 %v666, %v665
    %v910 = vpack.c.b16 %v668, %v667
    %v911 = vpack.c.b16 %v670, %v669
    %v912 = vpack.c.b16 %v672, %v671
    %v913 = vpack.c.b16 %v674, %v673
    %v914 = vpack.c.b16 %v676, %v675
    %v915 = vpack.c.b16 %v678, %v677
    %v916 = vpack.c.b16 %v680, %v679
    %v917 = vpack.c.b16 %v682, %v681
    %v918 = vpack.c.b16 %v684, %v683
    %v919 = vpack.c.b16 %v686, %v685
    %v920 = vpack.c.b16 %v688, %v687
    %v921 = vpack.c.b16 %v690, %v689
    %v922 = vpack.c.b16 %v692, %v691
    %v923 = vpack.c.b16 %v694, %v693
    %v924 = vpack.c.b16 %v696, %v695
    %v925 = vpack.c.b16 %v698, %v697
    %v926 = vpack.c.b16 %v700, %v699
    %v927 = vpack.c.b16 %v702, %v701
    %v928 = vpack.c.b16 %v704, %v703
    %v929 = vpack.c.b16 %v706, %v705
    %v930 = vpack.c.b16 %v708, %v707
    %v931 = vpack.c.b16 %v710, %v709
    %v932 = vpack.c.b16 %v712, %v711
    %v933 = vpack.c.b16 %v714, %v713
    %v934 = vpack.c.b16 %v716, %v715
    %v935 = vpack.c.b16 %v718, %v717
    %v936 = vpack.c.b16 %v720, %v719
    %v937 = vpack.c.b16 %v722, %v721
    %v938 = vpack.c.b16 %v724, %v723
    %v939 = vpack.c.b16 %v726, %v725
    %v940 = vpack.c.b16 %v728, %v727
    %v941 = vpack.c.b16 %v730, %v729
    %v942 = vpack.c.b16 %v732, %v731
    %v943 = vpack.c.b16 %v734, %v733
    %v944 = vpack.c.b16 %v736, %v735
    %v945 = vpack.c.b16 %v738, %v737
    %v946 = vpack.c.b16 %v740, %v739
    %v947 = vpack.c.b16 %v742, %v741
    %v948 = vpack.c.b16 %v744, %v743
    %v949 = vpack.c.b16 %v746, %v745
    %v950 = vpack.c.b16 %v748, %v747
    %v951 = vpack.c.b16 %v750, %v749
    %v952 = vpack.c.b16 %v752, %v751
    %v953 = vpack.c.b16 %v754, %v753
    %v954 = vpack.c.b16 %v756, %v755
    %v955 = vpack.c.b16 %v758, %v757
    %v956 = vpack.c.b16 %v760, %v759
    %v957 = vpack.c.b16 %v762, %v761
    %v958 = vpack.c.b16 %v764, %v763
    %v959 = vpack.c.b16 %v766, %v765
    %v960 = vpack.c.b16 %v768, %v767
    %v961 = vpack.c.b16 %v770, %v769
    %v962 = vpack.c.b16 %v772, %v771
    %v963 = vpack.c.b16 %v774, %v773
    %v964 = vpack.c.b16 %v776, %v775
    %v965 = vpack.c.b16 %v778, %v777
    %v966 = vpack.c.b16 %v780, %v779
    %v967 = vpack.c.b16 %v782, %v781
    %v968 = vpack.c.b16 %v784, %v783
    %v969 = vpack.c.b16 %v786, %v785
    %v970 = vpack.c.b16 %v788, %v787
    %v971 = vpack.c.b16 %v790, %v789
    %v972 = vpack.c.b16 %v792, %v791
    %v973 = vpack.c.b16 %v794, %v793
    %v974 = vpack.c.b16 %v796, %v795
    %v975 = vpack.c.b16 %v798, %v797
    %v976 = vpack.c.b16 %v800, %v799
    %v977 = vpack.c.b16 %v802, %v801
    %v978 = vpack.c.b16 %v804, %v803
    %v979 = vpack.c.b16 %v806, %v805
    %v980 = vpack.c.b16 %v808, %v807
    %v981 = vpack.c.b16 %v810, %v809
    %v982 = vpack.c.b16 %v812, %v811
    %v983 = vpack.c.b16 %v814, %v813
    %v984 = vpack.c.b16 %v816, %v815
    %v985 = vpack.c.b16 %v818, %v817
    %v986 = vpack.c.b16 %v820, %v819
    %v987 = vpack.c.b16 %v822, %v821
    %v988 = vpack.c.b16 %v824, %v823
    %v989 = vpack.c.b16 %v826, %v825
    %v990 = vpack.c.b16 %v828, %v827
    %v991 = vpack.c.b16 %v830, %v829
    %v992 = vpack.c.b16 %v832, %v831
    %v993 = vpack.c.b16 %v834, %v833
    %v994 = vpack.c.b16 %v836, %v835
    %v995 = vpack.c.b16 %v838, %v837
    %v996 = vpack.c.b16 %v840, %v839
    %v997 = vpack.c.b16 %v842, %v841
    %v998 = vpack.c.b16 %v844, %v843
    %v999 = vpack.c.b16 %v846, %v845
    %v1000 = vpack.c.b16 %v848, %v847
    %v1001 = vpack.c.b16 %v850, %v849
    %v1002 = vpack.c.b16 %v852, %v851
    %v1003 = vpack.c.b16 %v854, %v853
    %v1004 = vpack.c.b16 %v856, %v855
    %v1005 = vpack.c.b16 %v858, %v857
    %v1006 = vpack.c.b16 %v860, %v859
    %v1007 = vpack.c.b16 %v862, %v861
    %v1008 = vpack.c.b16 %v864, %v863
    %v1009 = vpack.c.b16 %v866, %v865
    %v1010 = vpack.c.b16 %v868, %v867
    %v1011 = vpack.c.b16 %v870, %v869
    %v1012 = vpack.c.b16 %v872, %v871
    %v1013 = vpack.c.b16 %v874, %v873
    %v1014 = vpack.c.b16 %v876, %v875
    %v1015 = vpack.c.b16 %v878, %v877
    %v1016 = vpack.c.b16 %v880, %v879
    %v1017 = vpack.c.b16 %v882, %v881
    %v1018 = vpack.c.b16 %v884, %v883
    %v1019 = vpack.c.b16 %v886, %v885
    %v1020 = vpack.c.b16 %v888, %v887
    %v1021 = vpack.c.b16 %v890, %v889
    %v1022 = vpack.c.b16 %v892, %v891
    %v1023 = vpack.c.b16 %v894, %v893
    %v1024 = vpack.c.b16 %v896, %v895
    %1153 = vmatpush.bf16.msra.mxu0 %v904
    %1154 = vmatpush.bf16.msra.mxu0 %v903
    %1155 = vmatpush.bf16.msra.mxu0 %v902
    %1156 = vmatpush.bf16.msra.mxu0 %v901
    %1157 = vmatpush.bf16.msra.mxu0 %v900
    %1158 = vmatpush.bf16.msra.mxu0 %v899
    %1159 = vmatpush.bf16.msra.mxu0 %v898
    %1160 = vmatpush.bf16.msra.mxu0 %v897
    %1161 = vmatmul.bf16.gmra.mxu0 %v109
    %v1162 = vpop.f32.mrf.mxu0
    %v1163 = vadd.f32 %v383, %v1162
    %v1164 = vpop.f32.mrf.mxu0
    %1165 = vdwg.mxu0
    %1166 = vmatpush.bf16.msra.mxu0 %v912
    %1167 = vmatpush.bf16.msra.mxu0 %v911
    %1168 = vmatpush.bf16.msra.mxu0 %v910
    %1169 = vmatpush.bf16.msra.mxu0 %v909
    %1170 = vmatpush.bf16.msra.mxu0 %v908
    %1171 = vmatpush.bf16.msra.mxu0 %v907
    %1172 = vmatpush.bf16.msra.mxu0 %v906
    %1173 = vmatpush.bf16.msra.mxu0 %v905
    %1174 = vmatmul.bf16.gmra.mxu0 %v110
    %v1175 = vpop.f32.mrf.mxu0
    %v1176 = vadd.f32 %v1163, %v1175
    %v1177 = vpop.f32.mrf.mxu0
    %1178 = vdwg.mxu0
    %1179 = vmatpush.bf16.msra.mxu0 %v920
    %1180 = vmatpush.bf16.msra.mxu0 %v919
    %1181 = vmatpush.bf16.msra.mxu0 %v918
    %1182 = vmatpush.bf16.msra.mxu0 %v917
    %1183 = vmatpush.bf16.msra.mxu0 %v916
    %1184 = vmatpush.bf16.msra.mxu0 %v915
    %1185 = vmatpush.bf16.msra.mxu0 %v914
    %1186 = vmatpush.bf16.msra.mxu0 %v913
    %1187 = vmatmul.bf16.gmra.mxu0 %v111
    %v1188 = vpop.f32.mrf.mxu0
    %v1189 = vadd.f32 %v1176, %v1188
    %v1190 = vpop.f32.mrf.mxu0
    %1191 = vdwg.mxu0
    %1192 = vmatpush.bf16.msra.mxu0 %v928
    %1193 = vmatpush.bf16.msra.mxu0 %v927
    %1194 = vmatpush.bf16.msra.mxu0 %v926
    %1195 = vmatpush.bf16.msra.mxu0 %v925
    %1196 = vmatpush.bf16.msra.mxu0 %v924
    %1197 = vmatpush.bf16.msra.mxu0 %v923
    %1198 = vmatpush.bf16.msra.mxu0 %v922
    %1199 = vmatpush.bf16.msra.mxu0 %v921
    %1200 = vmatmul.bf16.gmra.mxu0 %v112
    %v1201 = vpop.f32.mrf.mxu0
    %v1202 = vadd.f32 %v1189, %v1201
    %v1203 = vpop.f32.mrf.mxu0
    %1204 = vdwg.mxu0
    %1205 = vmatpush.bf16.msra.mxu0 %v936
    %1206 = vmatpush.bf16.msra.mxu0 %v935
    %1207 = vmatpush.bf16.msra.mxu0 %v934
    %1208 = vmatpush.bf16.msra.mxu0 %v933
    %1209 = vmatpush.bf16.msra.mxu0 %v932
    %1210 = vmatpush.bf16.msra.mxu0 %v931
    %1211 = vmatpush.bf16.msra.mxu0 %v930
    %1212 = vmatpush.bf16.msra.mxu0 %v929
    %1213 = vmatmul.bf16.gmra.mxu0 %v113
    %v1214 = vpop.f32.mrf.mxu0
    %v1215 = vadd.f32 %v1202, %v1214
    %v1216 = vpop.f32.mrf.mxu0
    %1217 = vdwg.mxu0
    %1218 = vmatpush.bf16.msra.mxu0 %v944
    %1219 = vmatpush.bf16.msra.mxu0 %v943
    %1220 = vmatpush.bf16.msra.mxu0 %v942
    %1221 = vmatpush.bf16.msra.mxu0 %v941
    %1222 = vmatpush.bf16.msra.mxu0 %v940
    %1223 = vmatpush.bf16.msra.mxu0 %v939
    %1224 = vmatpush.bf16.msra.mxu0 %v938
    %1225 = vmatpush.bf16.msra.mxu0 %v937
    %1226 = vmatmul.bf16.gmra.mxu0 %v114
    %v1227 = vpop.f32.mrf.mxu0
    %v1228 = vadd.f32 %v1215, %v1227
    %v1229 = vpop.f32.mrf.mxu0
    %1230 = vdwg.mxu0
    %1231 = vmatpush.bf16.msra.mxu0 %v952
    %1232 = vmatpush.bf16.msra.mxu0 %v951
    %1233 = vmatpush.bf16.msra.mxu0 %v950
    %1234 = vmatpush.bf16.msra.mxu0 %v949
    %1235 = vmatpush.bf16.msra.mxu0 %v948
    %1236 = vmatpush.bf16.msra.mxu0 %v947
    %1237 = vmatpush.bf16.msra.mxu0 %v946
    %1238 = vmatpush.bf16.msra.mxu0 %v945
    %1239 = vmatmul.bf16.gmra.mxu0 %v115
    %v1240 = vpop.f32.mrf.mxu0
    %v1241 = vadd.f32 %v1228, %v1240
    %v1242 = vpop.f32.mrf.mxu0
    %1243 = vdwg.mxu0
    %1244 = vmatpush.bf16.msra.mxu0 %v960
    %1245 = vmatpush.bf16.msra.mxu0 %v959
    %1246 = vmatpush.bf16.msra.mxu0 %v958
    %1247 = vmatpush.bf16.msra.mxu0 %v957
    %1248 = vmatpush.bf16.msra.mxu0 %v956
    %1249 = vmatpush.bf16.msra.mxu0 %v955
    %1250 = vmatpush.bf16.msra.mxu0 %v954
    %1251 = vmatpush.bf16.msra.mxu0 %v953
    %1252 = vmatmul.bf16.gmra.mxu0 %v116
    %v1253 = vpop.f32.mrf.mxu0
    %v1254 = vadd.f32 %v1241, %v1253
    %v1255 = vpop.f32.mrf.mxu0
    %1256 = vdwg.mxu0
    %1257 = vmatpush.bf16.msra.mxu0 %v968
    %1258 = vmatpush.bf16.msra.mxu0 %v967
    %1259 = vmatpush.bf16.msra.mxu0 %v966
    %1260 = vmatpush.bf16.msra.mxu0 %v965
    %1261 = vmatpush.bf16.msra.mxu0 %v964
    %1262 = vmatpush.bf16.msra.mxu0 %v963
    %1263 = vmatpush.bf16.msra.mxu0 %v962
    %1264 = vmatpush.bf16.msra.mxu0 %v961
    %1265 = vmatmul.bf16.gmra.mxu0 %v117
    %v1266 = vpop.f32.mrf.mxu0
    %v1267 = vadd.f32 %v1254, %v1266
    %v1268 = vpop.f32.mrf.mxu0
    %1269 = vdwg.mxu0
    %1270 = vmatpush.bf16.msra.mxu0 %v976
    %1271 = vmatpush.bf16.msra.mxu0 %v975
    %1272 = vmatpush.bf16.msra.mxu0 %v974
    %1273 = vmatpush.bf16.msra.mxu0 %v973
    %1274 = vmatpush.bf16.msra.mxu0 %v972
    %1275 = vmatpush.bf16.msra.mxu0 %v971
    %1276 = vmatpush.bf16.msra.mxu0 %v970
    %1277 = vmatpush.bf16.msra.mxu0 %v969
    %1278 = vmatmul.bf16.gmra.mxu0 %v118
    %v1279 = vpop.f32.mrf.mxu0
    %v1280 = vadd.f32 %v1267, %v1279
    %v1281 = vpop.f32.mrf.mxu0
    %1282 = vdwg.mxu0
    %1283 = vmatpush.bf16.msra.mxu0 %v984
    %1284 = vmatpush.bf16.msra.mxu0 %v983
    %1285 = vmatpush.bf16.msra.mxu0 %v982
    %1286 = vmatpush.bf16.msra.mxu0 %v981
    %1287 = vmatpush.bf16.msra.mxu0 %v980
    %1288 = vmatpush.bf16.msra.mxu0 %v979
    %1289 = vmatpush.bf16.msra.mxu0 %v978
    %1290 = vmatpush.bf16.msra.mxu0 %v977
    %1291 = vmatmul.bf16.gmra.mxu0 %v119
    %v1292 = vpop.f32.mrf.mxu0
    %v1293 = vadd.f32 %v1280, %v1292
    %v1294 = vpop.f32.mrf.mxu0
    %1295 = vdwg.mxu0
    %1296 = vmatpush.bf16.msra.mxu0 %v992
    %1297 = vmatpush.bf16.msra.mxu0 %v991
    %1298 = vmatpush.bf16.msra.mxu0 %v990
    %1299 = vmatpush.bf16.msra.mxu0 %v989
    %1300 = vmatpush.bf16.msra.mxu0 %v988
    %1301 = vmatpush.bf16.msra.mxu0 %v987
    %1302 = vmatpush.bf16.msra.mxu0 %v986
    %1303 = vmatpush.bf16.msra.mxu0 %v985
    %1304 = vmatmul.bf16.gmra.mxu0 %v120
    %v1305 = vpop.f32.mrf.mxu0
    %v1306 = vadd.f32 %v1293, %v1305
    %v1307 = vpop.f32.mrf.mxu0
    %1308 = vdwg.mxu0
    %1309 = vmatpush.bf16.msra.mxu0 %v1000
    %1310 = vmatpush.bf16.msra.mxu0 %v999
    %1311 = vmatpush.bf16.msra.mxu0 %v998
    %1312 = vmatpush.bf16.msra.mxu0 %v997
    %1313 = vmatpush.bf16.msra.mxu0 %v996
    %1314 = vmatpush.bf16.msra.mxu0 %v995
    %1315 = vmatpush.bf16.msra.mxu0 %v994
    %1316 = vmatpush.bf16.msra.mxu0 %v993
    %1317 = vmatmul.bf16.gmra.mxu0 %v121
    %v1318 = vpop.f32.mrf.mxu0
    %v1319 = vadd.f32 %v1306, %v1318
    %v1320 = vpop.f32.mrf.mxu0
    %1321 = vdwg.mxu0
    %1322 = vmatpush.bf16.msra.mxu0 %v1008
    %1323 = vmatpush.bf16.msra.mxu0 %v1007
    %1324 = vmatpush.bf16.msra.mxu0 %v1006
    %1325 = vmatpush.bf16.msra.mxu0 %v1005
    %1326 = vmatpush.bf16.msra.mxu0 %v1004
    %1327 = vmatpush.bf16.msra.mxu0 %v1003
    %1328 = vmatpush.bf16.msra.mxu0 %v1002
    %1329 = vmatpush.bf16.msra.mxu0 %v1001
    %1330 = vmatmul.bf16.gmra.mxu0 %v122
    %v1331 = vpop.f32.mrf.mxu0
    %v1332 = vadd.f32 %v1319, %v1331
    %v1333 = vpop.f32.mrf.mxu0
    %1334 = vdwg.mxu0
    %1335 = vmatpush.bf16.msra.mxu0 %v1016
    %1336 = vmatpush.bf16.msra.mxu0 %v1015
    %1337 = vmatpush.bf16.msra.mxu0 %v1014
    %1338 = vmatpush.bf16.msra.mxu0 %v1013
    %1339 = vmatpush.bf16.msra.mxu0 %v1012
    %1340 = vmatpush.bf16.msra.mxu0 %v1011
    %1341 = vmatpush.bf16.msra.mxu0 %v1010
    %1342 = vmatpush.bf16.msra.mxu0 %v1009
    %1343 = vmatmul.bf16.gmra.mxu0 %v123
    %v1344 = vpop.f32.mrf.mxu0
    %v1345 = vadd.f32 %v1332, %v1344
    %v1346 = vpop.f32.mrf.mxu0
    %1347 = vdwg.mxu0
    %1348 = vmatpush.bf16.msra.mxu0 %v1024
    %1349 = vmatpush.bf16.msra.mxu0 %v1023
    %1350 = vmatpush.bf16.msra.mxu0 %v1022
    %1351 = vmatpush.bf16.msra.mxu0 %v1021
    %1352 = vmatpush.bf16.msra.mxu0 %v1020
    %1353 = vmatpush.bf16.msra.mxu0 %v1019
    %1354 = vmatpush.bf16.msra.mxu0 %v1018
    %1355 = vmatpush.bf16.msra.mxu0 %v1017
    %1356 = vmatmul.bf16.gmra.mxu0 %v124
    %v1357 = vpop.f32.mrf.mxu0
    %v1358 = vadd.f32 %v1345, %v1357
    %v1359 = vpop.f32.mrf.mxu0
    %1360 = vdwg.mxu0
    %v1361 = vld [vmem:[%s3] sm:$0xf]
    %v1362 = vld [vmem:[%s3 + $0x4] sm:$0xf]
    %v1363 = vld [vmem:[%s3 + $0x8] sm:$0xf]
    %v1364 = vld [vmem:[%s3 + $0xc] sm:$0xf]
    %v1365 = vld [vmem:[%s4] sm:$0xf]
    %v1366 = vld [vmem:[%s4 + $0x4] sm:$0xf]
    %v1367 = vld [vmem:[%s4 + $0x8] sm:$0xf]
    %v1368 = vld [vmem:[%s4 + $0xc] sm:$0xf]
    %v1369 = vld [vmem:[%s1] sm:$0x3]
    %v1370 = vld [vmem:[%s0] sm:$0x3]
    %v1375 = vunpack.c.l.b16 %v1361
    %v1376 = vunpack.c.l.b16 %v1362
    %v1377 = vunpack.c.l.b16 %v1363
    %v1378 = vunpack.c.l.b16 %v1364
    %v1379 = vpack.c.b16 %v1376, %v1375
    %v1380 = vpack.c.b16 %v1378, %v1377
    %vm1383 = vcmask 261120
    %v1385 = vsel %vm1383, 0, 0
    %1387 = vmatpush.bf16.msra.mxu0 0
    %1388 = vmatpush.bf16.msra.mxu0 0
    %1389 = vmatpush.bf16.msra.mxu0 0
    %1390 = vmatpush.bf16.msra.mxu0 0
    %1391 = vmatpush.bf16.msra.mxu0 0
    %1392 = vmatpush.bf16.msra.mxu0 0
    %1393 = vmatpush.bf16.msra.mxu0 %v1380
    %1394 = vmatpush.bf16.msra.mxu0 %v1379
    %1395 = vmatmul.bf16.gmra.mxu0 %v1385
    %v1396 = vpop.f32.mrf.mxu0
    %v1397 = vadd.f32 0.0, %v1396
    %v1398 = vpop.f32.mrf.mxu0
    %1399 = vdwg.mxu0
    %v1400 = vadd.f32 %v1370, %v1397
    %v1401 = vxor.u32 %v1400, 2147483648
    %v1402 = vmul.f32 %v1401, 1.442695
    %v1403 = vpow.pop %v1402
    %v1404 = vadd.f32 %v1403, 1.0
    %v1405 = vrcp.pop %v1404
    %v1406 = vmul.f32 %v1404, %v1405
    %v1407 = vsub.f32 1.0, %v1406
    %v1408 = vmul.f32 %v1405, %v1407
    %v1409 = vadd.f32 %v1405, %v1408
    %vm1410 = vweird.f32 %v1404
    %vm1411 = vweird.f32 %v1405
    %vm1412 = vmor %vm1410, %vm1411
    %v1413 = vsel %vm1412, %v1405, %v1409
    %v1414 = vand.u32 2147483647, %v1404
    %vm1415 = vcmp.eq.f32.partialorder %v1414, 8.507059e+37
    %v1416 = vand.u32 %v1404, 2147483648
    %v1417 = vor.u32 1.1754944e-38, %v1416
    %v1418 = vsel %vm1415, %v1417, %v1413
    %v1419 = vmul.f32 1.0, %v1418
    %v1420 = vtanh.pop %v1400
    %v1421 = vmul.f32 %v1419, 0.0
    %1423 = vrot.lane.b32.xlu0 %v1420, 64
    %v1424 = vpop.permute.xlu0 %1423
    %v1426 = vmul.f32 %v1419, %v1424
    %1428 = vrot.lane.b32.xlu0 %v1426, 32
    %v1429 = vpop.permute.xlu0 %1428
    %v1431 = vadd.f32 %v1421, %v1429
    %v1432 = vtanh.pop %v1431
    %1434 = vrot.lane.b32.xlu0 %v1432, 64
    %v1435 = vpop.permute.xlu0 %1434
    %v1437 = vmul.f32 %v1419, %v1435
    %vm1438 = vcmp.gt.s32.totalorder %v1369, 0
    %v1439 = vsel %vm1438, 1, 0
    %1440 = vset.pattern.permute.xlu0 0
    %1441 = vperm.xlu0 %1440, %v1439
    %v1442 = vpop.permute.xlu0 %1441
    %vm1443 = vcmp.eq.s32.totalorder %v1442, 1
    %v1444 = vsel %vm1443, %v1431, 0.0
    %v1445 = vsel %vm1443, %v1437, 0.0
    %v1446 = vadd.f32 %v1445, 0.0
    %v1447 = vpack.c.bf16 %v1445, %v1445
    %1449 = vrot.lane.b32.xlu0 %v1447, 32
    %v1450 = vpop.permute.xlu0 %1449
    %v1455 = vunpack.c.l.b16 %v1365
    %v1456 = vunpack.c.l.b16 %v1366
    %v1457 = vunpack.c.l.b16 %v1367
    %v1458 = vunpack.c.l.b16 %v1368
    %v1459 = vpack.c.b16 %v1456, %v1455
    %v1460 = vpack.c.b16 %v1458, %v1457
    %v1464 = vsel %vm1383, %v1450, 0
    %1466 = vmatpush.bf16.msra.mxu0 0
    %1467 = vmatpush.bf16.msra.mxu0 0
    %1468 = vmatpush.bf16.msra.mxu0 0
    %1469 = vmatpush.bf16.msra.mxu0 0
    %1470 = vmatpush.bf16.msra.mxu0 0
    %1471 = vmatpush.bf16.msra.mxu0 0
    %1472 = vmatpush.bf16.msra.mxu0 %v1460
    %1473 = vmatpush.bf16.msra.mxu0 %v1459
    %1474 = vmatmul.bf16.gmra.mxu0 %v1464
    %v1475 = vpop.f32.mrf.mxu0
    %v1476 = vadd.f32 0.0, %v1475
    %v1477 = vpop.f32.mrf.mxu0
    %1478 = vdwg.mxu0
    %vm1479 = vcmask 254976
    %1480 = vst.msk [vmem:[#allocation2] sm:$0x3] %vm1479, %v1476
    %s1481 = scalar_lea.vmem %s0, 2
    %v1482 = vld [vmem:[%s1481] sm:$0x3]
    %1483 = vmatpush.bf16.msra.mxu0 0
    %1484 = vmatpush.bf16.msra.mxu0 0
    %1485 = vmatpush.bf16.msra.mxu0 0
    %1486 = vmatpush.bf16.msra.mxu0 0
    %1487 = vmatpush.bf16.msra.mxu0 0
    %1488 = vmatpush.bf16.msra.mxu0 0
    %1489 = vmatpush.bf16.msra.mxu0 %v1380
    %1490 = vmatpush.bf16.msra.mxu0 %v1379
    %1491 = vmatmul.bf16.gmra.mxu0 %v1464
    %v1492 = vpop.f32.mrf.mxu0
    %v1493 = vadd.f32 0.0, %v1492
    %v1494 = vpop.f32.mrf.mxu0
    %1495 = vdwg.mxu0
    %v1496 = vadd.f32 %v1482, %v1493
    %v1497 = vxor.u32 %v1496, 2147483648
    %v1498 = vmul.f32 %v1497, 1.442695
    %v1499 = vpow.pop %v1498
    %v1500 = vadd.f32 %v1499, 1.0
    %v1501 = vrcp.pop %v1500
    %v1502 = vmul.f32 %v1500, %v1501
    %v1503 = vsub.f32 1.0, %v1502
    %v1504 = vmul.f32 %v1501, %v1503
    %v1505 = vadd.f32 %v1501, %v1504
    %vm1506 = vweird.f32 %v1500
    %vm1507 = vweird.f32 %v1501
    %vm1508 = vmor %vm1506, %vm1507
    %v1509 = vsel %vm1508, %v1501, %v1505
    %v1510 = vand.u32 2147483647, %v1500
    %vm1511 = vcmp.eq.f32.partialorder %v1510, 8.507059e+37
    %v1512 = vand.u32 %v1500, 2147483648
    %v1513 = vor.u32 1.1754944e-38, %v1512
    %v1514 = vsel %vm1511, %v1513, %v1509
    %v1515 = vmul.f32 1.0, %v1514
    %v1516 = vtanh.pop %v1496
    %v1517 = vmul.f32 %v1515, %v1444
    %1519 = vrot.lane.b32.xlu0 %v1516, 64
    %v1520 = vpop.permute.xlu0 %1519
    %v1522 = vmul.f32 %v1515, %v1520
    %1524 = vrot.lane.b32.xlu0 %v1522, 32
    %v1525 = vpop.permute.xlu0 %1524
    %v1527 = vadd.f32 %v1517, %v1525
    %v1528 = vtanh.pop %v1527
    %1530 = vrot.lane.b32.xlu0 %v1528, 64
    %v1531 = vpop.permute.xlu0 %1530
    %v1533 = vmul.f32 %v1515, %v1531
    %vm1534 = vcmp.gt.s32.totalorder %v1369, 1
    %v1535 = vsel %vm1534, 1, 0
    %1536 = vset.pattern.permute.xlu0 0
    %1537 = vperm.xlu0 %1536, %v1535
    %v1538 = vpop.permute.xlu0 %1537
    %vm1539 = vcmp.eq.s32.totalorder %v1538, 1
    %v1540 = vsel %vm1539, %v1527, %v1444
    %v1541 = vsel %vm1539, %v1533, 0.0
    %v1542 = vsel %vm1539, %v1533, %v1445
    %v1543 = vadd.f32 %v1446, %v1541
    %v1544 = vpack.c.bf16 %v1541, %v1541
    %1546 = vrot.lane.b32.xlu0 %v1544, 32
    %v1547 = vpop.permute.xlu0 %1546
    %v1549 = vsel %vm1383, %v1547, 0
    %1551 = vmatpush.bf16.msra.mxu0 0
    %1552 = vmatpush.bf16.msra.mxu0 0
    %1553 = vmatpush.bf16.msra.mxu0 0
    %1554 = vmatpush.bf16.msra.mxu0 0
    %1555 = vmatpush.bf16.msra.mxu0 0
    %1556 = vmatpush.bf16.msra.mxu0 0
    %1557 = vmatpush.bf16.msra.mxu0 %v1460
    %1558 = vmatpush.bf16.msra.mxu0 %v1459
    %1559 = vmatmul.bf16.gmra.mxu0 %v1549
    %v1560 = vpop.f32.mrf.mxu0
    %v1561 = vadd.f32 0.0, %v1560
    %v1562 = vpop.f32.mrf.mxu0
    %1563 = vdwg.mxu0
    %s1564 = scalar_lea.vmem [#allocation2], 2
    %1565 = vst.msk [vmem:[%s1564] sm:$0x3] %vm1479, %v1561
    %s1566 = scalar_lea.vmem %s0, 4
    %v1567 = vld [vmem:[%s1566] sm:$0x3]
    %v1568 = vpack.c.bf16 %v1542, %v1542
    %1570 = vrot.lane.b32.xlu0 %v1568, 32
    %v1571 = vpop.permute.xlu0 %1570
    %v1573 = vsel %vm1383, %v1571, 0
    %1575 = vmatpush.bf16.msra.mxu0 0
    %1576 = vmatpush.bf16.msra.mxu0 0
    %1577 = vmatpush.bf16.msra.mxu0 0
    %1578 = vmatpush.bf16.msra.mxu0 0
    %1579 = vmatpush.bf16.msra.mxu0 0
    %1580 = vmatpush.bf16.msra.mxu0 0
    %1581 = vmatpush.bf16.msra.mxu0 %v1380
    %1582 = vmatpush.bf16.msra.mxu0 %v1379
    %1583 = vmatmul.bf16.gmra.mxu0 %v1573
    %v1584 = vpop.f32.mrf.mxu0
    %v1585 = vadd.f32 0.0, %v1584
    %v1586 = vpop.f32.mrf.mxu0
    %1587 = vdwg.mxu0
    %v1588 = vadd.f32 %v1567, %v1585
    %v1589 = vxor.u32 %v1588, 2147483648
    %v1590 = vmul.f32 %v1589, 1.442695
    %v1591 = vpow.pop %v1590
    %v1592 = vadd.f32 %v1591, 1.0
    %v1593 = vrcp.pop %v1592
    %v1594 = vmul.f32 %v1592, %v1593
    %v1595 = vsub.f32 1.0, %v1594
    %v1596 = vmul.f32 %v1593, %v1595
    %v1597 = vadd.f32 %v1593, %v1596
    %vm1598 = vweird.f32 %v1592
    %vm1599 = vweird.f32 %v1593
    %vm1600 = vmor %vm1598, %vm1599
    %v1601 = vsel %vm1600, %v1593, %v1597
    %v1602 = vand.u32 2147483647, %v1592
    %vm1603 = vcmp.eq.f32.partialorder %v1602, 8.507059e+37
    %v1604 = vand.u32 %v1592, 2147483648
    %v1605 = vor.u32 1.1754944e-38, %v1604
    %v1606 = vsel %vm1603, %v1605, %v1601
    %v1607 = vmul.f32 1.0, %v1606
    %v1608 = vtanh.pop %v1588
    %v1609 = vmul.f32 %v1607, %v1540
    %1611 = vrot.lane.b32.xlu0 %v1608, 64
    %v1612 = vpop.permute.xlu0 %1611
    %v1614 = vmul.f32 %v1607, %v1612
    %1616 = vrot.lane.b32.xlu0 %v1614, 32
    %v1617 = vpop.permute.xlu0 %1616
    %v1619 = vadd.f32 %v1609, %v1617
    %v1620 = vtanh.pop %v1619
    %1622 = vrot.lane.b32.xlu0 %v1620, 64
    %v1623 = vpop.permute.xlu0 %1622
    %v1625 = vmul.f32 %v1607, %v1623
    %vm1626 = vcmp.gt.s32.totalorder %v1369, 2
    %v1627 = vsel %vm1626, 1, 0
    %1628 = vset.pattern.permute.xlu0 0
    %1629 = vperm.xlu0 %1628, %v1627
    %v1630 = vpop.permute.xlu0 %1629
    %vm1631 = vcmp.eq.s32.totalorder %v1630, 1
    %v1632 = vsel %vm1631, %v1619, %v1540
    %v1633 = vsel %vm1631, %v1625, 0.0
    %v1634 = vsel %vm1631, %v1625, %v1542
    %v1635 = vadd.f32 %v1543, %v1633
    %v1636 = vpack.c.bf16 %v1633, %v1633
    %1638 = vrot.lane.b32.xlu0 %v1636, 32
    %v1639 = vpop.permute.xlu0 %1638
    %v1641 = vsel %vm1383, %v1639, 0
    %1643 = vmatpush.bf16.msra.mxu0 0
    %1644 = vmatpush.bf16.msra.mxu0 0
    %1645 = vmatpush.bf16.msra.mxu0 0
    %1646 = vmatpush.bf16.msra.mxu0 0
    %1647 = vmatpush.bf16.msra.mxu0 0
    %1648 = vmatpush.bf16.msra.mxu0 0
    %1649 = vmatpush.bf16.msra.mxu0 %v1460
    %1650 = vmatpush.bf16.msra.mxu0 %v1459
    %1651 = vmatmul.bf16.gmra.mxu0 %v1641
    %v1652 = vpop.f32.mrf.mxu0
    %v1653 = vadd.f32 0.0, %v1652
    %v1654 = vpop.f32.mrf.mxu0
    %1655 = vdwg.mxu0
    %s1656 = scalar_lea.vmem [#allocation2], 4
    %1657 = vst.msk [vmem:[%s1656] sm:$0x3] %vm1479, %v1653
    %s1658 = scalar_lea.vmem %s0, 6
    %v1659 = vld [vmem:[%s1658] sm:$0x3]
    %v1660 = vpack.c.bf16 %v1634, %v1634
    %1662 = vrot.lane.b32.xlu0 %v1660, 32
    %v1663 = vpop.permute.xlu0 %1662
    %v1665 = vsel %vm1383, %v1663, 0
    %1667 = vmatpush.bf16.msra.mxu0 0
    %1668 = vmatpush.bf16.msra.mxu0 0
    %1669 = vmatpush.bf16.msra.mxu0 0
    %1670 = vmatpush.bf16.msra.mxu0 0
    %1671 = vmatpush.bf16.msra.mxu0 0
    %1672 = vmatpush.bf16.msra.mxu0 0
    %1673 = vmatpush.bf16.msra.mxu0 %v1380
    %1674 = vmatpush.bf16.msra.mxu0 %v1379
    %1675 = vmatmul.bf16.gmra.mxu0 %v1665
    %v1676 = vpop.f32.mrf.mxu0
    %v1677 = vadd.f32 0.0, %v1676
    %v1678 = vpop.f32.mrf.mxu0
    %1679 = vdwg.mxu0
    %v1680 = vadd.f32 %v1659, %v1677
    %v1681 = vxor.u32 %v1680, 2147483648
    %v1682 = vmul.f32 %v1681, 1.442695
    %v1683 = vpow.pop %v1682
    %v1684 = vadd.f32 %v1683, 1.0
    %v1685 = vrcp.pop %v1684
    %v1686 = vmul.f32 %v1684, %v1685
    %v1687 = vsub.f32 1.0, %v1686
    %v1688 = vmul.f32 %v1685, %v1687
    %v1689 = vadd.f32 %v1685, %v1688
    %vm1690 = vweird.f32 %v1684
    %vm1691 = vweird.f32 %v1685
    %vm1692 = vmor %vm1690, %vm1691
    %v1693 = vsel %vm1692, %v1685, %v1689
    %v1694 = vand.u32 2147483647, %v1684
    %vm1695 = vcmp.eq.f32.partialorder %v1694, 8.507059e+37
    %v1696 = vand.u32 %v1684, 2147483648
    %v1697 = vor.u32 1.1754944e-38, %v1696
    %v1698 = vsel %vm1695, %v1697, %v1693
    %v1699 = vmul.f32 1.0, %v1698
    %v1700 = vtanh.pop %v1680
    %v1701 = vmul.f32 %v1699, %v1632
    %1703 = vrot.lane.b32.xlu0 %v1700, 64
    %v1704 = vpop.permute.xlu0 %1703
    %v1706 = vmul.f32 %v1699, %v1704
    %1708 = vrot.lane.b32.xlu0 %v1706, 32
    %v1709 = vpop.permute.xlu0 %1708
    %v1711 = vadd.f32 %v1701, %v1709
    %v1712 = vtanh.pop %v1711
    %1714 = vrot.lane.b32.xlu0 %v1712, 64
    %v1715 = vpop.permute.xlu0 %1714
    %v1717 = vmul.f32 %v1699, %v1715
    %vm1718 = vcmp.gt.s32.totalorder %v1369, 3
    %v1719 = vsel %vm1718, 1, 0
    %1720 = vset.pattern.permute.xlu0 0
    %1721 = vperm.xlu0 %1720, %v1719
    %v1722 = vpop.permute.xlu0 %1721
    %vm1723 = vcmp.eq.s32.totalorder %v1722, 1
    %v1724 = vsel %vm1723, %v1711, %v1632
    %v1725 = vsel %vm1723, %v1717, 0.0
    %v1726 = vsel %vm1723, %v1717, %v1634
    %v1727 = vadd.f32 %v1635, %v1725
    %v1728 = vpack.c.bf16 %v1725, %v1725
    %1730 = vrot.lane.b32.xlu0 %v1728, 32
    %v1731 = vpop.permute.xlu0 %1730
    %v1733 = vsel %vm1383, %v1731, 0
    %1735 = vmatpush.bf16.msra.mxu0 0
    %1736 = vmatpush.bf16.msra.mxu0 0
    %1737 = vmatpush.bf16.msra.mxu0 0
    %1738 = vmatpush.bf16.msra.mxu0 0
    %1739 = vmatpush.bf16.msra.mxu0 0
    %1740 = vmatpush.bf16.msra.mxu0 0
    %1741 = vmatpush.bf16.msra.mxu0 %v1460
    %1742 = vmatpush.bf16.msra.mxu0 %v1459
    %1743 = vmatmul.bf16.gmra.mxu0 %v1733
    %v1744 = vpop.f32.mrf.mxu0
    %v1745 = vadd.f32 0.0, %v1744
    %v1746 = vpop.f32.mrf.mxu0
    %1747 = vdwg.mxu0
    %s1748 = scalar_lea.vmem [#allocation2], 6
    %1749 = vst.msk [vmem:[%s1748] sm:$0x3] %vm1479, %v1745
    %s1750 = scalar_lea.vmem %s0, 8
    %v1751 = vld [vmem:[%s1750] sm:$0x3]
    %v1752 = vpack.c.bf16 %v1726, %v1726
    %1754 = vrot.lane.b32.xlu0 %v1752, 32
    %v1755 = vpop.permute.xlu0 %1754
    %v1757 = vsel %vm1383, %v1755, 0
    %1759 = vmatpush.bf16.msra.mxu0 0
    %1760 = vmatpush.bf16.msra.mxu0 0
    %1761 = vmatpush.bf16.msra.mxu0 0
    %1762 = vmatpush.bf16.msra.mxu0 0
    %1763 = vmatpush.bf16.msra.mxu0 0
    %1764 = vmatpush.bf16.msra.mxu0 0
    %1765 = vmatpush.bf16.msra.mxu0 %v1380
    %1766 = vmatpush.bf16.msra.mxu0 %v1379
    %1767 = vmatmul.bf16.gmra.mxu0 %v1757
    %v1768 = vpop.f32.mrf.mxu0
    %v1769 = vadd.f32 0.0, %v1768
    %v1770 = vpop.f32.mrf.mxu0
    %1771 = vdwg.mxu0
    %v1772 = vadd.f32 %v1751, %v1769
    %v1773 = vxor.u32 %v1772, 2147483648
    %v1774 = vmul.f32 %v1773, 1.442695
    %v1775 = vpow.pop %v1774
    %v1776 = vadd.f32 %v1775, 1.0
    %v1777 = vrcp.pop %v1776
    %v1778 = vmul.f32 %v1776, %v1777
    %v1779 = vsub.f32 1.0, %v1778
    %v1780 = vmul.f32 %v1777, %v1779
    %v1781 = vadd.f32 %v1777, %v1780
    %vm1782 = vweird.f32 %v1776
    %vm1783 = vweird.f32 %v1777
    %vm1784 = vmor %vm1782, %vm1783
    %v1785 = vsel %vm1784, %v1777, %v1781
    %v1786 = vand.u32 2147483647, %v1776
    %vm1787 = vcmp.eq.f32.partialorder %v1786, 8.507059e+37
    %v1788 = vand.u32 %v1776, 2147483648
    %v1789 = vor.u32 1.1754944e-38, %v1788
    %v1790 = vsel %vm1787, %v1789, %v1785
    %v1791 = vmul.f32 1.0, %v1790
    %v1792 = vtanh.pop %v1772
    %v1793 = vmul.f32 %v1791, %v1724
    %1795 = vrot.lane.b32.xlu0 %v1792, 64
    %v1796 = vpop.permute.xlu0 %1795
    %v1798 = vmul.f32 %v1791, %v1796
    %1800 = vrot.lane.b32.xlu0 %v1798, 32
    %v1801 = vpop.permute.xlu0 %1800
    %v1803 = vadd.f32 %v1793, %v1801
    %v1804 = vtanh.pop %v1803
    %1806 = vrot.lane.b32.xlu0 %v1804, 64
    %v1807 = vpop.permute.xlu0 %1806
    %v1809 = vmul.f32 %v1791, %v1807
    %vm1810 = vcmp.gt.s32.totalorder %v1369, 4
    %v1811 = vsel %vm1810, 1, 0
    %1812 = vset.pattern.permute.xlu0 0
    %1813 = vperm.xlu0 %1812, %v1811
    %v1814 = vpop.permute.xlu0 %1813
    %vm1815 = vcmp.eq.s32.totalorder %v1814, 1
    %v1816 = vsel %vm1815, %v1803, %v1724
    %v1817 = vsel %vm1815, %v1809, 0.0
    %v1818 = vsel %vm1815, %v1809, %v1726
    %v1819 = vadd.f32 %v1727, %v1817
    %v1820 = vpack.c.bf16 %v1817, %v1817
    %1822 = vrot.lane.b32.xlu0 %v1820, 32
    %v1823 = vpop.permute.xlu0 %1822
    %v1825 = vsel %vm1383, %v1823, 0
    %1827 = vmatpush.bf16.msra.mxu0 0
    %1828 = vmatpush.bf16.msra.mxu0 0
    %1829 = vmatpush.bf16.msra.mxu0 0
    %1830 = vmatpush.bf16.msra.mxu0 0
    %1831 = vmatpush.bf16.msra.mxu0 0
    %1832 = vmatpush.bf16.msra.mxu0 0
    %1833 = vmatpush.bf16.msra.mxu0 %v1460
    %1834 = vmatpush.bf16.msra.mxu0 %v1459
    %1835 = vmatmul.bf16.gmra.mxu0 %v1825
    %v1836 = vpop.f32.mrf.mxu0
    %v1837 = vadd.f32 0.0, %v1836
    %v1838 = vpop.f32.mrf.mxu0
    %1839 = vdwg.mxu0
    %s1840 = scalar_lea.vmem [#allocation2], 8
    %1841 = vst.msk [vmem:[%s1840] sm:$0x3] %vm1479, %v1837
    %s1842 = scalar_lea.vmem %s0, 10
    %v1843 = vld [vmem:[%s1842] sm:$0x3]
    %v1844 = vpack.c.bf16 %v1818, %v1818
    %1846 = vrot.lane.b32.xlu0 %v1844, 32
    %v1847 = vpop.permute.xlu0 %1846
    %v1849 = vsel %vm1383, %v1847, 0
    %1851 = vmatpush.bf16.msra.mxu0 0
    %1852 = vmatpush.bf16.msra.mxu0 0
    %1853 = vmatpush.bf16.msra.mxu0 0
    %1854 = vmatpush.bf16.msra.mxu0 0
    %1855 = vmatpush.bf16.msra.mxu0 0
    %1856 = vmatpush.bf16.msra.mxu0 0
    %1857 = vmatpush.bf16.msra.mxu0 %v1380
    %1858 = vmatpush.bf16.msra.mxu0 %v1379
    %1859 = vmatmul.bf16.gmra.mxu0 %v1849
    %v1860 = vpop.f32.mrf.mxu0
    %v1861 = vadd.f32 0.0, %v1860
    %v1862 = vpop.f32.mrf.mxu0
    %1863 = vdwg.mxu0
    %v1864 = vadd.f32 %v1843, %v1861
    %v1865 = vxor.u32 %v1864, 2147483648
    %v1866 = vmul.f32 %v1865, 1.442695
    %v1867 = vpow.pop %v1866
    %v1868 = vadd.f32 %v1867, 1.0
    %v1869 = vrcp.pop %v1868
    %v1870 = vmul.f32 %v1868, %v1869
    %v1871 = vsub.f32 1.0, %v1870
    %v1872 = vmul.f32 %v1869, %v1871
    %v1873 = vadd.f32 %v1869, %v1872
    %vm1874 = vweird.f32 %v1868
    %vm1875 = vweird.f32 %v1869
    %vm1876 = vmor %vm1874, %vm1875
    %v1877 = vsel %vm1876, %v1869, %v1873
    %v1878 = vand.u32 2147483647, %v1868
    %vm1879 = vcmp.eq.f32.partialorder %v1878, 8.507059e+37
    %v1880 = vand.u32 %v1868, 2147483648
    %v1881 = vor.u32 1.1754944e-38, %v1880
    %v1882 = vsel %vm1879, %v1881, %v1877
    %v1883 = vmul.f32 1.0, %v1882
    %v1884 = vtanh.pop %v1864
    %v1885 = vmul.f32 %v1883, %v1816
    %1887 = vrot.lane.b32.xlu0 %v1884, 64
    %v1888 = vpop.permute.xlu0 %1887
    %v1890 = vmul.f32 %v1883, %v1888
    %1892 = vrot.lane.b32.xlu0 %v1890, 32
    %v1893 = vpop.permute.xlu0 %1892
    %v1895 = vadd.f32 %v1885, %v1893
    %v1896 = vtanh.pop %v1895
    %1898 = vrot.lane.b32.xlu0 %v1896, 64
    %v1899 = vpop.permute.xlu0 %1898
    %v1901 = vmul.f32 %v1883, %v1899
    %vm1902 = vcmp.gt.s32.totalorder %v1369, 5
    %v1903 = vsel %vm1902, 1, 0
    %1904 = vset.pattern.permute.xlu0 0
    %1905 = vperm.xlu0 %1904, %v1903
    %v1906 = vpop.permute.xlu0 %1905
    %vm1907 = vcmp.eq.s32.totalorder %v1906, 1
    %v1908 = vsel %vm1907, %v1895, %v1816
    %v1909 = vsel %vm1907, %v1901, 0.0
    %v1910 = vsel %vm1907, %v1901, %v1818
    %v1911 = vadd.f32 %v1819, %v1909
    %v1912 = vpack.c.bf16 %v1909, %v1909
    %1914 = vrot.lane.b32.xlu0 %v1912, 32
    %v1915 = vpop.permute.xlu0 %1914
    %v1917 = vsel %vm1383, %v1915, 0
    %1919 = vmatpush.bf16.msra.mxu0 0
    %1920 = vmatpush.bf16.msra.mxu0 0
    %1921 = vmatpush.bf16.msra.mxu0 0
    %1922 = vmatpush.bf16.msra.mxu0 0
    %1923 = vmatpush.bf16.msra.mxu0 0
    %1924 = vmatpush.bf16.msra.mxu0 0
    %1925 = vmatpush.bf16.msra.mxu0 %v1460
    %1926 = vmatpush.bf16.msra.mxu0 %v1459
    %1927 = vmatmul.bf16.gmra.mxu0 %v1917
    %v1928 = vpop.f32.mrf.mxu0
    %v1929 = vadd.f32 0.0, %v1928
    %v1930 = vpop.f32.mrf.mxu0
    %1931 = vdwg.mxu0
    %s1932 = scalar_lea.vmem [#allocation2], 10
    %1933 = vst.msk [vmem:[%s1932] sm:$0x3] %vm1479, %v1929
    %s1934 = scalar_lea.vmem %s0, 12
    %v1935 = vld [vmem:[%s1934] sm:$0x3]
    %v1936 = vpack.c.bf16 %v1910, %v1910
    %1938 = vrot.lane.b32.xlu0 %v1936, 32
    %v1939 = vpop.permute.xlu0 %1938
    %v1941 = vsel %vm1383, %v1939, 0
    %1943 = vmatpush.bf16.msra.mxu0 0
    %1944 = vmatpush.bf16.msra.mxu0 0
    %1945 = vmatpush.bf16.msra.mxu0 0
    %1946 = vmatpush.bf16.msra.mxu0 0
    %1947 = vmatpush.bf16.msra.mxu0 0
    %1948 = vmatpush.bf16.msra.mxu0 0
    %1949 = vmatpush.bf16.msra.mxu0 %v1380
    %1950 = vmatpush.bf16.msra.mxu0 %v1379
    %1951 = vmatmul.bf16.gmra.mxu0 %v1941
    %v1952 = vpop.f32.mrf.mxu0
    %v1953 = vadd.f32 0.0, %v1952
    %v1954 = vpop.f32.mrf.mxu0
    %1955 = vdwg.mxu0
    %v1956 = vadd.f32 %v1935, %v1953
    %v1957 = vxor.u32 %v1956, 2147483648
    %v1958 = vmul.f32 %v1957, 1.442695
    %v1959 = vpow.pop %v1958
    %v1960 = vadd.f32 %v1959, 1.0
    %v1961 = vrcp.pop %v1960
    %v1962 = vmul.f32 %v1960, %v1961
    %v1963 = vsub.f32 1.0, %v1962
    %v1964 = vmul.f32 %v1961, %v1963
    %v1965 = vadd.f32 %v1961, %v1964
    %vm1966 = vweird.f32 %v1960
    %vm1967 = vweird.f32 %v1961
    %vm1968 = vmor %vm1966, %vm1967
    %v1969 = vsel %vm1968, %v1961, %v1965
    %v1970 = vand.u32 2147483647, %v1960
    %vm1971 = vcmp.eq.f32.partialorder %v1970, 8.507059e+37
    %v1972 = vand.u32 %v1960, 2147483648
    %v1973 = vor.u32 1.1754944e-38, %v1972
    %v1974 = vsel %vm1971, %v1973, %v1969
    %v1975 = vmul.f32 1.0, %v1974
    %v1976 = vtanh.pop %v1956
    %v1977 = vmul.f32 %v1975, %v1908
    %1979 = vrot.lane.b32.xlu0 %v1976, 64
    %v1980 = vpop.permute.xlu0 %1979
    %v1982 = vmul.f32 %v1975, %v1980
    %1984 = vrot.lane.b32.xlu0 %v1982, 32
    %v1985 = vpop.permute.xlu0 %1984
    %v1987 = vadd.f32 %v1977, %v1985
    %v1988 = vtanh.pop %v1987
    %1990 = vrot.lane.b32.xlu0 %v1988, 64
    %v1991 = vpop.permute.xlu0 %1990
    %v1993 = vmul.f32 %v1975, %v1991
    %vm1994 = vcmp.gt.s32.totalorder %v1369, 6
    %v1995 = vsel %vm1994, 1, 0
    %1996 = vset.pattern.permute.xlu0 0
    %1997 = vperm.xlu0 %1996, %v1995
    %v1998 = vpop.permute.xlu0 %1997
    %vm1999 = vcmp.eq.s32.totalorder %v1998, 1
    %v2000 = vsel %vm1999, %v1987, %v1908
    %v2001 = vsel %vm1999, %v1993, 0.0
    %v2002 = vsel %vm1999, %v1993, %v1910
    %v2003 = vadd.f32 %v1911, %v2001
    %v2004 = vpack.c.bf16 %v2001, %v2001
    %2006 = vrot.lane.b32.xlu0 %v2004, 32
    %v2007 = vpop.permute.xlu0 %2006
    %v2009 = vsel %vm1383, %v2007, 0
    %2011 = vmatpush.bf16.msra.mxu0 0
    %2012 = vmatpush.bf16.msra.mxu0 0
    %2013 = vmatpush.bf16.msra.mxu0 0
    %2014 = vmatpush.bf16.msra.mxu0 0
    %2015 = vmatpush.bf16.msra.mxu0 0
    %2016 = vmatpush.bf16.msra.mxu0 0
    %2017 = vmatpush.bf16.msra.mxu0 %v1460
    %2018 = vmatpush.bf16.msra.mxu0 %v1459
    %2019 = vmatmul.bf16.gmra.mxu0 %v2009
    %v2020 = vpop.f32.mrf.mxu0
    %v2021 = vadd.f32 0.0, %v2020
    %v2022 = vpop.f32.mrf.mxu0
    %2023 = vdwg.mxu0
    %s2024 = scalar_lea.vmem [#allocation2], 12
    %2025 = vst.msk [vmem:[%s2024] sm:$0x3] %vm1479, %v2021
    %s2026 = scalar_lea.vmem %s0, 14
    %v2027 = vld [vmem:[%s2026] sm:$0x3]
    %v2028 = vpack.c.bf16 %v2002, %v2002
    %2030 = vrot.lane.b32.xlu0 %v2028, 32
    %v2031 = vpop.permute.xlu0 %2030
    %v2033 = vsel %vm1383, %v2031, 0
    %2035 = vmatpush.bf16.msra.mxu0 0
    %2036 = vmatpush.bf16.msra.mxu0 0
    %2037 = vmatpush.bf16.msra.mxu0 0
    %2038 = vmatpush.bf16.msra.mxu0 0
    %2039 = vmatpush.bf16.msra.mxu0 0
    %2040 = vmatpush.bf16.msra.mxu0 0
    %2041 = vmatpush.bf16.msra.mxu0 %v1380
    %2042 = vmatpush.bf16.msra.mxu0 %v1379
    %2043 = vmatmul.bf16.gmra.mxu0 %v2033
    %v2044 = vpop.f32.mrf.mxu0
    %v2045 = vadd.f32 0.0, %v2044
    %v2046 = vpop.f32.mrf.mxu0
    %2047 = vdwg.mxu0
    %v2048 = vadd.f32 %v2027, %v2045
    %v2049 = vxor.u32 %v2048, 2147483648
    %v2050 = vmul.f32 %v2049, 1.442695
    %v2051 = vpow.pop %v2050
    %v2052 = vadd.f32 %v2051, 1.0
    %v2053 = vrcp.pop %v2052
    %v2054 = vmul.f32 %v2052, %v2053
    %v2055 = vsub.f32 1.0, %v2054
    %v2056 = vmul.f32 %v2053, %v2055
    %v2057 = vadd.f32 %v2053, %v2056
    %vm2058 = vweird.f32 %v2052
    %vm2059 = vweird.f32 %v2053
    %vm2060 = vmor %vm2058, %vm2059
    %v2061 = vsel %vm2060, %v2053, %v2057
    %v2062 = vand.u32 2147483647, %v2052
    %vm2063 = vcmp.eq.f32.partialorder %v2062, 8.507059e+37
    %v2064 = vand.u32 %v2052, 2147483648
    %v2065 = vor.u32 1.1754944e-38, %v2064
    %v2066 = vsel %vm2063, %v2065, %v2061
    %v2067 = vmul.f32 1.0, %v2066
    %v2068 = vtanh.pop %v2048
    %v2069 = vmul.f32 %v2067, %v2000
    %2071 = vrot.lane.b32.xlu0 %v2068, 64
    %v2072 = vpop.permute.xlu0 %2071
    %v2074 = vmul.f32 %v2067, %v2072
    %2076 = vrot.lane.b32.xlu0 %v2074, 32
    %v2077 = vpop.permute.xlu0 %2076
    %v2079 = vadd.f32 %v2069, %v2077
    %v2080 = vtanh.pop %v2079
    %2082 = vrot.lane.b32.xlu0 %v2080, 64
    %v2083 = vpop.permute.xlu0 %2082
    %v2085 = vmul.f32 %v2067, %v2083
    %vm2086 = vcmp.gt.s32.totalorder %v1369, 7
    %v2087 = vsel %vm2086, 1, 0
    %2088 = vset.pattern.permute.xlu0 0
    %2089 = vperm.xlu0 %2088, %v2087
    %v2090 = vpop.permute.xlu0 %2089
    %vm2091 = vcmp.eq.s32.totalorder %v2090, 1
    %v2092 = vsel %vm2091, %v2085, 0.0
    %v2093 = vadd.f32 %v2003, %v2092
    %v2094 = vpack.c.bf16 %v2092, %v2092
    %2096 = vrot.lane.b32.xlu0 %v2094, 32
    %v2097 = vpop.permute.xlu0 %2096
    %v2099 = vsel %vm1383, %v2097, 0
    %2101 = vmatpush.bf16.msra.mxu0 0
    %2102 = vmatpush.bf16.msra.mxu0 0
    %2103 = vmatpush.bf16.msra.mxu0 0
    %2104 = vmatpush.bf16.msra.mxu0 0
    %2105 = vmatpush.bf16.msra.mxu0 0
    %2106 = vmatpush.bf16.msra.mxu0 0
    %2107 = vmatpush.bf16.msra.mxu0 %v1460
    %2108 = vmatpush.bf16.msra.mxu0 %v1459
    %2109 = vmatmul.bf16.gmra.mxu0 %v2099
    %v2110 = vpop.f32.mrf.mxu0
    %v2111 = vadd.f32 0.0, %v2110
    %v2112 = vpop.f32.mrf.mxu0
    %2113 = vdwg.mxu0
    %s2114 = scalar_lea.vmem [#allocation2], 14
    %2115 = vst.msk [vmem:[%s2114] sm:$0x3] %vm1479, %v2111
    %v2116 = vld [vmem:[%s2] sm:$0x3]
    %2118 = vset.pattern.permute.xlu0 0
    %2119 = vperm.xlu0 %2118, %v2116
    %v2120 = vpop.permute.xlu0 %2119
    %v2122 = vmul.f32 %v2093, %v2120
    %v2123 = vpack.c.bf16 %v2122, %v2122
    %v2124 = vld [vmem:[%s6] sm:$0xf]
    %v2125 = vld [vmem:[%s6 + $0x4] sm:$0xf]
    %v2126 = vld [vmem:[%s6 + $0x8] sm:$0xf]
    %v2127 = vld [vmem:[%s6 + $0xc] sm:$0xf]
    %v2128 = vld [vmem:[%s7] sm:$0x1]
    %v2130 = vperm.slane %v2128, 0
    %2133 = vrot.lane.b32.xlu0 %v2123, 32
    %v2134 = vpop.permute.xlu0 %2133
    %v2139 = vunpack.c.l.b16 %v2124
    %v2140 = vunpack.c.l.b16 %v2125
    %v2141 = vunpack.c.l.b16 %v2126
    %v2142 = vunpack.c.l.b16 %v2127
    %v2143 = vpack.c.b16 %v2140, %v2139
    %v2144 = vpack.c.b16 %v2142, %v2141
    %v2148 = vsel %vm1383, %v2134, 0
    %2150 = vmatpush.bf16.msra.mxu0 0
    %2151 = vmatpush.bf16.msra.mxu0 0
    %2152 = vmatpush.bf16.msra.mxu0 0
    %2153 = vmatpush.bf16.msra.mxu0 0
    %2154 = vmatpush.bf16.msra.mxu0 0
    %2155 = vmatpush.bf16.msra.mxu0 0
    %2156 = vmatpush.bf16.msra.mxu0 %v2144
    %2157 = vmatpush.bf16.msra.mxu0 %v2143
    %2158 = vmatmul.bf16.gmra.mxu0 %v2148
    %v2159 = vpop.f32.mrf.mxu0
    %v2160 = vadd.f32 %v2130, %v2159
    %v2161 = vpop.f32.mrf.mxu0
    %2162 = vdwg.mxu0
    %v2163 = vpack.c.bf16 %v2160, %v2160
    %v2164 = vld [vmem:[%s8] sm:$0xf]
    %v2165 = vld [vmem:[%s8 + $0x4] sm:$0xf]
    %v2166 = vld [vmem:[%s8 + $0x8] sm:$0xf]
    %v2167 = vld [vmem:[%s8 + $0xc] sm:$0xf]
    %v2172 = vunpack.c.l.b16 %v2164
    %v2173 = vunpack.c.l.b16 %v2165
    %v2174 = vunpack.c.l.b16 %v2166
    %v2175 = vunpack.c.l.b16 %v2167
    %v2176 = vpack.c.b16 %v2173, %v2172
    %v2177 = vpack.c.b16 %v2175, %v2174
    %v2181 = vsel %vm1383, %v2163, 0
    %2183 = vmatpush.bf16.msra.mxu0 0
    %2184 = vmatpush.bf16.msra.mxu0 0
    %2185 = vmatpush.bf16.msra.mxu0 0
    %2186 = vmatpush.bf16.msra.mxu0 0
    %2187 = vmatpush.bf16.msra.mxu0 0
    %2188 = vmatpush.bf16.msra.mxu0 0
    %2189 = vmatpush.bf16.msra.mxu0 %v2177
    %2190 = vmatpush.bf16.msra.mxu0 %v2176
    %2191 = vmatmul.bf16.gmra.mxu0 %v2181
    %v2192 = vpop.f32.mrf.mxu0
    %v2193 = vadd.f32 0.0, %v2192
    %v2194 = vpop.f32.mrf.mxu0
    %2195 = vdwg.mxu0
    %v2196 = vld [vmem:[#allocation2] sm:$0x3]
    %v2197 = vmul.f32 %v2193, %v2196
    %v2198 = vsel %vm1479, %v2197, 0.0
    %2199 = vadd.xlane.f32.xlu0 %v2198
    %v2200 = vpop.xlane.xlu0 %2199
    %v2201 = vsel %vm1438, %v2200, -1e+30
    %v2202 = vsub.f32 -inf, %v2201
    %v2203 = vmul.f32 %v2202, 1.442695
    %v2204 = vpow.pop %v2203
    %v2205 = vsub.f32 %v2201, %v2201
    %v2206 = vmul.f32 %v2205, 1.442695
    %v2207 = vpow.pop %v2206
    %v2208 = vmul.f32 %v2204, 0.0
    %v2209 = vadd.f32 %v2208, %v2207
    %2211 = vset.pattern.permute.xlu0 0
    %2212 = vperm.xlu0 %2211, %v2204
    %v2213 = vpop.permute.xlu0 %2212
    %v2215 = vmul.f32 %v2213, 0.0
    %2217 = vset.pattern.permute.xlu0 0
    %2218 = vperm.xlu0 %2217, %v2207
    %v2219 = vpop.permute.xlu0 %2218
    %v2221 = vmul.f32 %v2219, %v2196
    %v2222 = vadd.f32 %v2215, %v2221
    %v2223 = vld [vmem:[%s1564] sm:$0x3]
    %v2224 = vmul.f32 %v2193, %v2223
    %v2225 = vsel %vm1479, %v2224, 0.0
    %2226 = vadd.xlane.f32.xlu0 %v2225
    %v2227 = vpop.xlane.xlu0 %2226
    %v2228 = vsel %vm1534, %v2227, -1e+30
    %v2229 = vmax.f32 %v2201, %v2228
    %v2230 = vsub.f32 %v2201, %v2229
    %v2231 = vmul.f32 %v2230, 1.442695
    %v2232 = vpow.pop %v2231
    %v2233 = vsub.f32 %v2228, %v2229
    %v2234 = vmul.f32 %v2233, 1.442695
    %v2235 = vpow.pop %v2234
    %v2236 = vmul.f32 %v2232, %v2209
    %v2237 = vadd.f32 %v2236, %v2235
    %2239 = vset.pattern.permute.xlu0 0
    %2240 = vperm.xlu0 %2239, %v2232
    %v2241 = vpop.permute.xlu0 %2240
    %v2243 = vmul.f32 %v2241, %v2222
    %2245 = vset.pattern.permute.xlu0 0
    %2246 = vperm.xlu0 %2245, %v2235
    %v2247 = vpop.permute.xlu0 %2246
    %v2249 = vmul.f32 %v2247, %v2223
    %v2250 = vadd.f32 %v2243, %v2249
    %v2251 = vld [vmem:[%s1656] sm:$0x3]
    %v2252 = vmul.f32 %v2193, %v2251
    %v2253 = vsel %vm1479, %v2252, 0.0
    %2254 = vadd.xlane.f32.xlu0 %v2253
    %v2255 = vpop.xlane.xlu0 %2254
    %v2256 = vsel %vm1626, %v2255, -1e+30
    %v2257 = vmax.f32 %v2229, %v2256
    %v2258 = vsub.f32 %v2229, %v2257
    %v2259 = vmul.f32 %v2258, 1.442695
    %v2260 = vpow.pop %v2259
    %v2261 = vsub.f32 %v2256, %v2257
    %v2262 = vmul.f32 %v2261, 1.442695
    %v2263 = vpow.pop %v2262
    %v2264 = vmul.f32 %v2260, %v2237
    %v2265 = vadd.f32 %v2264, %v2263
    %2267 = vset.pattern.permute.xlu0 0
    %2268 = vperm.xlu0 %2267, %v2260
    %v2269 = vpop.permute.xlu0 %2268
    %v2271 = vmul.f32 %v2269, %v2250
    %2273 = vset.pattern.permute.xlu0 0
    %2274 = vperm.xlu0 %2273, %v2263
    %v2275 = vpop.permute.xlu0 %2274
    %v2277 = vmul.f32 %v2275, %v2251
    %v2278 = vadd.f32 %v2271, %v2277
    %v2279 = vld [vmem:[%s1748] sm:$0x3]
    %v2280 = vmul.f32 %v2193, %v2279
    %v2281 = vsel %vm1479, %v2280, 0.0
    %2282 = vadd.xlane.f32.xlu0 %v2281
    %v2283 = vpop.xlane.xlu0 %2282
    %v2284 = vsel %vm1718, %v2283, -1e+30
    %v2285 = vmax.f32 %v2257, %v2284
    %v2286 = vsub.f32 %v2257, %v2285
    %v2287 = vmul.f32 %v2286, 1.442695
    %v2288 = vpow.pop %v2287
    %v2289 = vsub.f32 %v2284, %v2285
    %v2290 = vmul.f32 %v2289, 1.442695
    %v2291 = vpow.pop %v2290
    %v2292 = vmul.f32 %v2288, %v2265
    %v2293 = vadd.f32 %v2292, %v2291
    %2295 = vset.pattern.permute.xlu0 0
    %2296 = vperm.xlu0 %2295, %v2288
    %v2297 = vpop.permute.xlu0 %2296
    %v2299 = vmul.f32 %v2297, %v2278
    %2301 = vset.pattern.permute.xlu0 0
    %2302 = vperm.xlu0 %2301, %v2291
    %v2303 = vpop.permute.xlu0 %2302
    %v2305 = vmul.f32 %v2303, %v2279
    %v2306 = vadd.f32 %v2299, %v2305
    %v2307 = vld [vmem:[%s1840] sm:$0x3]
    %v2308 = vmul.f32 %v2193, %v2307
    %v2309 = vsel %vm1479, %v2308, 0.0
    %2310 = vadd.xlane.f32.xlu0 %v2309
    %v2311 = vpop.xlane.xlu0 %2310
    %v2312 = vsel %vm1810, %v2311, -1e+30
    %v2313 = vmax.f32 %v2285, %v2312
    %v2314 = vsub.f32 %v2285, %v2313
    %v2315 = vmul.f32 %v2314, 1.442695
    %v2316 = vpow.pop %v2315
    %v2317 = vsub.f32 %v2312, %v2313
    %v2318 = vmul.f32 %v2317, 1.442695
    %v2319 = vpow.pop %v2318
    %v2320 = vmul.f32 %v2316, %v2293
    %v2321 = vadd.f32 %v2320, %v2319
    %2323 = vset.pattern.permute.xlu0 0
    %2324 = vperm.xlu0 %2323, %v2316
    %v2325 = vpop.permute.xlu0 %2324
    %v2327 = vmul.f32 %v2325, %v2306
    %2329 = vset.pattern.permute.xlu0 0
    %2330 = vperm.xlu0 %2329, %v2319
    %v2331 = vpop.permute.xlu0 %2330
    %v2333 = vmul.f32 %v2331, %v2307
    %v2334 = vadd.f32 %v2327, %v2333
    %v2335 = vld [vmem:[%s1932] sm:$0x3]
    %v2336 = vmul.f32 %v2193, %v2335
    %v2337 = vsel %vm1479, %v2336, 0.0
    %2338 = vadd.xlane.f32.xlu0 %v2337
    %v2339 = vpop.xlane.xlu0 %2338
    %v2340 = vsel %vm1902, %v2339, -1e+30
    %v2341 = vmax.f32 %v2313, %v2340
    %v2342 = vsub.f32 %v2313, %v2341
    %v2343 = vmul.f32 %v2342, 1.442695
    %v2344 = vpow.pop %v2343
    %v2345 = vsub.f32 %v2340, %v2341
    %v2346 = vmul.f32 %v2345, 1.442695
    %v2347 = vpow.pop %v2346
    %v2348 = vmul.f32 %v2344, %v2321
    %v2349 = vadd.f32 %v2348, %v2347
    %2351 = vset.pattern.permute.xlu0 0
    %2352 = vperm.xlu0 %2351, %v2344
    %v2353 = vpop.permute.xlu0 %2352
    %v2355 = vmul.f32 %v2353, %v2334
    %2357 = vset.pattern.permute.xlu0 0
    %2358 = vperm.xlu0 %2357, %v2347
    %v2359 = vpop.permute.xlu0 %2358
    %v2361 = vmul.f32 %v2359, %v2335
    %v2362 = vadd.f32 %v2355, %v2361
    %v2363 = vld [vmem:[%s2024] sm:$0x3]
    %v2364 = vmul.f32 %v2193, %v2363
    %v2365 = vsel %vm1479, %v2364, 0.0
    %2366 = vadd.xlane.f32.xlu0 %v2365
    %v2367 = vpop.xlane.xlu0 %2366
    %v2368 = vsel %vm1994, %v2367, -1e+30
    %v2369 = vmax.f32 %v2341, %v2368
    %v2370 = vsub.f32 %v2341, %v2369
    %v2371 = vmul.f32 %v2370, 1.442695
    %v2372 = vpow.pop %v2371
    %v2373 = vsub.f32 %v2368, %v2369
    %v2374 = vmul.f32 %v2373, 1.442695
    %v2375 = vpow.pop %v2374
    %v2376 = vmul.f32 %v2372, %v2349
    %v2377 = vadd.f32 %v2376, %v2375
    %2379 = vset.pattern.permute.xlu0 0
    %2380 = vperm.xlu0 %2379, %v2372
    %v2381 = vpop.permute.xlu0 %2380
    %v2383 = vmul.f32 %v2381, %v2362
    %2385 = vset.pattern.permute.xlu0 0
    %2386 = vperm.xlu0 %2385, %v2375
    %v2387 = vpop.permute.xlu0 %2386
    %v2389 = vmul.f32 %v2387, %v2363
    %v2390 = vadd.f32 %v2383, %v2389
    %v2391 = vld [vmem:[%s2114] sm:$0x3]
    %v2392 = vmul.f32 %v2193, %v2391
    %v2393 = vsel %vm1479, %v2392, 0.0
    %2394 = vadd.xlane.f32.xlu0 %v2393
    %v2395 = vpop.xlane.xlu0 %2394
    %v2396 = vsel %vm2086, %v2395, -1e+30
    %v2397 = vmax.f32 %v2369, %v2396
    %v2398 = vsub.f32 %v2369, %v2397
    %v2399 = vmul.f32 %v2398, 1.442695
    %v2400 = vpow.pop %v2399
    %v2401 = vsub.f32 %v2396, %v2397
    %v2402 = vmul.f32 %v2401, 1.442695
    %v2403 = vpow.pop %v2402
    %v2404 = vmul.f32 %v2400, %v2377
    %v2405 = vadd.f32 %v2404, %v2403
    %2407 = vset.pattern.permute.xlu0 0
    %2408 = vperm.xlu0 %2407, %v2400
    %v2409 = vpop.permute.xlu0 %2408
    %v2411 = vmul.f32 %v2409, %v2390
    %2413 = vset.pattern.permute.xlu0 0
    %2414 = vperm.xlu0 %2413, %v2403
    %v2415 = vpop.permute.xlu0 %2414
    %v2417 = vmul.f32 %v2415, %v2391
    %v2418 = vadd.f32 %v2411, %v2417
    %v2419 = vrcp.pop %v2405
    %2421 = vset.pattern.permute.xlu0 0
    %2422 = vperm.xlu0 %2421, %v2419
    %v2423 = vpop.permute.xlu0 %2422
    %v2425 = vmul.f32 %v2418, %v2423
    %v2426 = vld [vmem:[%s5] sm:$0x1]
    %v2428 = vperm.slane %v2426, 0
    %v2430 = vadd.f32 %v2425, %v2428
    %v2431 = vpack.c.bf16 %v2430, %v2430
    %v2432 = vld [vmem:[%s9] sm:$0xf]
    %v2433 = vld [vmem:[%s9 + $0x4] sm:$0xf]
    %v2434 = vld [vmem:[%s9 + $0x8] sm:$0xf]
    %v2435 = vld [vmem:[%s9 + $0xc] sm:$0xf]
    %v2436 = vld [vmem:[%s10] sm:$0x1]
    %v2438 = vperm.slane %v2436, 0
    %v2444 = vunpack.c.l.b16 %v2432
    %v2445 = vunpack.c.l.b16 %v2433
    %v2446 = vunpack.c.l.b16 %v2434
    %v2447 = vunpack.c.l.b16 %v2435
    %v2448 = vpack.c.b16 %v2445, %v2444
    %v2449 = vpack.c.b16 %v2447, %v2446
    %v2453 = vsel %vm1383, %v2431, 0
    %2455 = vmatpush.bf16.msra.mxu0 0
    %2456 = vmatpush.bf16.msra.mxu0 0
    %2457 = vmatpush.bf16.msra.mxu0 0
    %2458 = vmatpush.bf16.msra.mxu0 0
    %2459 = vmatpush.bf16.msra.mxu0 0
    %2460 = vmatpush.bf16.msra.mxu0 0
    %2461 = vmatpush.bf16.msra.mxu0 %v2449
    %2462 = vmatpush.bf16.msra.mxu0 %v2448
    %2463 = vmatmul.bf16.gmra.mxu0 %v2453
    %v2464 = vpop.f32.mrf.mxu0
    %v2465 = vadd.f32 %v2438, %v2464
    %v2466 = vpop.f32.mrf.mxu0
    %2467 = vdwg.mxu0
    %v2468 = vpack.c.bf16 %v2465, %v2465
    %v2469 = vld [vmem:[%s14] sm:$0xf]
    %v2470 = vld [vmem:[%s14 + $0x4] sm:$0xf]
    %v2471 = vld [vmem:[%s14 + $0x8] sm:$0xf]
    %v2472 = vld [vmem:[%s14 + $0xc] sm:$0xf]
    %v2473 = vpack.c.bf16 %v1358, %v1358
    %v2474 = vld [vmem:[%s15] sm:$0xf]
    %v2475 = vld [vmem:[%s15 + $0x4] sm:$0xf]
    %v2476 = vld [vmem:[%s15 + $0x8] sm:$0xf]
    %v2477 = vld [vmem:[%s15 + $0xc] sm:$0xf]
    %v2482 = vunpack.c.l.b16 %v2474
    %v2483 = vunpack.c.l.b16 %v2475
    %v2484 = vunpack.c.l.b16 %v2476
    %v2485 = vunpack.c.l.b16 %v2477
    %v2486 = vpack.c.b16 %v2483, %v2482
    %v2487 = vpack.c.b16 %v2485, %v2484
    %v2491 = vsel %vm1383, %v2473, 0
    %2493 = vmatpush.bf16.msra.mxu0 0
    %2494 = vmatpush.bf16.msra.mxu0 0
    %2495 = vmatpush.bf16.msra.mxu0 0
    %2496 = vmatpush.bf16.msra.mxu0 0
    %2497 = vmatpush.bf16.msra.mxu0 0
    %2498 = vmatpush.bf16.msra.mxu0 0
    %2499 = vmatpush.bf16.msra.mxu0 %v2487
    %2500 = vmatpush.bf16.msra.mxu0 %v2486
    %2501 = vmatmul.bf16.gmra.mxu0 %v2491
    %v2502 = vpop.f32.mrf.mxu0
    %v2503 = vadd.f32 0.0, %v2502
    %v2504 = vpop.f32.mrf.mxu0
    %2505 = vdwg.mxu0
    %v2510 = vunpack.c.l.b16 %v2469
    %v2511 = vunpack.c.l.b16 %v2470
    %v2512 = vunpack.c.l.b16 %v2471
    %v2513 = vunpack.c.l.b16 %v2472
    %v2514 = vpack.c.b16 %v2511, %v2510
    %v2515 = vpack.c.b16 %v2513, %v2512
    %v2519 = vsel %vm1383, %v2468, 0
    %2521 = vmatpush.bf16.msra.mxu0 0
    %2522 = vmatpush.bf16.msra.mxu0 0
    %2523 = vmatpush.bf16.msra.mxu0 0
    %2524 = vmatpush.bf16.msra.mxu0 0
    %2525 = vmatpush.bf16.msra.mxu0 0
    %2526 = vmatpush.bf16.msra.mxu0 0
    %2527 = vmatpush.bf16.msra.mxu0 %v2515
    %2528 = vmatpush.bf16.msra.mxu0 %v2514
    %2529 = vmatmul.bf16.gmra.mxu0 %v2519
    %v2530 = vpop.f32.mrf.mxu0
    %v2531 = vadd.f32 %v2503, %v2530
    %v2532 = vpop.f32.mrf.mxu0
    %2533 = vdwg.mxu0
    %v2534 = vld [vmem:[%s16] sm:$0x1]
    %v2536 = vperm.slane %v2534, 0
    %v2538 = vadd.f32 %v2531, %v2536
    %vm2539 = vcmask 17408
    %2540 = vst.msk [vmem:[#allocation3] sm:$0x3] %vm2539, %v2538
    // Predicated region
    $region70: #{tpu_custom_call.1} parent=1 // pred_check
      _
    $region71: #{tpu_custom_call.1} parent=1 // pred_check_branch
      %2542 = sbr.rel (0) target = $region73
    $region72: #{tpu_custom_call.1} parent=1 // pred_region
      %2544 = vsyncadd [#allocation4], 0
      %s2546 = sshll.u32 [#allocation3], 4
      %s2547 = int_to_ptr.vmem [resolvable:$true] %s2546
      %s2548 = sshll.u32 %s17, 4
      %s2549 = int_to_ptr.hbm [resolvable:$true] %s2548
      %2551 = dma.vmem_to_hbm [thread:$0]  %s2547, 32, %s2549, [#allocation4]
    $region73: #{tpu_custom_call.1} parent=1 // pred_fallthru
      _
    // Predicated region
    $region74: #{tpu_custom_call.1} parent=1 // pred_check
      _
    $region75: #{tpu_custom_call.1} parent=1 // pred_check_branch
      %2553 = sbr.rel (0) target = $region77
    $region76: #{tpu_custom_call.1} parent=1 // pred_region
      %2555 = dma.done [#allocation4], 32
    $region77: #{tpu_custom_call.1} parent=1 // pred_fallthru
      _
    %2556 = vsyncpa [#allocation4], 1

</llo_original>
